<compile_context>
chip_gen: v6e
topology: v6e:2x2x1
jax: 0.10.0
libtpu: 0.0.40
codegen_flags: <defaults>
</compile_context>

<pallas_src>
import functools

import jax
import jax.numpy as jnp
from jax.experimental import pallas as pl
from jax.experimental.pallas import tpu as pltpu


def gatv2_kernel(xT_i_ref, x_j_ref, xT_j_ref, adjT_ref,
                 wrT_ref, brT_ref, wl_ref, bl_ref, wlT_ref, blT_ref,
                 att_ref, biasT_ref, o_ref,
                 xrT_ref, m_ref, z_ref, acc_ref,
                 *, heads, out_dim, pairwise_bf16):
    j = pl.program_id(1)
    nj = pl.num_programs(1)
    H, C = heads, out_dim

    # ---- first column tile of this row tile: project targets (transposed, lane-dense
    # over TI) and init the online-softmax state.  The augmented W_r already emits the
    # 0.6-scaled attention-weighted linear term r_i as rows H*C .. H*C+H-1.
    @pl.when(j == 0)
    def _init():
        xrT_ref[...] = jnp.dot(wrT_ref[...], xT_i_ref[...],
                               preferred_element_type=jnp.float32) + brT_ref[...]
        m_ref[...] = jnp.full(m_ref.shape, -1e30, jnp.float32)
        z_ref[...] = jnp.zeros(z_ref.shape, jnp.float32)
        acc_ref[...] = jnp.zeros(acc_ref.shape, jnp.float32)

    # ---- source-side projections for this column tile (MXU nearly idle at K=F, so
    # both orientations are computed as standard matmuls):
    #   xl  [TJ, HCp] feeds the pairwise logits and the folded linear l_j term,
    #   xlT [H*C, TJ] feeds the lane-dense aggregation matmul.
    xl = jnp.dot(x_j_ref[...], wl_ref[...],
                 preferred_element_type=jnp.float32) + bl_ref[...]
    xlT = jnp.dot(wlT_ref[...], xT_j_ref[...],
                  preferred_element_type=jnp.float32) + blT_ref[...]

    adjT = adjT_ref[...].astype(jnp.float32)     # [TJ, TI] edge multiplicities
    xrT = xrT_ref[...]                           # [HCp, TI]
    cdt = jnp.bfloat16 if pairwise_bf16 else jnp.float32

    for h in range(H):
        r_h = xrT[H * C + h:H * C + h + 1, :]    # [1, TI]  folded 0.6*sum_c att_c xr_c
        l_h = xl[:, H * C + h:H * C + h + 1]     # [TJ, 1]  folded 0.6*sum_c att_c xl_c

        # pairwise |xr_ic + xl_jc| part of leaky_relu(z) = 0.6 z + 0.4 |z|
        # (att_ref is pre-scaled by 0.4 in the wrapper; bf16 on v6e/v7x, f32 on v5e)
        xr_h = xrT[h * C:(h + 1) * C, :].astype(cdt)      # [C, TI]
        xl_h = xl[:, h * C:(h + 1) * C].astype(cdt)       # [TJ, C]
        e_abs = att_ref[h, 0].astype(cdt) * jnp.abs(xl_h[:, 0:1] + xr_h[0:1, :])
        for c in range(1, C):
            e_abs = e_abs + att_ref[h, c].astype(cdt) * jnp.abs(
                xl_h[:, c:c + 1] + xr_h[c:c + 1, :])      # [TJ, TI]

        e = (r_h + l_h) + e_abs.astype(jnp.float32)       # [TJ, TI] logits

        # No -1e30 masking: normalization is deferred and adjT zeroes non-edges, so
        # the unmasked column max is still an exact softmax stabilizer.
        m_prev = m_ref[h]                                                  # [1, TI]
        m_new = jnp.maximum(m_prev, jnp.max(e, axis=0, keepdims=True))
        scale = jnp.exp(m_prev - m_new)
        p = adjT * jnp.exp(e - m_new)                                      # [TJ, TI]
        z_ref[h] = z_ref[h] * scale + jnp.sum(p, axis=0, keepdims=True)
        # f32 aggregation matmul (MXU idle; avoids per-tile bf16 packs of p).
        acc_ref[h] = acc_ref[h] * scale + jnp.dot(
            xlT[h * C:(h + 1) * C, :], p, preferred_element_type=jnp.float32)
        m_ref[h] = m_new

    # ---- last column tile: normalize once per row tile, mean over heads, add bias.
    # The output is written transposed [C, TI] so stores are lane-dense over TI.
    @pl.when(j == nj - 1)
    def _finalize():
        out = acc_ref[0] * pl.reciprocal(z_ref[0], approx=True)
        for h in range(1, H):
            out = out + acc_ref[h] * pl.reciprocal(z_ref[h], approx=True)
        o_ref[...] = out * (1.0 / H) + biasT_ref[...]


def _augmented_weights(params, heads, out_dim):
    """Fold the att-weighted linear terms (and leaky-relu constants) into the weights."""
    wl, bl, wr, br, att, bias = params
    H, C = heads, out_dim
    F = wl.shape[0]
    wl3, wr3 = wl.reshape(F, H, C), wr.reshape(F, H, C)
    bl2, br2 = bl.reshape(H, C), br.reshape(H, C)
    # one extra output per head = 0.6 * att[h] . W[:, hC:(h+1)C]  (0.6 = linear part
    # of leaky_relu with slope 0.2); emitted directly by the projection matmuls.
    wl_x = 0.6 * jnp.einsum('fhc,hc->fh', wl3, att)
    wr_x = 0.6 * jnp.einsum('fhc,hc->fh', wr3, att)
    bl_x = 0.6 * jnp.sum(bl2 * att, axis=1)[None, :]
    br_x = 0.6 * jnp.sum(br2 * att, axis=1)[None, :]
    hcp = ((H * C + H + 7) // 8) * 8                 # pad augmented dim to sublanes
    pad = hcp - (H * C + H)
    zf = jnp.zeros((F, pad), jnp.float32)
    zb = jnp.zeros((1, pad), jnp.float32)
    wl_aug = jnp.concatenate([wl, wl_x, zf], axis=1)                       # [F, hcp]
    bl_aug = jnp.concatenate([bl.reshape(1, H * C), bl_x, zb], axis=1)     # [1, hcp]
    wrT_aug = jnp.concatenate([wr, wr_x, zf], axis=1).T                    # [hcp, F]
    brT_aug = jnp.concatenate([br.reshape(1, H * C), br_x, zb], axis=1).T  # [hcp, 1]
    wlT = wl.T                                                             # [H*C, F]
    blT = bl.reshape(1, H * C).T                                           # [H*C, 1]
    biasT = bias.reshape(1, C).T                                           # [C, 1]
    att_abs = 0.4 * att                              # 0.4 = |.| part of leaky_relu
    return wl_aug, bl_aug, wrT_aug, brT_aug, wlT, blT, biasT, att_abs, hcp


def gatv2_forward(x_float, x_binary, edge_index, params, heads, out_dim, *,
                  tile_i=256, tile_j=512, pairwise_bf16=False,
                  adj_dtype=jnp.float32):
    # pairwise_bf16=True on v6e/v7x (bf16 VPUs); keep False on v5e.
    # adj_dtype=jnp.bfloat16 halves the adjacency HBM stream (v5e suggestion).
    if x_binary.ndim == 1:
        x_binary = x_binary[:, None]
    x = jnp.concatenate([x_float.astype(jnp.float32),
                         x_binary.astype(jnp.float32)], axis=1)            # [N, F]
    N, F = x.shape
    H, C = heads, out_dim

    # PyG GATv2Conv default: remove self loops, then add one self loop per node.
    # adjT[s, d] = multiplicity of edge s -> d (source-major so e/p tiles are
    # lane-dense over the target axis inside the kernel).
    src, dst = edge_index[0], edge_index[1]
    keep = (src != dst).astype(jnp.float32)
    adjT = (jnp.zeros((N, N), jnp.float32).at[src, dst].add(keep)
            + jnp.eye(N, dtype=jnp.float32)).astype(adj_dtype)
    # TODO(synk): large sparse graphs need a CSR / scalar-prefetch gather kernel
    # instead of this dense [N, N] edge-count matrix.

    (wl_aug, bl_aug, wrT_aug, brT_aug, wlT, blT, biasT, att_abs,
     hcp) = _augmented_weights(params, heads, out_dim)
    xT = x.T

    ti, tj = min(tile_i, N), min(tile_j, N)
    assert N % ti == 0 and N % tj == 0, "N must be divisible by the tile sizes"
    assert (ti % 128 == 0 or ti == N) and (tj % 8 == 0 or tj == N)
    grid = (N // ti, N // tj)

    adj_bytes = ti * tj * adjT.dtype.itemsize
    vmem_limit = int(min(48 * 2**20, max(16 * 2**20, 8 * adj_bytes + 8 * 2**20)))

    kernel = functools.partial(gatv2_kernel, heads=H, out_dim=C,
                               pairwise_bf16=bool(pairwise_bf16))
    out_t = pl.pallas_call(
        kernel,
        out_shape=jax.ShapeDtypeStruct((C, N), jnp.float32),
        grid_spec=pltpu.PrefetchScalarGridSpec(
            num_scalar_prefetch=0,
            grid=grid,
            in_specs=[
                pl.BlockSpec((F, ti), lambda i, j: (0, i)),        # x^T target cols
                pl.BlockSpec((tj, F), lambda i, j: (j, 0)),        # x source rows
                pl.BlockSpec((F, tj), lambda i, j: (0, j)),        # x^T source cols
                pl.BlockSpec((tj, ti), lambda i, j: (j, i)),       # adj^T count tile
                pl.BlockSpec((hcp, F), lambda i, j: (0, 0)),       # W_r^T (augmented)
                pl.BlockSpec((hcp, 1), lambda i, j: (0, 0)),       # b_r^T (augmented)
                pl.BlockSpec((F, hcp), lambda i, j: (0, 0)),       # W_l (augmented)
                pl.BlockSpec((1, hcp), lambda i, j: (0, 0)),       # b_l (augmented)
                pl.BlockSpec((H * C, F), lambda i, j: (0, 0)),     # W_l^T (aggregation)
                pl.BlockSpec((H * C, 1), lambda i, j: (0, 0)),     # b_l^T
                pl.BlockSpec(memory_space=pltpu.MemorySpace.SMEM),  # 0.4*att scalars
                pl.BlockSpec((C, 1), lambda i, j: (0, 0)),         # output bias^T
            ],
            out_specs=pl.BlockSpec((C, ti), lambda i, j: (0, i)),
            scratch_shapes=[
                pltpu.VMEM((hcp, ti), jnp.float32),    # cached target projection xr^T
                pltpu.VMEM((H, 1, ti), jnp.float32),   # running max m
                pltpu.VMEM((H, 1, ti), jnp.float32),   # running (unnormalized) sum z
                pltpu.VMEM((H, C, ti), jnp.float32),   # unnormalized accumulators
            ]),
        compiler_params=pltpu.CompilerParams(
            dimension_semantics=("parallel", "arbitrary"),
            vmem_limit_bytes=vmem_limit),
    )(xT, x, xT, adjT, wrT_aug, brT_aug, wl_aug, bl_aug, wlT, blT, att_abs, biasT)
    return out_t.T     # [N, out_dim]


def init_params(key, in_dim, out_dim, heads):
    k1, k2, k3, k4 = jax.random.split(key, 4)
    scale = 1.0 / jnp.sqrt(jnp.float32(in_dim))
    wl = jax.random.normal(k1, (in_dim, heads * out_dim), jnp.float32) * scale
    wr = jax.random.normal(k2, (in_dim, heads * out_dim), jnp.float32) * scale
    bl = jnp.zeros((1, heads * out_dim), jnp.float32)
    br = jnp.zeros((1, heads * out_dim), jnp.float32)
    att = jax.random.normal(k3, (heads, out_dim), jnp.float32) * (
        1.0 / jnp.sqrt(jnp.float32(out_dim)))
    bias = jax.random.normal(k4, (1, out_dim), jnp.float32) * 0.01
    return (wl, bl, wr, br, att, bias)


def reference_forward(x_float, x_binary, edge_index, params, heads, out_dim):
    # Pure-JAX dense f32 reference with the module's math (sanity check).
    if x_binary.ndim == 1:
        x_binary = x_binary[:, None]
    x = jnp.concatenate([x_float, x_binary.astype(jnp.float32)], axis=1)
    N = x.shape[0]
    src, dst = edge_index[0], edge_index[1]
    keep = (src != dst).astype(jnp.float32)
    adj = jnp.zeros((N, N), jnp.float32).at[dst, src].add(keep) + jnp.eye(N)
    wl, bl, wr, br, att, bias = params
    H, C = heads, out_dim
    xl = x @ wl + bl
    xr = x @ wr + br
    mask = adj > 0
    acc = jnp.zeros((N, C), jnp.float32)
    for h in range(H):
        xlh, xrh = xl[:, h * C:(h + 1) * C], xr[:, h * C:(h + 1) * C]
        s = xrh[:, None, :] + xlh[None, :, :]
        s = jnp.where(s > 0, s, 0.2 * s)
        e = jnp.sum(s * att[h][None, None, :], axis=-1)
        e = jnp.where(mask, e, -1e30)
        p = adj * jnp.exp(e - e.max(1, keepdims=True))
        alpha = p / p.sum(1, keepdims=True)
        acc = acc + alpha @ xlh
    return acc / H + bias


def _run_case(key, num_nodes, num_edges, heads, out_dim=8, float_feat_dim=7,
              max_tol=8e-2, rel_tol=3e-2, **fwd_kwargs):
    kx, kb, ke1, ke2, kp = jax.random.split(key, 5)
    x_float = jax.random.normal(kx, (num_nodes, float_feat_dim), jnp.float32)
    x_binary = (jax.random.uniform(kb, (num_nodes,)) > 0.5).astype(jnp.float32)
    edge_index = jnp.stack([
        jax.random.randint(ke1, (num_edges,), 0, num_nodes),
        jax.random.randint(ke2, (num_edges,), 0, num_nodes),
    ], axis=0).astype(jnp.int32)                     # [2, E] COO (src, dst)
    params = init_params(kp, float_feat_dim + 1, out_dim, heads)

    out = gatv2_forward(x_float, x_binary, edge_index, params, heads, out_dim,
                        **fwd_kwargs)
    out = jax.block_until_ready(out)

    ref = reference_forward(x_float, x_binary, edge_index, params, heads, out_dim)
    assert out.shape == (num_nodes, out_dim)
    assert bool(jnp.all(jnp.isfinite(out)))
    max_err = float(jnp.max(jnp.abs(out - ref)))
    rel_err = float(jnp.linalg.norm(out - ref) / jnp.linalg.norm(ref))
    assert max_err < max_tol and rel_err < rel_tol, (max_err, rel_err)


if __name__ == "__main__":
    key = jax.random.PRNGKey(0)
    k1, k2, k3 = jax.random.split(key, 3)
    # 2x2 grid: exercises the online softmax across column tiles and the cached
    # target projection across row tiles (f32 pairwise math, the v5e-safe path).
    _run_case(k1, num_nodes=256, num_edges=1024, heads=2, tile_i=128, tile_j=128)
    # Default (larger) tiles clamped to N, bf16 pairwise VPU math (v6e/v7x) and a
    # compressed bf16 adjacency stream (v5e HBM suggestion); slightly looser tolerance.
    _run_case(k2, num_nodes=256, num_edges=1024, heads=2,
              pairwise_bf16=True, adj_dtype=jnp.bfloat16,
              max_tol=1.5e-1, rel_tol=6e-2)
    # Tiny graph (original test size): tiles clamp to the full arrays, grid (1, 1).
    _run_case(k3, num_nodes=16, num_edges=40, heads=1)
    print("KERNEL_OK")
</pallas_src>

<mosaic_0001>
module attributes {stable_mosaic.version = 11 : i64} {
  func.func @gatv2_kernel(%arg0: i32, %arg1: i32, %arg2: memref<8x128xf32, #tpu.memory_space<vmem>>, %arg3: memref<128x8xf32, #tpu.memory_space<vmem>>, %arg4: memref<8x128xf32, #tpu.memory_space<vmem>>, %arg5: memref<128x128xf32, #tpu.memory_space<vmem>>, %arg6: memref<24x8xf32, #tpu.memory_space<vmem>>, %arg7: memref<24x1xf32, #tpu.memory_space<vmem>>, %arg8: memref<8x24xf32, #tpu.memory_space<vmem>>, %arg9: memref<1x24xf32, #tpu.memory_space<vmem>>, %arg10: memref<16x8xf32, #tpu.memory_space<vmem>>, %arg11: memref<16x1xf32, #tpu.memory_space<vmem>>, %arg12: memref<2x8xf32, #tpu.memory_space<smem>>, %arg13: memref<8x1xf32, #tpu.memory_space<vmem>>, %arg14: memref<8x128xf32, #tpu.memory_space<vmem>>, %arg15: memref<24x128xf32, #tpu.memory_space<vmem>>, %arg16: memref<2x1x128xf32, #tpu.memory_space<vmem>>, %arg17: memref<2x1x128xf32, #tpu.memory_space<vmem>>, %arg18: memref<2x8x128xf32, #tpu.memory_space<vmem>>) attributes {dimension_semantics = [#tpu.dimension_semantics<parallel>, #tpu.dimension_semantics<arbitrary>], iteration_bounds = array<i64: 2, 2>, scalar_prefetch = 0 : i64, scratch_operands = 4 : i64, tpu.core_type = #tpu.core_type<tc>, window_params = [{transform_indices = @transform_0, window_bounds = array<i64: 8, 128>}, {transform_indices = @transform_1, window_bounds = array<i64: 128, 8>}, {transform_indices = @transform_2, window_bounds = array<i64: 8, 128>}, {transform_indices = @transform_3, window_bounds = array<i64: 128, 128>}, {pipeline_mode = #tpu.pipeline_mode<synchronous>, transform_indices = @transform_4, window_bounds = array<i64: 24, 8>}, {pipeline_mode = #tpu.pipeline_mode<synchronous>, transform_indices = @transform_5, window_bounds = array<i64: 24, 1>}, {pipeline_mode = #tpu.pipeline_mode<synchronous>, transform_indices = @transform_6, window_bounds = array<i64: 8, 24>}, {pipeline_mode = #tpu.pipeline_mode<synchronous>, transform_indices = @transform_7, window_bounds = array<i64: 1, 24>}, {pipeline_mode = #tpu.pipeline_mode<synchronous>, transform_indices = @transform_8, window_bounds = array<i64: 16, 8>}, {pipeline_mode = #tpu.pipeline_mode<synchronous>, transform_indices = @transform_9, window_bounds = array<i64: 16, 1>}, {transform_indices = @transform_10, window_bounds = array<i64: 2, 8>}, {pipeline_mode = #tpu.pipeline_mode<synchronous>, transform_indices = @transform_11, window_bounds = array<i64: 8, 1>}, {transform_indices = @transform_12, window_bounds = array<i64: 8, 128>}]} {
    %c0_i32 = arith.constant 0 : i32
    %0 = arith.cmpi eq, %arg1, %c0_i32 : i32
    %1 = arith.extui %0 : i1 to i32
    %c0_i32_0 = arith.constant 0 : i32
    %2 = arith.cmpi ne, %1, %c0_i32_0 : i32
    scf.if %2 {
      %c0_85 = arith.constant 0 : index
      %c0_86 = arith.constant 0 : index
      %260 = vector.load %arg6[%c0_85, %c0_86] : memref<24x8xf32, #tpu.memory_space<vmem>>, vector<24x8xf32>
      %c0_87 = arith.constant 0 : index
      %c0_88 = arith.constant 0 : index
      %261 = vector.load %arg2[%c0_87, %c0_88] : memref<8x128xf32, #tpu.memory_space<vmem>>, vector<8x128xf32>
      %cst_89 = arith.constant dense<0.000000e+00> : vector<24x128xf32>
      %262 = tpu.matmul %260, %261, %cst_89 {dimension_numbers = #tpu.dot_dimension_numbers<[1], [0], [0], [1], [0, 0, 1, 1], [], []>} : vector<24x8xf32>, vector<8x128xf32>, vector<24x128xf32> -> vector<24x128xf32>
      %c0_90 = arith.constant 0 : index
      %c0_91 = arith.constant 0 : index
      %263 = vector.load %arg7[%c0_90, %c0_91] : memref<24x1xf32, #tpu.memory_space<vmem>>, vector<24x1xf32>
      %264 = vector.broadcast %263 : vector<24x1xf32> to vector<24x128xf32>
      %265 = arith.addf %262, %264 : vector<24x128xf32>
      %c0_92 = arith.constant 0 : index
      %c0_93 = arith.constant 0 : index
      %266 = vector.load %arg15[%c0_92, %c0_93] : memref<24x128xf32, #tpu.memory_space<vmem>>, vector<24x128xf32>
      tpu.vector_store %arg15[%c0_92, %c0_93], %265 {strides = array<i32>} : memref<24x128xf32, #tpu.memory_space<vmem>>, vector<24x128xf32>,
      %cst_94 = arith.constant -1.000000e+30 : f32
      %267 = vector.broadcast %cst_94 : f32 to vector<2x1x128xf32>
      %c0_95 = arith.constant 0 : index
      %c0_96 = arith.constant 0 : index
      %c0_97 = arith.constant 0 : index
      %268 = vector.load %arg16[%c0_95, %c0_96, %c0_97] : memref<2x1x128xf32, #tpu.memory_space<vmem>>, vector<2x1x128xf32>
      tpu.vector_store %arg16[%c0_95, %c0_96, %c0_97], %267 {strides = array<i32>} : memref<2x1x128xf32, #tpu.memory_space<vmem>>, vector<2x1x128xf32>,
      %cst_98 = arith.constant 0.000000e+00 : f32
      %269 = vector.broadcast %cst_98 : f32 to vector<2x1x128xf32>
      %c0_99 = arith.constant 0 : index
      %c0_100 = arith.constant 0 : index
      %c0_101 = arith.constant 0 : index
      %270 = vector.load %arg17[%c0_99, %c0_100, %c0_101] : memref<2x1x128xf32, #tpu.memory_space<vmem>>, vector<2x1x128xf32>
      tpu.vector_store %arg17[%c0_99, %c0_100, %c0_101], %269 {strides = array<i32>} : memref<2x1x128xf32, #tpu.memory_space<vmem>>, vector<2x1x128xf32>,
      %cst_102 = arith.constant 0.000000e+00 : f32
      %271 = vector.broadcast %cst_102 : f32 to vector<2x8x128xf32>
      %c0_103 = arith.constant 0 : index
      %c0_104 = arith.constant 0 : index
      %c0_105 = arith.constant 0 : index
      %272 = vector.load %arg18[%c0_103, %c0_104, %c0_105] : memref<2x8x128xf32, #tpu.memory_space<vmem>>, vector<2x8x128xf32>
      tpu.vector_store %arg18[%c0_103, %c0_104, %c0_105], %271 {strides = array<i32>} : memref<2x8x128xf32, #tpu.memory_space<vmem>>, vector<2x8x128xf32>,
    } else {
    }
    %c0 = arith.constant 0 : index
    %c0_1 = arith.constant 0 : index
    %3 = vector.load %arg3[%c0, %c0_1] : memref<128x8xf32, #tpu.memory_space<vmem>>, vector<128x8xf32>
    %c0_2 = arith.constant 0 : index
    %c0_3 = arith.constant 0 : index
    %4 = vector.load %arg8[%c0_2, %c0_3] : memref<8x24xf32, #tpu.memory_space<vmem>>, vector<8x24xf32>
    %cst = arith.constant dense<0.000000e+00> : vector<128x24xf32>
    %5 = tpu.matmul %3, %4, %cst {dimension_numbers = #tpu.dot_dimension_numbers<[1], [0], [0], [1], [0, 0, 1, 1], [], []>} : vector<128x8xf32>, vector<8x24xf32>, vector<128x24xf32> -> vector<128x24xf32>
    %c0_4 = arith.constant 0 : index
    %c0_5 = arith.constant 0 : index
    %6 = vector.load %arg9[%c0_4, %c0_5] : memref<1x24xf32, #tpu.memory_space<vmem>>, vector<1x24xf32>
    %7 = vector.broadcast %6 : vector<1x24xf32> to vector<128x24xf32>
    %8 = arith.addf %5, %7 : vector<128x24xf32>
    %c0_6 = arith.constant 0 : index
    %c0_7 = arith.constant 0 : index
    %9 = vector.load %arg10[%c0_6, %c0_7] : memref<16x8xf32, #tpu.memory_space<vmem>>, vector<16x8xf32>
    %c0_8 = arith.constant 0 : index
    %c0_9 = arith.constant 0 : index
    %10 = vector.load %arg4[%c0_8, %c0_9] : memref<8x128xf32, #tpu.memory_space<vmem>>, vector<8x128xf32>
    %cst_10 = arith.constant dense<0.000000e+00> : vector<16x128xf32>
    %11 = tpu.matmul %9, %10, %cst_10 {dimension_numbers = #tpu.dot_dimension_numbers<[1], [0], [0], [1], [0, 0, 1, 1], [], []>} : vector<16x8xf32>, vector<8x128xf32>, vector<16x128xf32> -> vector<16x128xf32>
    %c0_11 = arith.constant 0 : index
    %c0_12 = arith.constant 0 : index
    %12 = vector.load %arg11[%c0_11, %c0_12] : memref<16x1xf32, #tpu.memory_space<vmem>>, vector<16x1xf32>
    %13 = vector.broadcast %12 : vector<16x1xf32> to vector<16x128xf32>
    %14 = arith.addf %11, %13 : vector<16x128xf32>
    %c0_13 = arith.constant 0 : index
    %c0_14 = arith.constant 0 : index
    %15 = vector.load %arg5[%c0_13, %c0_14] : memref<128x128xf32, #tpu.memory_space<vmem>>, vector<128x128xf32>
    %c0_15 = arith.constant 0 : index
    %c0_16 = arith.constant 0 : index
    %16 = vector.load %arg15[%c0_15, %c0_16] : memref<24x128xf32, #tpu.memory_space<vmem>>, vector<24x128xf32>
    %17 = vector.extract_strided_slice %16 {offsets = [16, 0], sizes = [1, 128], strides = [1, 1]} : vector<24x128xf32> to vector<1x128xf32>
    %18 = vector.extract_strided_slice %8 {offsets = [0, 16], sizes = [128, 1], strides = [1, 1]} : vector<128x24xf32> to vector<128x1xf32>
    %19 = vector.extract_strided_slice %16 {offsets = [0, 0], sizes = [8, 128], strides = [1, 1]} : vector<24x128xf32> to vector<8x128xf32>
    %20 = vector.extract_strided_slice %8 {offsets = [0, 0], sizes = [128, 8], strides = [1, 1]} : vector<128x24xf32> to vector<128x8xf32>
    %c0_17 = arith.constant 0 : index
    %c0_18 = arith.constant 0 : index
    %21 = memref.load %arg12[%c0_17, %c0_18] : memref<2x8xf32, #tpu.memory_space<smem>>
    %22 = vector.extract_strided_slice %20 {offsets = [0, 0], sizes = [128, 1], strides = [1, 1]} : vector<128x8xf32> to vector<128x1xf32>
    %23 = vector.extract_strided_slice %19 {offsets = [0, 0], sizes = [1, 128], strides = [1, 1]} : vector<8x128xf32> to vector<1x128xf32>
    %24 = vector.broadcast %22 : vector<128x1xf32> to vector<128x128xf32>
    %25 = vector.broadcast %23 : vector<1x128xf32> to vector<128x128xf32>
    %26 = arith.addf %24, %25 : vector<128x128xf32>
    %27 = math.absf %26 : vector<128x128xf32>
    %28 = vector.broadcast %21 : f32 to vector<128x128xf32>
    %29 = arith.mulf %28, %27 : vector<128x128xf32>
    %c0_19 = arith.constant 0 : index
    %c1 = arith.constant 1 : index
    %30 = memref.load %arg12[%c0_19, %c1] : memref<2x8xf32, #tpu.memory_space<smem>>
    %31 = vector.extract_strided_slice %20 {offsets = [0, 1], sizes = [128, 1], strides = [1, 1]} : vector<128x8xf32> to vector<128x1xf32>
    %32 = vector.extract_strided_slice %19 {offsets = [1, 0], sizes = [1, 128], strides = [1, 1]} : vector<8x128xf32> to vector<1x128xf32>
    %33 = vector.broadcast %31 : vector<128x1xf32> to vector<128x128xf32>
    %34 = vector.broadcast %32 : vector<1x128xf32> to vector<128x128xf32>
    %35 = arith.addf %33, %34 : vector<128x128xf32>
    %36 = math.absf %35 : vector<128x128xf32>
    %37 = vector.broadcast %30 : f32 to vector<128x128xf32>
    %38 = arith.mulf %37, %36 : vector<128x128xf32>
    %39 = arith.addf %29, %38 : vector<128x128xf32>
    %c0_20 = arith.constant 0 : index
    %c2 = arith.constant 2 : index
    %40 = memref.load %arg12[%c0_20, %c2] : memref<2x8xf32, #tpu.memory_space<smem>>
    %41 = vector.extract_strided_slice %20 {offsets = [0, 2], sizes = [128, 1], strides = [1, 1]} : vector<128x8xf32> to vector<128x1xf32>
    %42 = vector.extract_strided_slice %19 {offsets = [2, 0], sizes = [1, 128], strides = [1, 1]} : vector<8x128xf32> to vector<1x128xf32>
    %43 = vector.broadcast %41 : vector<128x1xf32> to vector<128x128xf32>
    %44 = vector.broadcast %42 : vector<1x128xf32> to vector<128x128xf32>
    %45 = arith.addf %43, %44 : vector<128x128xf32>
    %46 = math.absf %45 : vector<128x128xf32>
    %47 = vector.broadcast %40 : f32 to vector<128x128xf32>
    %48 = arith.mulf %47, %46 : vector<128x128xf32>
    %49 = arith.addf %39, %48 : vector<128x128xf32>
    %c0_21 = arith.constant 0 : index
    %c3 = arith.constant 3 : index
    %50 = memref.load %arg12[%c0_21, %c3] : memref<2x8xf32, #tpu.memory_space<smem>>
    %51 = vector.extract_strided_slice %20 {offsets = [0, 3], sizes = [128, 1], strides = [1, 1]} : vector<128x8xf32> to vector<128x1xf32>
    %52 = vector.extract_strided_slice %19 {offsets = [3, 0], sizes = [1, 128], strides = [1, 1]} : vector<8x128xf32> to vector<1x128xf32>
    %53 = vector.broadcast %51 : vector<128x1xf32> to vector<128x128xf32>
    %54 = vector.broadcast %52 : vector<1x128xf32> to vector<128x128xf32>
    %55 = arith.addf %53, %54 : vector<128x128xf32>
    %56 = math.absf %55 : vector<128x128xf32>
    %57 = vector.broadcast %50 : f32 to vector<128x128xf32>
    %58 = arith.mulf %57, %56 : vector<128x128xf32>
    %59 = arith.addf %49, %58 : vector<128x128xf32>
    %c0_22 = arith.constant 0 : index
    %c4 = arith.constant 4 : index
    %60 = memref.load %arg12[%c0_22, %c4] : memref<2x8xf32, #tpu.memory_space<smem>>
    %61 = vector.extract_strided_slice %20 {offsets = [0, 4], sizes = [128, 1], strides = [1, 1]} : vector<128x8xf32> to vector<128x1xf32>
    %62 = vector.extract_strided_slice %19 {offsets = [4, 0], sizes = [1, 128], strides = [1, 1]} : vector<8x128xf32> to vector<1x128xf32>
    %63 = vector.broadcast %61 : vector<128x1xf32> to vector<128x128xf32>
    %64 = vector.broadcast %62 : vector<1x128xf32> to vector<128x128xf32>
    %65 = arith.addf %63, %64 : vector<128x128xf32>
    %66 = math.absf %65 : vector<128x128xf32>
    %67 = vector.broadcast %60 : f32 to vector<128x128xf32>
    %68 = arith.mulf %67, %66 : vector<128x128xf32>
    %69 = arith.addf %59, %68 : vector<128x128xf32>
    %c0_23 = arith.constant 0 : index
    %c5 = arith.constant 5 : index
    %70 = memref.load %arg12[%c0_23, %c5] : memref<2x8xf32, #tpu.memory_space<smem>>
    %71 = vector.extract_strided_slice %20 {offsets = [0, 5], sizes = [128, 1], strides = [1, 1]} : vector<128x8xf32> to vector<128x1xf32>
    %72 = vector.extract_strided_slice %19 {offsets = [5, 0], sizes = [1, 128], strides = [1, 1]} : vector<8x128xf32> to vector<1x128xf32>
    %73 = vector.broadcast %71 : vector<128x1xf32> to vector<128x128xf32>
    %74 = vector.broadcast %72 : vector<1x128xf32> to vector<128x128xf32>
    %75 = arith.addf %73, %74 : vector<128x128xf32>
    %76 = math.absf %75 : vector<128x128xf32>
    %77 = vector.broadcast %70 : f32 to vector<128x128xf32>
    %78 = arith.mulf %77, %76 : vector<128x128xf32>
    %79 = arith.addf %69, %78 : vector<128x128xf32>
    %c0_24 = arith.constant 0 : index
    %c6 = arith.constant 6 : index
    %80 = memref.load %arg12[%c0_24, %c6] : memref<2x8xf32, #tpu.memory_space<smem>>
    %81 = vector.extract_strided_slice %20 {offsets = [0, 6], sizes = [128, 1], strides = [1, 1]} : vector<128x8xf32> to vector<128x1xf32>
    %82 = vector.extract_strided_slice %19 {offsets = [6, 0], sizes = [1, 128], strides = [1, 1]} : vector<8x128xf32> to vector<1x128xf32>
    %83 = vector.broadcast %81 : vector<128x1xf32> to vector<128x128xf32>
    %84 = vector.broadcast %82 : vector<1x128xf32> to vector<128x128xf32>
    %85 = arith.addf %83, %84 : vector<128x128xf32>
    %86 = math.absf %85 : vector<128x128xf32>
    %87 = vector.broadcast %80 : f32 to vector<128x128xf32>
    %88 = arith.mulf %87, %86 : vector<128x128xf32>
    %89 = arith.addf %79, %88 : vector<128x128xf32>
    %c0_25 = arith.constant 0 : index
    %c7 = arith.constant 7 : index
    %90 = memref.load %arg12[%c0_25, %c7] : memref<2x8xf32, #tpu.memory_space<smem>>
    %91 = vector.extract_strided_slice %20 {offsets = [0, 7], sizes = [128, 1], strides = [1, 1]} : vector<128x8xf32> to vector<128x1xf32>
    %92 = vector.extract_strided_slice %19 {offsets = [7, 0], sizes = [1, 128], strides = [1, 1]} : vector<8x128xf32> to vector<1x128xf32>
    %93 = vector.broadcast %91 : vector<128x1xf32> to vector<128x128xf32>
    %94 = vector.broadcast %92 : vector<1x128xf32> to vector<128x128xf32>
    %95 = arith.addf %93, %94 : vector<128x128xf32>
    %96 = math.absf %95 : vector<128x128xf32>
    %97 = vector.broadcast %90 : f32 to vector<128x128xf32>
    %98 = arith.mulf %97, %96 : vector<128x128xf32>
    %99 = arith.addf %89, %98 : vector<128x128xf32>
    %100 = vector.broadcast %17 : vector<1x128xf32> to vector<128x128xf32>
    %101 = vector.broadcast %18 : vector<128x1xf32> to vector<128x128xf32>
    %102 = arith.addf %100, %101 : vector<128x128xf32>
    %103 = arith.addf %102, %99 : vector<128x128xf32>
    %c0_26 = arith.constant 0 : index
    %c0_27 = arith.constant 0 : index
    %c0_28 = arith.constant 0 : index
    %104 = vector.load %arg16[%c0_26, %c0_27, %c0_28] : memref<2x1x128xf32, #tpu.memory_space<vmem>>, vector<1x1x128xf32>
    %105 = vector.shape_cast %104 : vector<1x1x128xf32> to vector<1x128xf32>
    %cst_29 = arith.constant dense<0xFF800000> : vector<128xf32>
    %106 = vector.multi_reduction <maximumf>, %103, %cst_29 [0] : vector<128x128xf32> to vector<128xf32>
    %107 = vector.shape_cast %106 : vector<128xf32> to vector<1x128xf32>
    %108 = arith.maximumf %105, %107 : vector<1x128xf32>
    %109 = arith.subf %105, %108 : vector<1x128xf32>
    %110 = math.exp %109 : vector<1x128xf32>
    %111 = vector.broadcast %108 : vector<1x128xf32> to vector<128x128xf32>
    %112 = arith.subf %103, %111 : vector<128x128xf32>
    %113 = math.exp %112 : vector<128x128xf32>
    %114 = arith.mulf %15, %113 : vector<128x128xf32>
    %c0_30 = arith.constant 0 : index
    %c0_31 = arith.constant 0 : index
    %c0_32 = arith.constant 0 : index
    %115 = vector.load %arg17[%c0_30, %c0_31, %c0_32] : memref<2x1x128xf32, #tpu.memory_space<vmem>>, vector<1x1x128xf32>
    %116 = vector.shape_cast %115 : vector<1x1x128xf32> to vector<1x128xf32>
    %117 = arith.mulf %116, %110 : vector<1x128xf32>
    %cst_33 = arith.constant dense<0.000000e+00> : vector<128xf32>
    %118 = vector.multi_reduction <add>, %114, %cst_33 [0] : vector<128x128xf32> to vector<128xf32>
    %119 = vector.shape_cast %118 : vector<128xf32> to vector<1x128xf32>
    %120 = arith.addf %117, %119 : vector<1x128xf32>
    %c0_34 = arith.constant 0 : index
    %c0_35 = arith.constant 0 : index
    %c0_36 = arith.constant 0 : index
    %121 = vector.load %arg17[%c0_34, %c0_35, %c0_36] : memref<2x1x128xf32, #tpu.memory_space<vmem>>, vector<1x1x128xf32>
    %122 = vector.shape_cast %121 : vector<1x1x128xf32> to vector<1x128xf32>
    %123 = vector.shape_cast %120 : vector<1x128xf32> to vector<1x1x128xf32>
    tpu.vector_store %arg17[%c0_34, %c0_35, %c0_36], %123 {strides = array<i32>} : memref<2x1x128xf32, #tpu.memory_space<vmem>>, vector<1x1x128xf32>,
    %c0_37 = arith.constant 0 : index
    %c0_38 = arith.constant 0 : index
    %c0_39 = arith.constant 0 : index
    %124 = vector.load %arg18[%c0_37, %c0_38, %c0_39] : memref<2x8x128xf32, #tpu.memory_space<vmem>>, vector<1x8x128xf32>
    %125 = vector.shape_cast %124 : vector<1x8x128xf32> to vector<8x128xf32>
    %126 = vector.broadcast %110 : vector<1x128xf32> to vector<8x128xf32>
    %127 = arith.mulf %125, %126 : vector<8x128xf32>
    %128 = vector.extract_strided_slice %14 {offsets = [0, 0], sizes = [8, 128], strides = [1, 1]} : vector<16x128xf32> to vector<8x128xf32>
    %cst_40 = arith.constant dense<0.000000e+00> : vector<8x128xf32>
    %129 = tpu.matmul %128, %114, %cst_40 {dimension_numbers = #tpu.dot_dimension_numbers<[1], [0], [0], [1], [0, 0, 1, 1], [], []>} : vector<8x128xf32>, vector<128x128xf32>, vector<8x128xf32> -> vector<8x128xf32>
    %130 = arith.addf %127, %129 : vector<8x128xf32>
    %c0_41 = arith.constant 0 : index
    %c0_42 = arith.constant 0 : index
    %c0_43 = arith.constant 0 : index
    %131 = vector.load %arg18[%c0_41, %c0_42, %c0_43] : memref<2x8x128xf32, #tpu.memory_space<vmem>>, vector<1x8x128xf32>
    %132 = vector.shape_cast %131 : vector<1x8x128xf32> to vector<8x128xf32>
    %133 = vector.shape_cast %130 : vector<8x128xf32> to vector<1x8x128xf32>
    tpu.vector_store %arg18[%c0_41, %c0_42, %c0_43], %133 {strides = array<i32>} : memref<2x8x128xf32, #tpu.memory_space<vmem>>, vector<1x8x128xf32>,
    %c0_44 = arith.constant 0 : index
    %c0_45 = arith.constant 0 : index
    %c0_46 = arith.constant 0 : index
    %134 = vector.load %arg16[%c0_44, %c0_45, %c0_46] : memref<2x1x128xf32, #tpu.memory_space<vmem>>, vector<1x1x128xf32>
    %135 = vector.shape_cast %134 : vector<1x1x128xf32> to vector<1x128xf32>
    %136 = vector.shape_cast %108 : vector<1x128xf32> to vector<1x1x128xf32>
    tpu.vector_store %arg16[%c0_44, %c0_45, %c0_46], %136 {strides = array<i32>} : memref<2x1x128xf32, #tpu.memory_space<vmem>>, vector<1x1x128xf32>,
    %137 = vector.extract_strided_slice %16 {offsets = [17, 0], sizes = [1, 128], strides = [1, 1]} : vector<24x128xf32> to vector<1x128xf32>
    %138 = vector.extract_strided_slice %8 {offsets = [0, 17], sizes = [128, 1], strides = [1, 1]} : vector<128x24xf32> to vector<128x1xf32>
    %139 = vector.extract_strided_slice %16 {offsets = [8, 0], sizes = [8, 128], strides = [1, 1]} : vector<24x128xf32> to vector<8x128xf32>
    %140 = vector.extract_strided_slice %8 {offsets = [0, 8], sizes = [128, 8], strides = [1, 1]} : vector<128x24xf32> to vector<128x8xf32>
    %c1_47 = arith.constant 1 : index
    %c0_48 = arith.constant 0 : index
    %141 = memref.load %arg12[%c1_47, %c0_48] : memref<2x8xf32, #tpu.memory_space<smem>>
    %142 = vector.extract_strided_slice %140 {offsets = [0, 0], sizes = [128, 1], strides = [1, 1]} : vector<128x8xf32> to vector<128x1xf32>
    %143 = vector.extract_strided_slice %139 {offsets = [0, 0], sizes = [1, 128], strides = [1, 1]} : vector<8x128xf32> to vector<1x128xf32>
    %144 = vector.broadcast %142 : vector<128x1xf32> to vector<128x128xf32>
    %145 = vector.broadcast %143 : vector<1x128xf32> to vector<128x128xf32>
    %146 = arith.addf %144, %145 : vector<128x128xf32>
    %147 = math.absf %146 : vector<128x128xf32>
    %148 = vector.broadcast %141 : f32 to vector<128x128xf32>
    %149 = arith.mulf %148, %147 : vector<128x128xf32>
    %c1_49 = arith.constant 1 : index
    %c1_50 = arith.constant 1 : index
    %150 = memref.load %arg12[%c1_49, %c1_50] : memref<2x8xf32, #tpu.memory_space<smem>>
    %151 = vector.extract_strided_slice %140 {offsets = [0, 1], sizes = [128, 1], strides = [1, 1]} : vector<128x8xf32> to vector<128x1xf32>
    %152 = vector.extract_strided_slice %139 {offsets = [1, 0], sizes = [1, 128], strides = [1, 1]} : vector<8x128xf32> to vector<1x128xf32>
    %153 = vector.broadcast %151 : vector<128x1xf32> to vector<128x128xf32>
    %154 = vector.broadcast %152 : vector<1x128xf32> to vector<128x128xf32>
    %155 = arith.addf %153, %154 : vector<128x128xf32>
    %156 = math.absf %155 : vector<128x128xf32>
    %157 = vector.broadcast %150 : f32 to vector<128x128xf32>
    %158 = arith.mulf %157, %156 : vector<128x128xf32>
    %159 = arith.addf %149, %158 : vector<128x128xf32>
    %c1_51 = arith.constant 1 : index
    %c2_52 = arith.constant 2 : index
    %160 = memref.load %arg12[%c1_51, %c2_52] : memref<2x8xf32, #tpu.memory_space<smem>>
    %161 = vector.extract_strided_slice %140 {offsets = [0, 2], sizes = [128, 1], strides = [1, 1]} : vector<128x8xf32> to vector<128x1xf32>
    %162 = vector.extract_strided_slice %139 {offsets = [2, 0], sizes = [1, 128], strides = [1, 1]} : vector<8x128xf32> to vector<1x128xf32>
    %163 = vector.broadcast %161 : vector<128x1xf32> to vector<128x128xf32>
    %164 = vector.broadcast %162 : vector<1x128xf32> to vector<128x128xf32>
    %165 = arith.addf %163, %164 : vector<128x128xf32>
    %166 = math.absf %165 : vector<128x128xf32>
    %167 = vector.broadcast %160 : f32 to vector<128x128xf32>
    %168 = arith.mulf %167, %166 : vector<128x128xf32>
    %169 = arith.addf %159, %168 : vector<128x128xf32>
    %c1_53 = arith.constant 1 : index
    %c3_54 = arith.constant 3 : index
    %170 = memref.load %arg12[%c1_53, %c3_54] : memref<2x8xf32, #tpu.memory_space<smem>>
    %171 = vector.extract_strided_slice %140 {offsets = [0, 3], sizes = [128, 1], strides = [1, 1]} : vector<128x8xf32> to vector<128x1xf32>
    %172 = vector.extract_strided_slice %139 {offsets = [3, 0], sizes = [1, 128], strides = [1, 1]} : vector<8x128xf32> to vector<1x128xf32>
    %173 = vector.broadcast %171 : vector<128x1xf32> to vector<128x128xf32>
    %174 = vector.broadcast %172 : vector<1x128xf32> to vector<128x128xf32>
    %175 = arith.addf %173, %174 : vector<128x128xf32>
    %176 = math.absf %175 : vector<128x128xf32>
    %177 = vector.broadcast %170 : f32 to vector<128x128xf32>
    %178 = arith.mulf %177, %176 : vector<128x128xf32>
    %179 = arith.addf %169, %178 : vector<128x128xf32>
    %c1_55 = arith.constant 1 : index
    %c4_56 = arith.constant 4 : index
    %180 = memref.load %arg12[%c1_55, %c4_56] : memref<2x8xf32, #tpu.memory_space<smem>>
    %181 = vector.extract_strided_slice %140 {offsets = [0, 4], sizes = [128, 1], strides = [1, 1]} : vector<128x8xf32> to vector<128x1xf32>
    %182 = vector.extract_strided_slice %139 {offsets = [4, 0], sizes = [1, 128], strides = [1, 1]} : vector<8x128xf32> to vector<1x128xf32>
    %183 = vector.broadcast %181 : vector<128x1xf32> to vector<128x128xf32>
    %184 = vector.broadcast %182 : vector<1x128xf32> to vector<128x128xf32>
    %185 = arith.addf %183, %184 : vector<128x128xf32>
    %186 = math.absf %185 : vector<128x128xf32>
    %187 = vector.broadcast %180 : f32 to vector<128x128xf32>
    %188 = arith.mulf %187, %186 : vector<128x128xf32>
    %189 = arith.addf %179, %188 : vector<128x128xf32>
    %c1_57 = arith.constant 1 : index
    %c5_58 = arith.constant 5 : index
    %190 = memref.load %arg12[%c1_57, %c5_58] : memref<2x8xf32, #tpu.memory_space<smem>>
    %191 = vector.extract_strided_slice %140 {offsets = [0, 5], sizes = [128, 1], strides = [1, 1]} : vector<128x8xf32> to vector<128x1xf32>
    %192 = vector.extract_strided_slice %139 {offsets = [5, 0], sizes = [1, 128], strides = [1, 1]} : vector<8x128xf32> to vector<1x128xf32>
    %193 = vector.broadcast %191 : vector<128x1xf32> to vector<128x128xf32>
    %194 = vector.broadcast %192 : vector<1x128xf32> to vector<128x128xf32>
    %195 = arith.addf %193, %194 : vector<128x128xf32>
    %196 = math.absf %195 : vector<128x128xf32>
    %197 = vector.broadcast %190 : f32 to vector<128x128xf32>
    %198 = arith.mulf %197, %196 : vector<128x128xf32>
    %199 = arith.addf %189, %198 : vector<128x128xf32>
    %c1_59 = arith.constant 1 : index
    %c6_60 = arith.constant 6 : index
    %200 = memref.load %arg12[%c1_59, %c6_60] : memref<2x8xf32, #tpu.memory_space<smem>>
    %201 = vector.extract_strided_slice %140 {offsets = [0, 6], sizes = [128, 1], strides = [1, 1]} : vector<128x8xf32> to vector<128x1xf32>
    %202 = vector.extract_strided_slice %139 {offsets = [6, 0], sizes = [1, 128], strides = [1, 1]} : vector<8x128xf32> to vector<1x128xf32>
    %203 = vector.broadcast %201 : vector<128x1xf32> to vector<128x128xf32>
    %204 = vector.broadcast %202 : vector<1x128xf32> to vector<128x128xf32>
    %205 = arith.addf %203, %204 : vector<128x128xf32>
    %206 = math.absf %205 : vector<128x128xf32>
    %207 = vector.broadcast %200 : f32 to vector<128x128xf32>
    %208 = arith.mulf %207, %206 : vector<128x128xf32>
    %209 = arith.addf %199, %208 : vector<128x128xf32>
    %c1_61 = arith.constant 1 : index
    %c7_62 = arith.constant 7 : index
    %210 = memref.load %arg12[%c1_61, %c7_62] : memref<2x8xf32, #tpu.memory_space<smem>>
    %211 = vector.extract_strided_slice %140 {offsets = [0, 7], sizes = [128, 1], strides = [1, 1]} : vector<128x8xf32> to vector<128x1xf32>
    %212 = vector.extract_strided_slice %139 {offsets = [7, 0], sizes = [1, 128], strides = [1, 1]} : vector<8x128xf32> to vector<1x128xf32>
    %213 = vector.broadcast %211 : vector<128x1xf32> to vector<128x128xf32>
    %214 = vector.broadcast %212 : vector<1x128xf32> to vector<128x128xf32>
    %215 = arith.addf %213, %214 : vector<128x128xf32>
    %216 = math.absf %215 : vector<128x128xf32>
    %217 = vector.broadcast %210 : f32 to vector<128x128xf32>
    %218 = arith.mulf %217, %216 : vector<128x128xf32>
    %219 = arith.addf %209, %218 : vector<128x128xf32>
    %220 = vector.broadcast %137 : vector<1x128xf32> to vector<128x128xf32>
    %221 = vector.broadcast %138 : vector<128x1xf32> to vector<128x128xf32>
    %222 = arith.addf %220, %221 : vector<128x128xf32>
    %223 = arith.addf %222, %219 : vector<128x128xf32>
    %c1_63 = arith.constant 1 : index
    %c0_64 = arith.constant 0 : index
    %c0_65 = arith.constant 0 : index
    %224 = vector.load %arg16[%c1_63, %c0_64, %c0_65] : memref<2x1x128xf32, #tpu.memory_space<vmem>>, vector<1x1x128xf32>
    %225 = vector.shape_cast %224 : vector<1x1x128xf32> to vector<1x128xf32>
    %cst_66 = arith.constant dense<0xFF800000> : vector<128xf32>
    %226 = vector.multi_reduction <maximumf>, %223, %cst_66 [0] : vector<128x128xf32> to vector<128xf32>
    %227 = vector.shape_cast %226 : vector<128xf32> to vector<1x128xf32>
    %228 = arith.maximumf %225, %227 : vector<1x128xf32>
    %229 = arith.subf %225, %228 : vector<1x128xf32>
    %230 = math.exp %229 : vector<1x128xf32>
    %231 = vector.broadcast %228 : vector<1x128xf32> to vector<128x128xf32>
    %232 = arith.subf %223, %231 : vector<128x128xf32>
    %233 = math.exp %232 : vector<128x128xf32>
    %234 = arith.mulf %15, %233 : vector<128x128xf32>
    %c1_67 = arith.constant 1 : index
    %c0_68 = arith.constant 0 : index
    %c0_69 = arith.constant 0 : index
    %235 = vector.load %arg17[%c1_67, %c0_68, %c0_69] : memref<2x1x128xf32, #tpu.memory_space<vmem>>, vector<1x1x128xf32>
    %236 = vector.shape_cast %235 : vector<1x1x128xf32> to vector<1x128xf32>
    %237 = arith.mulf %236, %230 : vector<1x128xf32>
    %cst_70 = arith.constant dense<0.000000e+00> : vector<128xf32>
    %238 = vector.multi_reduction <add>, %234, %cst_70 [0] : vector<128x128xf32> to vector<128xf32>
    %239 = vector.shape_cast %238 : vector<128xf32> to vector<1x128xf32>
    %240 = arith.addf %237, %239 : vector<1x128xf32>
    %c1_71 = arith.constant 1 : index
    %c0_72 = arith.constant 0 : index
    %c0_73 = arith.constant 0 : index
    %241 = vector.load %arg17[%c1_71, %c0_72, %c0_73] : memref<2x1x128xf32, #tpu.memory_space<vmem>>, vector<1x1x128xf32>
    %242 = vector.shape_cast %241 : vector<1x1x128xf32> to vector<1x128xf32>
    %243 = vector.shape_cast %240 : vector<1x128xf32> to vector<1x1x128xf32>
    tpu.vector_store %arg17[%c1_71, %c0_72, %c0_73], %243 {strides = array<i32>} : memref<2x1x128xf32, #tpu.memory_space<vmem>>, vector<1x1x128xf32>,
    %c1_74 = arith.constant 1 : index
    %c0_75 = arith.constant 0 : index
    %c0_76 = arith.constant 0 : index
    %244 = vector.load %arg18[%c1_74, %c0_75, %c0_76] : memref<2x8x128xf32, #tpu.memory_space<vmem>>, vector<1x8x128xf32>
    %245 = vector.shape_cast %244 : vector<1x8x128xf32> to vector<8x128xf32>
    %246 = vector.broadcast %230 : vector<1x128xf32> to vector<8x128xf32>
    %247 = arith.mulf %245, %246 : vector<8x128xf32>
    %248 = vector.extract_strided_slice %14 {offsets = [8, 0], sizes = [8, 128], strides = [1, 1]} : vector<16x128xf32> to vector<8x128xf32>
    %cst_77 = arith.constant dense<0.000000e+00> : vector<8x128xf32>
    %249 = tpu.matmul %248, %234, %cst_77 {dimension_numbers = #tpu.dot_dimension_numbers<[1], [0], [0], [1], [0, 0, 1, 1], [], []>} : vector<8x128xf32>, vector<128x128xf32>, vector<8x128xf32> -> vector<8x128xf32>
    %250 = arith.addf %247, %249 : vector<8x128xf32>
    %c1_78 = arith.constant 1 : index
    %c0_79 = arith.constant 0 : index
    %c0_80 = arith.constant 0 : index
    %251 = vector.load %arg18[%c1_78, %c0_79, %c0_80] : memref<2x8x128xf32, #tpu.memory_space<vmem>>, vector<1x8x128xf32>
    %252 = vector.shape_cast %251 : vector<1x8x128xf32> to vector<8x128xf32>
    %253 = vector.shape_cast %250 : vector<8x128xf32> to vector<1x8x128xf32>
    tpu.vector_store %arg18[%c1_78, %c0_79, %c0_80], %253 {strides = array<i32>} : memref<2x8x128xf32, #tpu.memory_space<vmem>>, vector<1x8x128xf32>,
    %c1_81 = arith.constant 1 : index
    %c0_82 = arith.constant 0 : index
    %c0_83 = arith.constant 0 : index
    %254 = vector.load %arg16[%c1_81, %c0_82, %c0_83] : memref<2x1x128xf32, #tpu.memory_space<vmem>>, vector<1x1x128xf32>
    %255 = vector.shape_cast %254 : vector<1x1x128xf32> to vector<1x128xf32>
    %256 = vector.shape_cast %228 : vector<1x128xf32> to vector<1x1x128xf32>
    tpu.vector_store %arg16[%c1_81, %c0_82, %c0_83], %256 {strides = array<i32>} : memref<2x1x128xf32, #tpu.memory_space<vmem>>, vector<1x1x128xf32>,
    %c1_i32 = arith.constant 1 : i32
    %257 = arith.cmpi eq, %arg1, %c1_i32 : i32
    %258 = arith.extui %257 : i1 to i32
    %c0_i32_84 = arith.constant 0 : i32
    %259 = arith.cmpi ne, %258, %c0_i32_84 : i32
    scf.if %259 {
      %c0_85 = arith.constant 0 : index
      %c0_86 = arith.constant 0 : index
      %c0_87 = arith.constant 0 : index
      %260 = vector.load %arg18[%c0_85, %c0_86, %c0_87] : memref<2x8x128xf32, #tpu.memory_space<vmem>>, vector<1x8x128xf32>
      %261 = vector.shape_cast %260 : vector<1x8x128xf32> to vector<8x128xf32>
      %c0_88 = arith.constant 0 : index
      %c0_89 = arith.constant 0 : index
      %c0_90 = arith.constant 0 : index
      %262 = vector.load %arg17[%c0_88, %c0_89, %c0_90] : memref<2x1x128xf32, #tpu.memory_space<vmem>>, vector<1x1x128xf32>
      %263 = vector.shape_cast %262 : vector<1x1x128xf32> to vector<1x128xf32>
      %264 = tpu.reciprocal %263 {approx = true} : vector<1x128xf32> -> vector<1x128xf32>
      %265 = vector.broadcast %264 : vector<1x128xf32> to vector<8x128xf32>
      %266 = arith.mulf %261, %265 : vector<8x128xf32>
      %c1_91 = arith.constant 1 : index
      %c0_92 = arith.constant 0 : index
      %c0_93 = arith.constant 0 : index
      %267 = vector.load %arg18[%c1_91, %c0_92, %c0_93] : memref<2x8x128xf32, #tpu.memory_space<vmem>>, vector<1x8x128xf32>
      %268 = vector.shape_cast %267 : vector<1x8x128xf32> to vector<8x128xf32>
      %c1_94 = arith.constant 1 : index
      %c0_95 = arith.constant 0 : index
      %c0_96 = arith.constant 0 : index
      %269 = vector.load %arg17[%c1_94, %c0_95, %c0_96] : memref<2x1x128xf32, #tpu.memory_space<vmem>>, vector<1x1x128xf32>
      %270 = vector.shape_cast %269 : vector<1x1x128xf32> to vector<1x128xf32>
      %271 = tpu.reciprocal %270 {approx = true} : vector<1x128xf32> -> vector<1x128xf32>
      %272 = vector.broadcast %271 : vector<1x128xf32> to vector<8x128xf32>
      %273 = arith.mulf %268, %272 : vector<8x128xf32>
      %274 = arith.addf %266, %273 : vector<8x128xf32>
      %cst_97 = arith.constant 5.000000e-01 : f32
      %275 = vector.broadcast %cst_97 : f32 to vector<8x128xf32>
      %276 = arith.mulf %274, %275 : vector<8x128xf32>
      %c0_98 = arith.constant 0 : index
      %c0_99 = arith.constant 0 : index
      %277 = vector.load %arg13[%c0_98, %c0_99] : memref<8x1xf32, #tpu.memory_space<vmem>>, vector<8x1xf32>
      %278 = vector.broadcast %277 : vector<8x1xf32> to vector<8x128xf32>
      %279 = arith.addf %276, %278 : vector<8x128xf32>
      %c0_100 = arith.constant 0 : index
      %c0_101 = arith.constant 0 : index
      %280 = vector.load %arg14[%c0_100, %c0_101] : memref<8x128xf32, #tpu.memory_space<vmem>>, vector<8x128xf32>
      tpu.vector_store %arg14[%c0_100, %c0_101], %279 {strides = array<i32>} : memref<8x128xf32, #tpu.memory_space<vmem>>, vector<8x128xf32>,
    } else {
    }
    return
  }
  func.func @transform_0(%arg0: i32, %arg1: i32) -> (i32, i32) {
    %c0_i32 = arith.constant 0 : i32
    %c0_i32_0 = arith.constant 0 : i32
    return %c0_i32, %arg0 : i32, i32
  }
  func.func @transform_1(%arg0: i32, %arg1: i32) -> (i32, i32) {
    %c0_i32 = arith.constant 0 : i32
    %c0_i32_0 = arith.constant 0 : i32
    return %arg1, %c0_i32 : i32, i32
  }
  func.func @transform_2(%arg0: i32, %arg1: i32) -> (i32, i32) {
    %c0_i32 = arith.constant 0 : i32
    %c0_i32_0 = arith.constant 0 : i32
    return %c0_i32, %arg1 : i32, i32
  }
  func.func @transform_3(%arg0: i32, %arg1: i32) -> (i32, i32) {
    %c0_i32 = arith.constant 0 : i32
    return %arg1, %arg0 : i32, i32
  }
  func.func @transform_4(%arg0: i32, %arg1: i32) -> (i32, i32) {
    %c0_i32 = arith.constant 0 : i32
    %c0_i32_0 = arith.constant 0 : i32
    %c0_i32_1 = arith.constant 0 : i32
    return %c0_i32, %c0_i32_0 : i32, i32
  }
  func.func @transform_5(%arg0: i32, %arg1: i32) -> (i32, i32) {
    %c0_i32 = arith.constant 0 : i32
    %c0_i32_0 = arith.constant 0 : i32
    %c0_i32_1 = arith.constant 0 : i32
    return %c0_i32, %c0_i32_0 : i32, i32
  }
  func.func @transform_6(%arg0: i32, %arg1: i32) -> (i32, i32) {
    %c0_i32 = arith.constant 0 : i32
    %c0_i32_0 = arith.constant 0 : i32
    %c0_i32_1 = arith.constant 0 : i32
    return %c0_i32, %c0_i32_0 : i32, i32
  }
  func.func @transform_7(%arg0: i32, %arg1: i32) -> (i32, i32) {
    %c0_i32 = arith.constant 0 : i32
    %c0_i32_0 = arith.constant 0 : i32
    %c0_i32_1 = arith.constant 0 : i32
    return %c0_i32, %c0_i32_0 : i32, i32
  }
  func.func @transform_8(%arg0: i32, %arg1: i32) -> (i32, i32) {
    %c0_i32 = arith.constant 0 : i32
    %c0_i32_0 = arith.constant 0 : i32
    %c0_i32_1 = arith.constant 0 : i32
    return %c0_i32, %c0_i32_0 : i32, i32
  }
  func.func @transform_9(%arg0: i32, %arg1: i32) -> (i32, i32) {
    %c0_i32 = arith.constant 0 : i32
    %c0_i32_0 = arith.constant 0 : i32
    %c0_i32_1 = arith.constant 0 : i32
    return %c0_i32, %c0_i32_0 : i32, i32
  }
  func.func @transform_10(%arg0: i32, %arg1: i32) -> (i32, i32) {
    %c0_i32 = arith.constant 0 : i32
    %c0_i32_0 = arith.constant 0 : i32
    %c0_i32_1 = arith.constant 0 : i32
    return %c0_i32, %c0_i32_0 : i32, i32
  }
  func.func @transform_11(%arg0: i32, %arg1: i32) -> (i32, i32) {
    %c0_i32 = arith.constant 0 : i32
    %c0_i32_0 = arith.constant 0 : i32
    %c0_i32_1 = arith.constant 0 : i32
    return %c0_i32, %c0_i32_0 : i32, i32
  }
  func.func @transform_12(%arg0: i32, %arg1: i32) -> (i32, i32) {
    %c0_i32 = arith.constant 0 : i32
    %c0_i32_0 = arith.constant 0 : i32
    return %c0_i32, %arg0 : i32, i32
  }
}

</mosaic_0001>

<llo_original>
// kernel: tpu_custom_call.1
$region0: #{tpu_custom_call.1}
  #allocation0 [shape = 'u32[]', space=smem, size = 0x4, offset = 0x4, fixed_abs, tag = 'smem constant byte address 0x4 - core index']
  #allocation1 [shape = 'u32[144,128]{1,0:T(1,128)}', space=vmem, size = 0x12000, scoped, tag = 'internal scratch']
  #allocation2 [shape = 'f32[24,128]{1,0:T(8,128)}', space=vmem, size = 0x3000, scoped, tag = 'scratch operand']
  #allocation3 [shape = 'f32[2,1,128]{2,1,0:T(1,128)}', space=vmem, size = 0x400, scoped, tag = 'scratch operand']
  #allocation4 [shape = 'f32[2,1,128]{2,1,0:T(1,128)}', space=vmem, size = 0x400, scoped, tag = 'scratch operand']
  #allocation5 [shape = 'f32[2,8,128]{2,1,0:T(8,128)}', space=vmem, size = 0x2000, scoped, tag = 'scratch operand']
  %s0 = inlined_call_operand.vmem [shape: f32[8,256], index: 0, kind: input, shape index: {}]
  %s1 = inlined_call_operand.vmem [shape: f32[256,8], index: 1, kind: input, shape index: {}]
  %s2 = inlined_call_operand.vmem [shape: f32[8,256], index: 2, kind: input, shape index: {}]
  %s3 = inlined_call_operand.hbm [shape: f32[256,256], index: 3, kind: input, shape index: {}]
  %s4 = inlined_call_operand.vmem [shape: f32[24,8], index: 4, kind: input, shape index: {}]
  %s5 = inlined_call_operand.vmem [shape: f32[24,1], index: 5, kind: input, shape index: {}]
  %s6 = inlined_call_operand.vmem [shape: f32[8,24], index: 6, kind: input, shape index: {}]
  %s7 = inlined_call_operand.vmem [shape: f32[1,24], index: 7, kind: input, shape index: {}]
  %s8 = inlined_call_operand.vmem [shape: f32[16,8], index: 8, kind: input, shape index: {}]
  %s9 = inlined_call_operand.vmem [shape: f32[16,1], index: 9, kind: input, shape index: {}]
  %s10 = inlined_call_operand.vmem [shape: f32[2,8], index: 10, kind: input, shape index: {}]
  %s11 = inlined_call_operand.vmem [shape: f32[8,1], index: 11, kind: input, shape index: {}]
  %s12 = inlined_call_operand.hbm [shape: f32[8,256], index: 12, kind: output, shape index: {}]
  %s13 = sld [smem:[#allocation0]]
  $region97: #{tpu_custom_call.1} parent=0
    _
  %s15 = ssub.s32 1, %s13
  %s16 = scalar_select 0, %s15, %s13
  $region1: #{tpu_custom_call.1} parent=0
    #allocation6 [shape = 'u8[131072]{0}', space=vmem, size = 0x20000, scoped, tag = 'input window, operand 3']
    #allocation7 [shape = 's32[2]{0}', space=sflag, size = 0x8, scoped, tag = 'scoped memory for tpu_custom_call.1']
    #allocation8 [shape = 's32[2]{0}', space=sflag, size = 0x8, scoped, tag = 'scoped memory for tpu_custom_call.1']
    #allocation9 [shape = 's32[2]{0}', space=sflag, size = 0x8, scoped, tag = 'scoped memory for tpu_custom_call.1']
    #allocation10 [shape = 'u8[1024]{0}', space=smem, size = 0x400, scoped, tag = 'input window, operand 10, single buffered']
    #allocation11 [shape = 'u8[8192]{0}', space=vmem, size = 0x2000, scoped, tag = 'output window, operand 0']
    %17 = vsyncpa [#allocation7], 0
    %s18 = scalar_lea.sflag [#allocation7], 1
    %19 = vsyncpa %s18, 0
    %20 = vsyncpa [#allocation9], 0
    %21 = vsyncpa [#allocation8], 0
    %s22 = scalar_lea.sflag [#allocation8], 1
    %23 = vsyncpa %s22, 0
    loop: start=0, step=1, limit=6
    $region2: #{tpu_custom_call.1} parent=1 // loop_pre_header
      _
    $region3: #{tpu_custom_call.1} parent=1 // loop_header
      %s25 = sphi 0, %s29
      %p26 = scmp.ge.s32.totalorder %s25, 6
      %s32 = sphi 0, %s44
      %s33 = sphi 0, %s40
      %s34 = sphi 0, %s32
      %s35 = sphi 0, %s33
      %s36 = sphi 0, %s34
      %s37 = sphi 0, %s35
      %s47 = sphi 0, %s49
      %s50 = sphi 0, %s47
      %s51 = sphi 0, %s50
      %s67 = sphi 0, %s51
      %s73 = sphi 0, %s75
      %s76 = sphi 0, %s73
      %s77 = sphi 0, %s76
      %s93 = sphi 0, %s77
      %s99 = sphi 0, %s101
      %s102 = sphi 0, %s99
      %s103 = sphi 0, %s102
      %s119 = sphi 0, %s103
      %s127 = sphi 0, %s129
      %s130 = sphi 0, %s127
      %s131 = sphi 0, %s130
      %s147 = sphi 0, %s131
      %s151 = sphi 0, %s151
      %s153 = sphi 0, %s151
      %s154 = sphi 0, %s153
      %s168 = sphi 0, %s154
      %s172 = sphi 0, %s172
      %s174 = sphi 0, %s172
      %s175 = sphi 0, %s174
      %s189 = sphi 0, %s175
      %s193 = sphi 0, %s193
      %s195 = sphi 0, %s193
      %s196 = sphi 0, %s195
      %s210 = sphi 0, %s196
      %s214 = sphi 0, %s214
      %s216 = sphi 0, %s214
      %s217 = sphi 0, %s216
      %s231 = sphi 0, %s217
      %s235 = sphi 0, %s235
      %s237 = sphi 0, %s235
      %s238 = sphi 0, %s237
      %s252 = sphi 0, %s238
      %s256 = sphi 0, %s256
      %s258 = sphi 0, %s256
      %s259 = sphi 0, %s258
      %s273 = sphi 0, %s259
      %s277 = sphi 0, %s277
      %s279 = sphi 0, %s277
      %s280 = sphi 0, %s279
      %s294 = sphi 0, %s280
      %s298 = sphi 0, %s298
      %s300 = sphi 0, %s298
      %s301 = sphi 0, %s300
      %s315 = sphi 0, %s301
      %s321 = sphi 0, %s323
      %s324 = sphi 0, %s321
      %s325 = sphi 0, %s324
      %s341 = sphi 0, %s325
    $region4: #{tpu_custom_call.1} parent=1 // loop_header_branch
      %28 = sbr.rel (%p26) target = $region8
    $region5: #{tpu_custom_call.1} parent=1 // loop_body
      %s30 = ssub.s32 %s25, 1
      %s31 = ssub.s32 %s25, 2
      %s38 = sadd.s32 1, %s33
      %p39 = scmp.ge.s32.totalorder %s38, 2
      %s40 = scalar_select %p39, 0, %s38
      %s41 = sadd.s32 1, %s32
      %s42 = scalar_select %p39, %s41, %s32
      %p43 = scmp.ge.s32.totalorder %s42, 2
      %s44 = scalar_select %p43, 0, %s42
      %s45 = ssub.s32 %s32, %s44
      %p46 = scmp.eq.s32.totalorder %s45, 0
      %s48 = sadd.s32 %s47, 1
      %s49 = scalar_select %p46, %s47, %s48
      %p52 = pneg %p46
      %p53 = scmp.eq.s32.totalorder %s25, 3
      %p54 = por %p52, %p53
      %p55 = scmp.ne.s32.totalorder %s47, %s50
      %p56 = scmp.eq.s32.totalorder %s25, 0
      %p57 = por %p55, %p56
      %p58 = scmp.ne.s32.totalorder %s47, %s50
      %p59 = scmp.eq.s32.totalorder %s30, 3
      %p60 = por %p58, %p59
      %p61 = scmp.ne.s32.totalorder %s50, %s51
      %p62 = scmp.eq.s32.totalorder %s30, 0
      %p63 = por %p61, %p62
      %p64 = scmp.ne.s32.totalorder %s50, %s51
      %p65 = scmp.eq.s32.totalorder %s31, 3
      %p66 = por %p64, %p65
      %p68 = scmp.ne.s32.totalorder %s51, %s67
      %p69 = scmp.eq.s32.totalorder %s31, 0
      %p70 = por %p68, %p69
      %s71 = ssub.s32 %s33, %s40
      %p72 = scmp.eq.s32.totalorder %s71, 0
      %s74 = sadd.s32 %s73, 1
      %s75 = scalar_select %p72, %s73, %s74
      %p78 = pneg %p72
      %p79 = scmp.eq.s32.totalorder %s25, 3
      %p80 = por %p78, %p79
      %p81 = scmp.ne.s32.totalorder %s73, %s76
      %p82 = scmp.eq.s32.totalorder %s25, 0
      %p83 = por %p81, %p82
      %p84 = scmp.ne.s32.totalorder %s73, %s76
      %p85 = scmp.eq.s32.totalorder %s30, 3
      %p86 = por %p84, %p85
      %p87 = scmp.ne.s32.totalorder %s76, %s77
      %p88 = scmp.eq.s32.totalorder %s30, 0
      %p89 = por %p87, %p88
      %p90 = scmp.ne.s32.totalorder %s76, %s77
      %p91 = scmp.eq.s32.totalorder %s31, 3
      %p92 = por %p90, %p91
      %p94 = scmp.ne.s32.totalorder %s77, %s93
      %p95 = scmp.eq.s32.totalorder %s31, 0
      %p96 = por %p94, %p95
      %s97 = ssub.s32 %s33, %s40
      %p98 = scmp.eq.s32.totalorder %s97, 0
      %s100 = sadd.s32 %s99, 1
      %s101 = scalar_select %p98, %s99, %s100
      %p104 = pneg %p98
      %p105 = scmp.eq.s32.totalorder %s25, 3
      %p106 = por %p104, %p105
      %p107 = scmp.ne.s32.totalorder %s99, %s102
      %p108 = scmp.eq.s32.totalorder %s25, 0
      %p109 = por %p107, %p108
      %p110 = scmp.ne.s32.totalorder %s99, %s102
      %p111 = scmp.eq.s32.totalorder %s30, 3
      %p112 = por %p110, %p111
      %p113 = scmp.ne.s32.totalorder %s102, %s103
      %p114 = scmp.eq.s32.totalorder %s30, 0
      %p115 = por %p113, %p114
      %p116 = scmp.ne.s32.totalorder %s102, %s103
      %p117 = scmp.eq.s32.totalorder %s31, 3
      %p118 = por %p116, %p117
      %p120 = scmp.ne.s32.totalorder %s103, %s119
      %p121 = scmp.eq.s32.totalorder %s31, 0
      %p122 = por %p120, %p121
      %s123 = ssub.s32 %s33, %s40
      %s124 = ssub.s32 %s32, %s44
      %s125 = sor.u32 %s123, %s124
      %p126 = scmp.eq.s32.totalorder %s125, 0
      %s128 = sadd.s32 %s127, 1
      %s129 = scalar_select %p126, %s127, %s128
      %p132 = pneg %p126
      %p133 = scmp.eq.s32.totalorder %s25, 3
      %p134 = por %p132, %p133
      %p135 = scmp.ne.s32.totalorder %s127, %s130
      %p136 = scmp.eq.s32.totalorder %s25, 0
      %p137 = por %p135, %p136
      %p138 = scmp.ne.s32.totalorder %s127, %s130
      %p139 = scmp.eq.s32.totalorder %s30, 3
      %p140 = por %p138, %p139
      %p141 = scmp.ne.s32.totalorder %s130, %s131
      %p142 = scmp.eq.s32.totalorder %s30, 0
      %p143 = por %p141, %p142
      %p144 = scmp.ne.s32.totalorder %s130, %s131
      %p145 = scmp.eq.s32.totalorder %s31, 3
      %p146 = por %p144, %p145
      %p148 = scmp.ne.s32.totalorder %s131, %s147
      %p149 = scmp.eq.s32.totalorder %s31, 0
      %p150 = por %p148, %p149
      %s152 = sadd.s32 %s151, 1
      %p155 = scmp.eq.s32.totalorder %s25, 3
      %p156 = scmp.ne.s32.totalorder %s151, %s153
      %p157 = scmp.eq.s32.totalorder %s25, 0
      %p158 = por %p156, %p157
      %p159 = scmp.ne.s32.totalorder %s151, %s153
      %p160 = scmp.eq.s32.totalorder %s30, 3
      %p161 = por %p159, %p160
      %p162 = scmp.ne.s32.totalorder %s153, %s154
      %p163 = scmp.eq.s32.totalorder %s30, 0
      %p164 = por %p162, %p163
      %p165 = scmp.ne.s32.totalorder %s153, %s154
      %p166 = scmp.eq.s32.totalorder %s31, 3
      %p167 = por %p165, %p166
      %p169 = scmp.ne.s32.totalorder %s154, %s168
      %p170 = scmp.eq.s32.totalorder %s31, 0
      %p171 = por %p169, %p170
      %s173 = sadd.s32 %s172, 1
      %p176 = scmp.eq.s32.totalorder %s25, 3
      %p177 = scmp.ne.s32.totalorder %s172, %s174
      %p178 = scmp.eq.s32.totalorder %s25, 0
      %p179 = por %p177, %p178
      %p180 = scmp.ne.s32.totalorder %s172, %s174
      %p181 = scmp.eq.s32.totalorder %s30, 3
      %p182 = por %p180, %p181
      %p183 = scmp.ne.s32.totalorder %s174, %s175
      %p184 = scmp.eq.s32.totalorder %s30, 0
      %p185 = por %p183, %p184
      %p186 = scmp.ne.s32.totalorder %s174, %s175
      %p187 = scmp.eq.s32.totalorder %s31, 3
      %p188 = por %p186, %p187
      %p190 = scmp.ne.s32.totalorder %s175, %s189
      %p191 = scmp.eq.s32.totalorder %s31, 0
      %p192 = por %p190, %p191
      %s194 = sadd.s32 %s193, 1
      %p197 = scmp.eq.s32.totalorder %s25, 3
      %p198 = scmp.ne.s32.totalorder %s193, %s195
      %p199 = scmp.eq.s32.totalorder %s25, 0
      %p200 = por %p198, %p199
      %p201 = scmp.ne.s32.totalorder %s193, %s195
      %p202 = scmp.eq.s32.totalorder %s30, 3
      %p203 = por %p201, %p202
      %p204 = scmp.ne.s32.totalorder %s195, %s196
      %p205 = scmp.eq.s32.totalorder %s30, 0
      %p206 = por %p204, %p205
      %p207 = scmp.ne.s32.totalorder %s195, %s196
      %p208 = scmp.eq.s32.totalorder %s31, 3
      %p209 = por %p207, %p208
      %p211 = scmp.ne.s32.totalorder %s196, %s210
      %p212 = scmp.eq.s32.totalorder %s31, 0
      %p213 = por %p211, %p212
      %s215 = sadd.s32 %s214, 1
      %p218 = scmp.eq.s32.totalorder %s25, 3
      %p219 = scmp.ne.s32.totalorder %s214, %s216
      %p220 = scmp.eq.s32.totalorder %s25, 0
      %p221 = por %p219, %p220
      %p222 = scmp.ne.s32.totalorder %s214, %s216
      %p223 = scmp.eq.s32.totalorder %s30, 3
      %p224 = por %p222, %p223
      %p225 = scmp.ne.s32.totalorder %s216, %s217
      %p226 = scmp.eq.s32.totalorder %s30, 0
      %p227 = por %p225, %p226
      %p228 = scmp.ne.s32.totalorder %s216, %s217
      %p229 = scmp.eq.s32.totalorder %s31, 3
      %p230 = por %p228, %p229
      %p232 = scmp.ne.s32.totalorder %s217, %s231
      %p233 = scmp.eq.s32.totalorder %s31, 0
      %p234 = por %p232, %p233
      %s236 = sadd.s32 %s235, 1
      %p239 = scmp.eq.s32.totalorder %s25, 3
      %p240 = scmp.ne.s32.totalorder %s235, %s237
      %p241 = scmp.eq.s32.totalorder %s25, 0
      %p242 = por %p240, %p241
      %p243 = scmp.ne.s32.totalorder %s235, %s237
      %p244 = scmp.eq.s32.totalorder %s30, 3
      %p245 = por %p243, %p244
      %p246 = scmp.ne.s32.totalorder %s237, %s238
      %p247 = scmp.eq.s32.totalorder %s30, 0
      %p248 = por %p246, %p247
      %p249 = scmp.ne.s32.totalorder %s237, %s238
      %p250 = scmp.eq.s32.totalorder %s31, 3
      %p251 = por %p249, %p250
      %p253 = scmp.ne.s32.totalorder %s238, %s252
      %p254 = scmp.eq.s32.totalorder %s31, 0
      %p255 = por %p253, %p254
      %s257 = sadd.s32 %s256, 1
      %p260 = scmp.eq.s32.totalorder %s25, 3
      %p261 = scmp.ne.s32.totalorder %s256, %s258
      %p262 = scmp.eq.s32.totalorder %s25, 0
      %p263 = por %p261, %p262
      %p264 = scmp.ne.s32.totalorder %s256, %s258
      %p265 = scmp.eq.s32.totalorder %s30, 3
      %p266 = por %p264, %p265
      %p267 = scmp.ne.s32.totalorder %s258, %s259
      %p268 = scmp.eq.s32.totalorder %s30, 0
      %p269 = por %p267, %p268
      %p270 = scmp.ne.s32.totalorder %s258, %s259
      %p271 = scmp.eq.s32.totalorder %s31, 3
      %p272 = por %p270, %p271
      %p274 = scmp.ne.s32.totalorder %s259, %s273
      %p275 = scmp.eq.s32.totalorder %s31, 0
      %p276 = por %p274, %p275
      %s278 = sadd.s32 %s277, 1
      %p281 = scmp.eq.s32.totalorder %s25, 3
      %p282 = scmp.ne.s32.totalorder %s277, %s279
      %p283 = scmp.eq.s32.totalorder %s25, 0
      %p284 = por %p282, %p283
      %p285 = scmp.ne.s32.totalorder %s277, %s279
      %p286 = scmp.eq.s32.totalorder %s30, 3
      %p287 = por %p285, %p286
      %p288 = scmp.ne.s32.totalorder %s279, %s280
      %p289 = scmp.eq.s32.totalorder %s30, 0
      %p290 = por %p288, %p289
      %p291 = scmp.ne.s32.totalorder %s279, %s280
      %p292 = scmp.eq.s32.totalorder %s31, 3
      %p293 = por %p291, %p292
      %p295 = scmp.ne.s32.totalorder %s280, %s294
      %p296 = scmp.eq.s32.totalorder %s31, 0
      %p297 = por %p295, %p296
      %s299 = sadd.s32 %s298, 1
      %p302 = scmp.eq.s32.totalorder %s25, 3
      %p303 = scmp.ne.s32.totalorder %s298, %s300
      %p304 = scmp.eq.s32.totalorder %s25, 0
      %p305 = por %p303, %p304
      %p306 = scmp.ne.s32.totalorder %s298, %s300
      %p307 = scmp.eq.s32.totalorder %s30, 3
      %p308 = por %p306, %p307
      %p309 = scmp.ne.s32.totalorder %s300, %s301
      %p310 = scmp.eq.s32.totalorder %s30, 0
      %p311 = por %p309, %p310
      %p312 = scmp.ne.s32.totalorder %s300, %s301
      %p313 = scmp.eq.s32.totalorder %s31, 3
      %p314 = por %p312, %p313
      %p316 = scmp.ne.s32.totalorder %s301, %s315
      %p317 = scmp.eq.s32.totalorder %s31, 0
      %p318 = por %p316, %p317
      %s319 = ssub.s32 %s32, %s44
      %p320 = scmp.eq.s32.totalorder %s319, 0
      %s322 = sadd.s32 %s321, 1
      %s323 = scalar_select %p320, %s321, %s322
      %p326 = pneg %p320
      %p327 = scmp.eq.s32.totalorder %s25, 3
      %p328 = por %p326, %p327
      %p329 = scmp.ne.s32.totalorder %s321, %s324
      %p330 = scmp.eq.s32.totalorder %s25, 0
      %p331 = por %p329, %p330
      %p332 = scmp.ne.s32.totalorder %s321, %s324
      %p333 = scmp.eq.s32.totalorder %s30, 3
      %p334 = por %p332, %p333
      %p335 = scmp.ne.s32.totalorder %s324, %s325
      %p336 = scmp.eq.s32.totalorder %s30, 0
      %p337 = por %p335, %p336
      %p338 = scmp.ne.s32.totalorder %s324, %s325
      %p339 = scmp.eq.s32.totalorder %s31, 3
      %p340 = por %p338, %p339
      %p342 = scmp.ne.s32.totalorder %s325, %s341
      %p343 = scmp.eq.s32.totalorder %s31, 0
      %p344 = por %p342, %p343
      %p345 = scmp.le.s32.totalorder 1, %s25
      %p346 = scmp.lt.s32.totalorder %s25, 5
      %p347 = pnand %p345, %p346
      %p348 = pneg %p347
      // Predicated region
      $region9: #{tpu_custom_call.1} parent=5 // pred_check
        _
      $region10: #{tpu_custom_call.1} parent=5 // pred_check_branch
        %350 = sbr.rel (%p347) target = $region12
      $region11: #{tpu_custom_call.1} parent=5 // pred_region
        %s351 = ssub.s32 %s25, 1
        // Predicated region
        $region13: #{tpu_custom_call.1} parent=11 // pred_check
          %p352 = pneg %p164
        $region14: #{tpu_custom_call.1} parent=11 // pred_check_branch
          %354 = sbr.rel (%p352) target = $region16
        $region15: #{tpu_custom_call.1} parent=11 // pred_region
          _
        $region16: #{tpu_custom_call.1} parent=11 // pred_fallthru
          _
        // Predicated region
        $region17: #{tpu_custom_call.1} parent=11 // pred_check
          %p355 = pneg %p185
        $region18: #{tpu_custom_call.1} parent=11 // pred_check_branch
          %357 = sbr.rel (%p355) target = $region20
        $region19: #{tpu_custom_call.1} parent=11 // pred_region
          _
        $region20: #{tpu_custom_call.1} parent=11 // pred_fallthru
          _
        // Predicated region
        $region21: #{tpu_custom_call.1} parent=11 // pred_check
          %p358 = pneg %p206
        $region22: #{tpu_custom_call.1} parent=11 // pred_check_branch
          %360 = sbr.rel (%p358) target = $region24
        $region23: #{tpu_custom_call.1} parent=11 // pred_region
          _
        $region24: #{tpu_custom_call.1} parent=11 // pred_fallthru
          _
        // Predicated region
        $region25: #{tpu_custom_call.1} parent=11 // pred_check
          %p361 = pneg %p227
        $region26: #{tpu_custom_call.1} parent=11 // pred_check_branch
          %363 = sbr.rel (%p361) target = $region28
        $region27: #{tpu_custom_call.1} parent=11 // pred_region
          _
        $region28: #{tpu_custom_call.1} parent=11 // pred_fallthru
          _
        // Predicated region
        $region29: #{tpu_custom_call.1} parent=11 // pred_check
          %p364 = pneg %p248
        $region30: #{tpu_custom_call.1} parent=11 // pred_check_branch
          %366 = sbr.rel (%p364) target = $region32
        $region31: #{tpu_custom_call.1} parent=11 // pred_region
          _
        $region32: #{tpu_custom_call.1} parent=11 // pred_fallthru
          _
        // Predicated region
        $region33: #{tpu_custom_call.1} parent=11 // pred_check
          %p367 = pneg %p269
        $region34: #{tpu_custom_call.1} parent=11 // pred_check_branch
          %369 = sbr.rel (%p367) target = $region36
        $region35: #{tpu_custom_call.1} parent=11 // pred_region
          _
        $region36: #{tpu_custom_call.1} parent=11 // pred_fallthru
          _
        // Predicated region
        $region37: #{tpu_custom_call.1} parent=11 // pred_check
          %p370 = pneg %p290
        $region38: #{tpu_custom_call.1} parent=11 // pred_check_branch
          %372 = sbr.rel (%p370) target = $region40
        $region39: #{tpu_custom_call.1} parent=11 // pred_region
          %s374 = ssub.s32 32, 32
          %375 = vsyncadd [#allocation9], %s374
          %s377 = sshll.u32 %s10, 4
          %s378 = int_to_ptr.vmem [resolvable:$true] %s377
          %380 = dma.vmem_to_smem %s378, 32, [#allocation10], [#allocation9]
        $region40: #{tpu_custom_call.1} parent=11 // pred_fallthru
          _
        // Predicated region
        $region41: #{tpu_custom_call.1} parent=11 // pred_check
          %p381 = pneg %p311
        $region42: #{tpu_custom_call.1} parent=11 // pred_check_branch
          %383 = sbr.rel (%p381) target = $region44
        $region43: #{tpu_custom_call.1} parent=11 // pred_region
          _
        $region44: #{tpu_custom_call.1} parent=11 // pred_fallthru
          _
      $region12: #{tpu_custom_call.1} parent=5 // pred_fallthru
        _
      %p384 = scmp.lt.s32.totalorder %s25, 4
      // Predicated region
      $region45: #{tpu_custom_call.1} parent=5 // pred_check
        %p385 = pneg %p384
      $region46: #{tpu_custom_call.1} parent=5 // pred_check_branch
        %387 = sbr.rel (%p385) target = $region48
      $region47: #{tpu_custom_call.1} parent=5 // pred_region
        // Predicated region
        $region49: #{tpu_custom_call.1} parent=47 // pred_check
          %p388 = pneg %p57
        $region50: #{tpu_custom_call.1} parent=47 // pred_check_branch
          %390 = sbr.rel (%p388) target = $region52
        $region51: #{tpu_custom_call.1} parent=47 // pred_region
          %p391 = scmp.lt.s32.totalorder %s32, 1
          %s392 = scalar_select %p391, %s32, 1
          %s393 = smul.addr %s392, 8
          %s394 = scalar_lea.vmem %s0, %s393
        $region52: #{tpu_custom_call.1} parent=47 // pred_fallthru
          _
        // Predicated region
        $region53: #{tpu_custom_call.1} parent=47 // pred_check
          %p395 = pneg %p83
        $region54: #{tpu_custom_call.1} parent=47 // pred_check_branch
          %397 = sbr.rel (%p395) target = $region56
        $region55: #{tpu_custom_call.1} parent=47 // pred_region
          %s398 = smul.u32 16, %s33
          %p399 = scmp.lt.s32.totalorder %s398, 31
          %s400 = scalar_select %p399, %s398, 31
          %s401 = smul.addr %s400, 8
          %s402 = scalar_lea.vmem %s1, %s401
          %s403 = smul.u32 16, %s33
        $region56: #{tpu_custom_call.1} parent=47 // pred_fallthru
          _
        // Predicated region
        $region57: #{tpu_custom_call.1} parent=47 // pred_check
          %p404 = pneg %p109
        $region58: #{tpu_custom_call.1} parent=47 // pred_check_branch
          %406 = sbr.rel (%p404) target = $region60
        $region59: #{tpu_custom_call.1} parent=47 // pred_region
          %p407 = scmp.lt.s32.totalorder %s33, 1
          %s408 = scalar_select %p407, %s33, 1
          %s409 = smul.addr %s408, 8
          %s410 = scalar_lea.vmem %s2, %s409
        $region60: #{tpu_custom_call.1} parent=47 // pred_fallthru
          _
        // Predicated region
        $region61: #{tpu_custom_call.1} parent=47 // pred_check
          %p411 = pneg %p137
        $region62: #{tpu_custom_call.1} parent=47 // pred_check_branch
          %413 = sbr.rel (%p411) target = $region64
        $region63: #{tpu_custom_call.1} parent=47 // pred_region
          %s414 = sand.u32 %s127, 1
          %s415 = scalar_lea.sflag [#allocation7], %s414
          %s416 = sand.u32 %s127, 1
          %s417 = smul.addr %s416, 128
          %s418 = scalar_lea.vmem [#allocation6], %s417
          %s419 = smul.u32 16, %s33
          %s421 = ssub.s32 2048, 2048
          %422 = vsyncadd %s415, %s421
          %s423 = smul.addr %s419, 2
          %s424 = sadd.s32 %s32, %s423
          %s425 = smul.addr %s424, 128
          %s426 = scalar_lea.hbm %s3, %s425
          %s427 = sshll.u32 %s418, 4
          %s428 = int_to_ptr.vmem [resolvable:$true] %s427
          %433 = dma.hbm_to_vmem [thread:$0]  %s426, 2048, %s428, %s415, 256, 128, 8
        $region64: #{tpu_custom_call.1} parent=47 // pred_fallthru
          _
      $region48: #{tpu_custom_call.1} parent=5 // pred_fallthru
        _
      %p434 = scmp.le.s32.totalorder 1, %s25
      %p435 = scmp.lt.s32.totalorder %s25, 5
      %p436 = pnand %p434, %p435
      %p437 = pneg %p436
      // Predicated region
      $region65: #{tpu_custom_call.1} parent=5 // pred_check
        _
      $region66: #{tpu_custom_call.1} parent=5 // pred_check_branch
        %439 = sbr.rel (%p436) target = $region68
      $region67: #{tpu_custom_call.1} parent=5 // pred_region
        %s440 = ssub.s32 %s25, 1
        %s441 = sand.u32 %s130, 1
        %s442 = scalar_lea.sflag [#allocation7], %s441
        %s443 = sand.u32 %s130, 1
        %s444 = smul.addr %s443, 128
        %s445 = scalar_lea.vmem [#allocation6], %s444
        // Predicated region
        $region69: #{tpu_custom_call.1} parent=67 // pred_check
          %p446 = pneg %p143
        $region70: #{tpu_custom_call.1} parent=67 // pred_check_branch
          %448 = sbr.rel (%p446) target = $region72
        $region71: #{tpu_custom_call.1} parent=67 // pred_region
          %449 = dma.done %s442, 2048
        $region72: #{tpu_custom_call.1} parent=67 // pred_fallthru
          _
        // Predicated region
        $region73: #{tpu_custom_call.1} parent=67 // pred_check
          %p450 = pneg %p290
        $region74: #{tpu_custom_call.1} parent=67 // pred_check_branch
          %452 = sbr.rel (%p450) target = $region76
        $region75: #{tpu_custom_call.1} parent=67 // pred_region
          %453 = dma.done [#allocation9], 32
        $region76: #{tpu_custom_call.1} parent=67 // pred_fallthru
          _
        %454 = sfence
        %p455 = scmp.lt.s32.totalorder %s34, 1
        %s456 = scalar_select %p455, %s34, 1
        %s457 = smul.addr %s456, 8
        %s458 = scalar_lea.vmem %s0, %s457
        %p459 = pneg %p63
        %p460 = pneg %p60
        %s461 = smul.u32 16, %s35
        %p462 = scmp.lt.s32.totalorder %s461, 31
        %s463 = scalar_select %p462, %s461, 31
        %s464 = smul.addr %s463, 8
        %s465 = scalar_lea.vmem %s1, %s464
        %p466 = pneg %p89
        %p467 = pneg %p86
        %p468 = scmp.lt.s32.totalorder %s35, 1
        %s469 = scalar_select %p468, %s35, 1
        %s470 = smul.addr %s469, 8
        %s471 = scalar_lea.vmem %s2, %s470
        %p472 = pneg %p115
        %p473 = pneg %p112
        %s474 = sand.u32 %s130, 1
        %s475 = scalar_lea.sflag [#allocation7], %s474
        %s476 = sand.u32 %s130, 1
        %s477 = smul.addr %s476, 128
        %s478 = scalar_lea.vmem [#allocation6], %s477
        %p479 = pneg %p143
        %p480 = pneg %p140
        %p481 = pneg %p164
        %p482 = pneg %p161
        %p483 = pneg %p185
        %p484 = pneg %p182
        %p485 = pneg %p206
        %p486 = pneg %p203
        %p487 = pneg %p227
        %p488 = pneg %p224
        %p489 = pneg %p248
        %p490 = pneg %p245
        %p491 = pneg %p269
        %p492 = pneg %p266
        %p493 = pneg %p290
        %p494 = pneg %p287
        %p495 = pneg %p311
        %p496 = pneg %p308
        %p497 = pneg %p337
        %p498 = pneg %p334
        %s499 = sand.u32 %s324, 1
        %s500 = scalar_lea.sflag [#allocation8], %s499
        %s501 = sand.u32 %s324, 1
        %s502 = smul.addr %s501, 8
        %s503 = scalar_lea.vmem [#allocation11], %s502
        %p504 = scmp.lt.s32.totalorder %s34, 1
        %s505 = scalar_select %p504, %s34, 1
        %s506 = smul.addr %s505, 8
        %s507 = scalar_lea.vmem %s0, %s506
        %s508 = smul.u32 16, %s35
        %p509 = scmp.lt.s32.totalorder %s508, 31
        %s510 = scalar_select %p509, %s508, 31
        %s511 = smul.addr %s510, 8
        %s512 = scalar_lea.vmem %s1, %s511
        %s513 = smul.u32 16, %s35
        %p514 = scmp.lt.s32.totalorder %s35, 1
        %s515 = scalar_select %p514, %s35, 1
        %s516 = smul.addr %s515, 8
        %s517 = scalar_lea.vmem %s2, %s516
        %s518 = smul.u32 16, %s35
        %p519 = scmp.eq.s32.totalorder %s35, 0
        // Predicated region
        $region77: #{tpu_custom_call.1} parent=67 // pred_check
          %p520 = pneg %p519
        $region78: #{tpu_custom_call.1} parent=67 // pred_check_branch
          %522 = sbr.rel (%p520) target = $region80
        $region79: #{tpu_custom_call.1} parent=67 // pred_region
          %v523 = vld [vmem:[%s4] sm:$0xff]
          %v524 = vld [vmem:[%s4 + $0x8] sm:$0xff]
          %v525 = vld [vmem:[%s4 + $0x10] sm:$0xff]
          %v526 = vld [vmem:[%s507] sm:$0xff]
          %v527 = vld [vmem:[%s5] sm:$0xff]
          %v528 = vld [vmem:[%s5 + $0x8] sm:$0xff]
          %v529 = vld [vmem:[%s5 + $0x10] sm:$0xff]
          %531 = vset.pattern.permute.xlu0 0
          %532 = vperm.xlu0 %531, %v527
          %v533 = vpop.permute.xlu0 %532
          %536 = vset.pattern.permute.xlu0 0
          %537 = vperm.xlu0 %536, %v528
          %v538 = vpop.permute.xlu0 %537
          %541 = vset.pattern.permute.xlu0 0
          %542 = vperm.xlu0 %541, %v529
          %v543 = vpop.permute.xlu0 %542
          %vm545 = vcmask 64512
          %v547 = vsel %vm545, %v523, 0
          %v550 = vsel %vm545, %v524, 0
          %v553 = vsel %vm545, %v525, 0
          %555 = vmatprep.subr.mxu0 0.0
          %556 = vmatpush1.msra.mxu0 0.0
          %557 = vmatprep.subr.mxu0 0.0
          %558 = vmatpush1.msra.mxu0 0.0
          %559 = vmatprep.subr.mxu0 0.0
          %560 = vmatpush1.msra.mxu0 0.0
          %561 = vmatprep.subr.mxu0 0.0
          %562 = vmatpush1.msra.mxu0 0.0
          %563 = vmatprep.subr.mxu0 0.0
          %564 = vmatpush1.msra.mxu0 0.0
          %565 = vmatprep.subr.mxu0 0.0
          %566 = vmatpush1.msra.mxu0 0.0
          %567 = vmatprep.subr.mxu0 0.0
          %568 = vmatpush1.msra.mxu0 0.0
          %569 = vmatprep.subr.mxu0 0.0
          %570 = vmatpush1.msra.mxu0 0.0
          %571 = vmatprep.subr.mxu0 0.0
          %572 = vmatpush1.msra.mxu0 0.0
          %573 = vmatprep.subr.mxu0 0.0
          %574 = vmatpush1.msra.mxu0 0.0
          %575 = vmatprep.subr.mxu0 0.0
          %576 = vmatpush1.msra.mxu0 0.0
          %577 = vmatprep.subr.mxu0 0.0
          %578 = vmatpush1.msra.mxu0 0.0
          %579 = vmatprep.subr.mxu0 0.0
          %580 = vmatpush1.msra.mxu0 0.0
          %581 = vmatprep.subr.mxu0 0.0
          %582 = vmatpush1.msra.mxu0 0.0
          %583 = vmatprep.subr.mxu0 0.0
          %584 = vmatpush1.msra.mxu0 0.0
          %585 = vmatprep.subr.mxu0 0.0
          %586 = vmatpush1.msra.mxu0 %v526
          %587 = vmatprep.subr.mxu0 0.0
          %588 = vmatpush2.msra.mxu0 0.0
          %589 = vmatprep.subr.mxu0 0.0
          %590 = vmatpush2.msra.mxu0 0.0
          %591 = vmatprep.subr.mxu0 0.0
          %592 = vmatpush2.msra.mxu0 0.0
          %593 = vmatprep.subr.mxu0 0.0
          %594 = vmatpush2.msra.mxu0 0.0
          %595 = vmatprep.subr.mxu0 0.0
          %596 = vmatpush2.msra.mxu0 0.0
          %597 = vmatprep.subr.mxu0 0.0
          %598 = vmatpush2.msra.mxu0 0.0
          %599 = vmatprep.subr.mxu0 0.0
          %600 = vmatpush2.msra.mxu0 0.0
          %601 = vmatprep.subr.mxu0 0.0
          %602 = vmatpush2.msra.mxu0 0.0
          %603 = vmatprep.subr.mxu0 0.0
          %604 = vmatpush2.msra.mxu0 0.0
          %605 = vmatprep.subr.mxu0 0.0
          %606 = vmatpush2.msra.mxu0 0.0
          %607 = vmatprep.subr.mxu0 0.0
          %608 = vmatpush2.msra.mxu0 0.0
          %609 = vmatprep.subr.mxu0 0.0
          %610 = vmatpush2.msra.mxu0 0.0
          %611 = vmatprep.subr.mxu0 0.0
          %612 = vmatpush2.msra.mxu0 0.0
          %613 = vmatprep.subr.mxu0 0.0
          %614 = vmatpush2.msra.mxu0 0.0
          %615 = vmatprep.subr.mxu0 0.0
          %616 = vmatpush2.msra.mxu0 0.0
          %617 = vmatprep.subr.mxu0 0.0
          %618 = vmatpush2.msra.mxu0 0.0
          %619 = vmatprep.mubr.f32.mxu0 0.0
          %620 = vmatmul.mubr.f32.gmra.mxu0 %v547
          %v621 = vpop.f32.mrf.mxu0
          %v622 = vadd.f32 %v533, %v621
          %v623 = vpop.f32.mrf.mxu0
          %624 = vmatprep.mubr.f32.mxu0 0.0
          %625 = vmatmul.mubr.f32.gmra.mxu0 %v550
          %v626 = vpop.f32.mrf.mxu0
          %v627 = vadd.f32 %v538, %v626
          %v628 = vpop.f32.mrf.mxu0
          %629 = vmatprep.mubr.f32.mxu0 0.0
          %630 = vmatmul.mubr.f32.gmra.mxu0 %v553
          %v631 = vpop.f32.mrf.mxu0
          %v632 = vadd.f32 %v543, %v631
          %v633 = vpop.f32.mrf.mxu0
          %634 = vdwg.mxu0
          %635 = vst [vmem:[#allocation2] sm:$0xff] %v622
          %636 = vst [vmem:[#allocation2 + $0x8] sm:$0xff] %v627
          %637 = vst [vmem:[#allocation2 + $0x10] sm:$0xff] %v632
          %638 = vst [vmem:[#allocation3] sm:$0x1] -1e+30
          %639 = vst [vmem:[#allocation3 + $0x1] sm:$0x1] -1e+30
          %640 = vst [vmem:[#allocation4] sm:$0x1] 0.0
          %641 = vst [vmem:[#allocation4 + $0x1] sm:$0x1] 0.0
          %642 = vst [vmem:[#allocation5] sm:$0xff] 0.0
          %643 = vst [vmem:[#allocation5 + $0x8] sm:$0xff] 0.0
        $region80: #{tpu_custom_call.1} parent=67 // pred_fallthru
          _
        %v644 = vld [vmem:[%s512] sm:$0xff]
        %v645 = vld [vmem:[%s512 + $0x8] sm:$0xff]
        %v646 = vld [vmem:[%s512 + $0x10] sm:$0xff]
        %v647 = vld [vmem:[%s512 + $0x18] sm:$0xff]
        %v648 = vld [vmem:[%s512 + $0x20] sm:$0xff]
        %v649 = vld [vmem:[%s512 + $0x28] sm:$0xff]
        %v650 = vld [vmem:[%s512 + $0x30] sm:$0xff]
        %v651 = vld [vmem:[%s512 + $0x38] sm:$0xff]
        %v652 = vld [vmem:[%s512 + $0x40] sm:$0xff]
        %v653 = vld [vmem:[%s512 + $0x48] sm:$0xff]
        %v654 = vld [vmem:[%s512 + $0x50] sm:$0xff]
        %v655 = vld [vmem:[%s512 + $0x58] sm:$0xff]
        %v656 = vld [vmem:[%s512 + $0x60] sm:$0xff]
        %v657 = vld [vmem:[%s512 + $0x68] sm:$0xff]
        %v658 = vld [vmem:[%s512 + $0x70] sm:$0xff]
        %v659 = vld [vmem:[%s512 + $0x78] sm:$0xff]
        %v660 = vld [vmem:[%s6] sm:$0xff]
        %v661 = vld [vmem:[%s7] sm:$0x1]
        %v663 = vlaneseq
        %v664 = vshrl.u32 %v663, 7
        %v665 = vsub.s32 0, %v664
        %v666 = vrot.slane %v661, %v665
        %vm668 = vcmask 64512
        %v670 = vsel %vm668, %v644, 0
        %v673 = vsel %vm668, %v645, 0
        %v676 = vsel %vm668, %v646, 0
        %v679 = vsel %vm668, %v647, 0
        %v682 = vsel %vm668, %v648, 0
        %v685 = vsel %vm668, %v649, 0
        %v688 = vsel %vm668, %v650, 0
        %v691 = vsel %vm668, %v651, 0
        %v694 = vsel %vm668, %v652, 0
        %v697 = vsel %vm668, %v653, 0
        %v700 = vsel %vm668, %v654, 0
        %v703 = vsel %vm668, %v655, 0
        %v706 = vsel %vm668, %v656, 0
        %v709 = vsel %vm668, %v657, 0
        %v712 = vsel %vm668, %v658, 0
        %v715 = vsel %vm668, %v659, 0
        %717 = vmatprep.subr.mxu0 0.0
        %718 = vmatpush1.msra.mxu0 0.0
        %719 = vmatprep.subr.mxu0 0.0
        %720 = vmatpush1.msra.mxu0 0.0
        %721 = vmatprep.subr.mxu0 0.0
        %722 = vmatpush1.msra.mxu0 0.0
        %723 = vmatprep.subr.mxu0 0.0
        %724 = vmatpush1.msra.mxu0 0.0
        %725 = vmatprep.subr.mxu0 0.0
        %726 = vmatpush1.msra.mxu0 0.0
        %727 = vmatprep.subr.mxu0 0.0
        %728 = vmatpush1.msra.mxu0 0.0
        %729 = vmatprep.subr.mxu0 0.0
        %730 = vmatpush1.msra.mxu0 0.0
        %731 = vmatprep.subr.mxu0 0.0
        %732 = vmatpush1.msra.mxu0 0.0
        %733 = vmatprep.subr.mxu0 0.0
        %734 = vmatpush1.msra.mxu0 0.0
        %735 = vmatprep.subr.mxu0 0.0
        %736 = vmatpush1.msra.mxu0 0.0
        %737 = vmatprep.subr.mxu0 0.0
        %738 = vmatpush1.msra.mxu0 0.0
        %739 = vmatprep.subr.mxu0 0.0
        %740 = vmatpush1.msra.mxu0 0.0
        %741 = vmatprep.subr.mxu0 0.0
        %742 = vmatpush1.msra.mxu0 0.0
        %743 = vmatprep.subr.mxu0 0.0
        %744 = vmatpush1.msra.mxu0 0.0
        %745 = vmatprep.subr.mxu0 0.0
        %746 = vmatpush1.msra.mxu0 0.0
        %747 = vmatprep.subr.mxu0 0.0
        %748 = vmatpush1.msra.mxu0 %v660
        %749 = vmatprep.subr.mxu0 0.0
        %750 = vmatpush2.msra.mxu0 0.0
        %751 = vmatprep.subr.mxu0 0.0
        %752 = vmatpush2.msra.mxu0 0.0
        %753 = vmatprep.subr.mxu0 0.0
        %754 = vmatpush2.msra.mxu0 0.0
        %755 = vmatprep.subr.mxu0 0.0
        %756 = vmatpush2.msra.mxu0 0.0
        %757 = vmatprep.subr.mxu0 0.0
        %758 = vmatpush2.msra.mxu0 0.0
        %759 = vmatprep.subr.mxu0 0.0
        %760 = vmatpush2.msra.mxu0 0.0
        %761 = vmatprep.subr.mxu0 0.0
        %762 = vmatpush2.msra.mxu0 0.0
        %763 = vmatprep.subr.mxu0 0.0
        %764 = vmatpush2.msra.mxu0 0.0
        %765 = vmatprep.subr.mxu0 0.0
        %766 = vmatpush2.msra.mxu0 0.0
        %767 = vmatprep.subr.mxu0 0.0
        %768 = vmatpush2.msra.mxu0 0.0
        %769 = vmatprep.subr.mxu0 0.0
        %770 = vmatpush2.msra.mxu0 0.0
        %771 = vmatprep.subr.mxu0 0.0
        %772 = vmatpush2.msra.mxu0 0.0
        %773 = vmatprep.subr.mxu0 0.0
        %774 = vmatpush2.msra.mxu0 0.0
        %775 = vmatprep.subr.mxu0 0.0
        %776 = vmatpush2.msra.mxu0 0.0
        %777 = vmatprep.subr.mxu0 0.0
        %778 = vmatpush2.msra.mxu0 0.0
        %779 = vmatprep.subr.mxu0 0.0
        %780 = vmatpush2.msra.mxu0 0.0
        %781 = vmatprep.mubr.f32.mxu0 0.0
        %782 = vmatmul.mubr.f32.gmra.mxu0 %v670
        %v783 = vpop.f32.mrf.mxu0
        %v784 = vadd.f32 %v666, %v783
        %v785 = vpop.f32.mrf.mxu0
        %786 = vmatprep.mubr.f32.mxu0 0.0
        %787 = vmatmul.mubr.f32.gmra.mxu0 %v673
        %v788 = vpop.f32.mrf.mxu0
        %v789 = vadd.f32 %v666, %v788
        %v790 = vpop.f32.mrf.mxu0
        %791 = vmatprep.mubr.f32.mxu0 0.0
        %792 = vmatmul.mubr.f32.gmra.mxu0 %v676
        %v793 = vpop.f32.mrf.mxu0
        %v794 = vadd.f32 %v666, %v793
        %v795 = vpop.f32.mrf.mxu0
        %796 = vmatprep.mubr.f32.mxu0 0.0
        %797 = vmatmul.mubr.f32.gmra.mxu0 %v679
        %v798 = vpop.f32.mrf.mxu0
        %v799 = vadd.f32 %v666, %v798
        %v800 = vpop.f32.mrf.mxu0
        %801 = vmatprep.mubr.f32.mxu0 0.0
        %802 = vmatmul.mubr.f32.gmra.mxu0 %v682
        %v803 = vpop.f32.mrf.mxu0
        %v804 = vadd.f32 %v666, %v803
        %v805 = vpop.f32.mrf.mxu0
        %806 = vmatprep.mubr.f32.mxu0 0.0
        %807 = vmatmul.mubr.f32.gmra.mxu0 %v685
        %v808 = vpop.f32.mrf.mxu0
        %v809 = vadd.f32 %v666, %v808
        %v810 = vpop.f32.mrf.mxu0
        %811 = vmatprep.mubr.f32.mxu0 0.0
        %812 = vmatmul.mubr.f32.gmra.mxu0 %v688
        %v813 = vpop.f32.mrf.mxu0
        %v814 = vadd.f32 %v666, %v813
        %v815 = vpop.f32.mrf.mxu0
        %816 = vmatprep.mubr.f32.mxu0 0.0
        %817 = vmatmul.mubr.f32.gmra.mxu0 %v691
        %v818 = vpop.f32.mrf.mxu0
        %v819 = vadd.f32 %v666, %v818
        %v820 = vpop.f32.mrf.mxu0
        %821 = vmatprep.mubr.f32.mxu0 0.0
        %822 = vmatmul.mubr.f32.gmra.mxu0 %v694
        %v823 = vpop.f32.mrf.mxu0
        %v824 = vadd.f32 %v666, %v823
        %v825 = vpop.f32.mrf.mxu0
        %826 = vmatprep.mubr.f32.mxu0 0.0
        %827 = vmatmul.mubr.f32.gmra.mxu0 %v697
        %v828 = vpop.f32.mrf.mxu0
        %v829 = vadd.f32 %v666, %v828
        %v830 = vpop.f32.mrf.mxu0
        %831 = vmatprep.mubr.f32.mxu0 0.0
        %832 = vmatmul.mubr.f32.gmra.mxu0 %v700
        %v833 = vpop.f32.mrf.mxu0
        %v834 = vadd.f32 %v666, %v833
        %v835 = vpop.f32.mrf.mxu0
        %836 = vmatprep.mubr.f32.mxu0 0.0
        %837 = vmatmul.mubr.f32.gmra.mxu0 %v703
        %v838 = vpop.f32.mrf.mxu0
        %v839 = vadd.f32 %v666, %v838
        %v840 = vpop.f32.mrf.mxu0
        %841 = vmatprep.mubr.f32.mxu0 0.0
        %842 = vmatmul.mubr.f32.gmra.mxu0 %v706
        %v843 = vpop.f32.mrf.mxu0
        %v844 = vadd.f32 %v666, %v843
        %v845 = vpop.f32.mrf.mxu0
        %846 = vmatprep.mubr.f32.mxu0 0.0
        %847 = vmatmul.mubr.f32.gmra.mxu0 %v709
        %v848 = vpop.f32.mrf.mxu0
        %v849 = vadd.f32 %v666, %v848
        %v850 = vpop.f32.mrf.mxu0
        %851 = vmatprep.mubr.f32.mxu0 0.0
        %852 = vmatmul.mubr.f32.gmra.mxu0 %v712
        %v853 = vpop.f32.mrf.mxu0
        %v854 = vadd.f32 %v666, %v853
        %v855 = vpop.f32.mrf.mxu0
        %856 = vmatprep.mubr.f32.mxu0 0.0
        %857 = vmatmul.mubr.f32.gmra.mxu0 %v715
        %v858 = vpop.f32.mrf.mxu0
        %v859 = vadd.f32 %v666, %v858
        %v860 = vpop.f32.mrf.mxu0
        %861 = vdwg.mxu0
        %v862 = vld [vmem:[%s8] sm:$0xff]
        %v863 = vld [vmem:[%s8 + $0x8] sm:$0xff]
        %v864 = vld [vmem:[%s517] sm:$0xff]
        %v865 = vld [vmem:[%s9] sm:$0xff]
        %v866 = vld [vmem:[%s9 + $0x8] sm:$0xff]
        %868 = vset.pattern.permute.xlu0 0
        %869 = vperm.xlu0 %868, %v865
        %v870 = vpop.permute.xlu0 %869
        %873 = vset.pattern.permute.xlu0 0
        %874 = vperm.xlu0 %873, %v866
        %v875 = vpop.permute.xlu0 %874
        %v878 = vsel %vm668, %v862, 0
        %v881 = vsel %vm668, %v863, 0
        %883 = vmatprep.subr.mxu0 0.0
        %884 = vmatpush1.msra.mxu0 0.0
        %885 = vmatprep.subr.mxu0 0.0
        %886 = vmatpush1.msra.mxu0 0.0
        %887 = vmatprep.subr.mxu0 0.0
        %888 = vmatpush1.msra.mxu0 0.0
        %889 = vmatprep.subr.mxu0 0.0
        %890 = vmatpush1.msra.mxu0 0.0
        %891 = vmatprep.subr.mxu0 0.0
        %892 = vmatpush1.msra.mxu0 0.0
        %893 = vmatprep.subr.mxu0 0.0
        %894 = vmatpush1.msra.mxu0 0.0
        %895 = vmatprep.subr.mxu0 0.0
        %896 = vmatpush1.msra.mxu0 0.0
        %897 = vmatprep.subr.mxu0 0.0
        %898 = vmatpush1.msra.mxu0 0.0
        %899 = vmatprep.subr.mxu0 0.0
        %900 = vmatpush1.msra.mxu0 0.0
        %901 = vmatprep.subr.mxu0 0.0
        %902 = vmatpush1.msra.mxu0 0.0
        %903 = vmatprep.subr.mxu0 0.0
        %904 = vmatpush1.msra.mxu0 0.0
        %905 = vmatprep.subr.mxu0 0.0
        %906 = vmatpush1.msra.mxu0 0.0
        %907 = vmatprep.subr.mxu0 0.0
        %908 = vmatpush1.msra.mxu0 0.0
        %909 = vmatprep.subr.mxu0 0.0
        %910 = vmatpush1.msra.mxu0 0.0
        %911 = vmatprep.subr.mxu0 0.0
        %912 = vmatpush1.msra.mxu0 0.0
        %913 = vmatprep.subr.mxu0 0.0
        %914 = vmatpush1.msra.mxu0 %v864
        %915 = vmatprep.subr.mxu0 0.0
        %916 = vmatpush2.msra.mxu0 0.0
        %917 = vmatprep.subr.mxu0 0.0
        %918 = vmatpush2.msra.mxu0 0.0
        %919 = vmatprep.subr.mxu0 0.0
        %920 = vmatpush2.msra.mxu0 0.0
        %921 = vmatprep.subr.mxu0 0.0
        %922 = vmatpush2.msra.mxu0 0.0
        %923 = vmatprep.subr.mxu0 0.0
        %924 = vmatpush2.msra.mxu0 0.0
        %925 = vmatprep.subr.mxu0 0.0
        %926 = vmatpush2.msra.mxu0 0.0
        %927 = vmatprep.subr.mxu0 0.0
        %928 = vmatpush2.msra.mxu0 0.0
        %929 = vmatprep.subr.mxu0 0.0
        %930 = vmatpush2.msra.mxu0 0.0
        %931 = vmatprep.subr.mxu0 0.0
        %932 = vmatpush2.msra.mxu0 0.0
        %933 = vmatprep.subr.mxu0 0.0
        %934 = vmatpush2.msra.mxu0 0.0
        %935 = vmatprep.subr.mxu0 0.0
        %936 = vmatpush2.msra.mxu0 0.0
        %937 = vmatprep.subr.mxu0 0.0
        %938 = vmatpush2.msra.mxu0 0.0
        %939 = vmatprep.subr.mxu0 0.0
        %940 = vmatpush2.msra.mxu0 0.0
        %941 = vmatprep.subr.mxu0 0.0
        %942 = vmatpush2.msra.mxu0 0.0
        %943 = vmatprep.subr.mxu0 0.0
        %944 = vmatpush2.msra.mxu0 0.0
        %945 = vmatprep.subr.mxu0 0.0
        %946 = vmatpush2.msra.mxu0 0.0
        %947 = vmatprep.mubr.f32.mxu0 0.0
        %948 = vmatmul.mubr.f32.gmra.mxu0 %v878
        %v949 = vpop.f32.mrf.mxu0
        %v950 = vadd.f32 %v870, %v949
        %v951 = vpop.f32.mrf.mxu0
        %952 = vmatprep.mubr.f32.mxu0 0.0
        %953 = vmatmul.mubr.f32.gmra.mxu0 %v881
        %v954 = vpop.f32.mrf.mxu0
        %v955 = vadd.f32 %v875, %v954
        %v956 = vpop.f32.mrf.mxu0
        %957 = vdwg.mxu0
        %v958 = vld [vmem:[%s445] sm:$0xff]
        %v959 = vld [vmem:[%s445 + $0x8] sm:$0xff]
        %v960 = vld [vmem:[%s445 + $0x10] sm:$0xff]
        %v961 = vld [vmem:[%s445 + $0x18] sm:$0xff]
        %v962 = vld [vmem:[%s445 + $0x20] sm:$0xff]
        %v963 = vld [vmem:[%s445 + $0x28] sm:$0xff]
        %v964 = vld [vmem:[%s445 + $0x30] sm:$0xff]
        %v965 = vld [vmem:[%s445 + $0x38] sm:$0xff]
        %v966 = vld [vmem:[%s445 + $0x40] sm:$0xff]
        %v967 = vld [vmem:[%s445 + $0x48] sm:$0xff]
        %v968 = vld [vmem:[%s445 + $0x50] sm:$0xff]
        %v969 = vld [vmem:[%s445 + $0x58] sm:$0xff]
        %v970 = vld [vmem:[%s445 + $0x60] sm:$0xff]
        %v971 = vld [vmem:[%s445 + $0x68] sm:$0xff]
        %v972 = vld [vmem:[%s445 + $0x70] sm:$0xff]
        %v973 = vld [vmem:[%s445 + $0x78] sm:$0xff]
        %v974 = vld [vmem:[#allocation2] sm:$0xff]
        %v975 = vld [vmem:[#allocation2 + $0x8] sm:$0xff]
        %v976 = vld [vmem:[#allocation2 + $0x10] sm:$0xff]
        %s977 = sld [smem:[#allocation10]]
        %979 = vset.pattern.permute.xlu0 0
        %980 = vperm.xlu0 %979, %v784
        %v981 = vpop.permute.xlu0 %980
        %984 = vset.pattern.permute.xlu0 0
        %985 = vperm.xlu0 %984, %v789
        %v986 = vpop.permute.xlu0 %985
        %989 = vset.pattern.permute.xlu0 0
        %990 = vperm.xlu0 %989, %v794
        %v991 = vpop.permute.xlu0 %990
        %994 = vset.pattern.permute.xlu0 0
        %995 = vperm.xlu0 %994, %v799
        %v996 = vpop.permute.xlu0 %995
        %999 = vset.pattern.permute.xlu0 0
        %1000 = vperm.xlu0 %999, %v804
        %v1001 = vpop.permute.xlu0 %1000
        %1004 = vset.pattern.permute.xlu0 0
        %1005 = vperm.xlu0 %1004, %v809
        %v1006 = vpop.permute.xlu0 %1005
        %1009 = vset.pattern.permute.xlu0 0
        %1010 = vperm.xlu0 %1009, %v814
        %v1011 = vpop.permute.xlu0 %1010
        %1014 = vset.pattern.permute.xlu0 0
        %1015 = vperm.xlu0 %1014, %v819
        %v1016 = vpop.permute.xlu0 %1015
        %1019 = vset.pattern.permute.xlu0 0
        %1020 = vperm.xlu0 %1019, %v824
        %v1021 = vpop.permute.xlu0 %1020
        %1024 = vset.pattern.permute.xlu0 0
        %1025 = vperm.xlu0 %1024, %v829
        %v1026 = vpop.permute.xlu0 %1025
        %1029 = vset.pattern.permute.xlu0 0
        %1030 = vperm.xlu0 %1029, %v834
        %v1031 = vpop.permute.xlu0 %1030
        %1034 = vset.pattern.permute.xlu0 0
        %1035 = vperm.xlu0 %1034, %v839
        %v1036 = vpop.permute.xlu0 %1035
        %1039 = vset.pattern.permute.xlu0 0
        %1040 = vperm.xlu0 %1039, %v844
        %v1041 = vpop.permute.xlu0 %1040
        %1044 = vset.pattern.permute.xlu0 0
        %1045 = vperm.xlu0 %1044, %v849
        %v1046 = vpop.permute.xlu0 %1045
        %1049 = vset.pattern.permute.xlu0 0
        %1050 = vperm.xlu0 %1049, %v854
        %v1051 = vpop.permute.xlu0 %1050
        %1054 = vset.pattern.permute.xlu0 0
        %1055 = vperm.xlu0 %1054, %v859
        %v1056 = vpop.permute.xlu0 %1055
        %v1058 = vlaneseq
        %v1059 = vshrl.u32 %v1058, 7
        %v1060 = vsub.s32 0, %v1059
        %v1061 = vrot.slane %v974, %v1060
        %v1062 = vadd.f32 %v981, %v1061
        %v1063 = vadd.f32 %v986, %v1061
        %v1064 = vadd.f32 %v991, %v1061
        %v1065 = vadd.f32 %v996, %v1061
        %v1066 = vadd.f32 %v1001, %v1061
        %v1067 = vadd.f32 %v1006, %v1061
        %v1068 = vadd.f32 %v1011, %v1061
        %v1069 = vadd.f32 %v1016, %v1061
        %v1070 = vadd.f32 %v1021, %v1061
        %v1071 = vadd.f32 %v1026, %v1061
        %v1072 = vadd.f32 %v1031, %v1061
        %v1073 = vadd.f32 %v1036, %v1061
        %v1074 = vadd.f32 %v1041, %v1061
        %v1075 = vadd.f32 %v1046, %v1061
        %v1076 = vadd.f32 %v1051, %v1061
        %v1077 = vadd.f32 %v1056, %v1061
        %v1078 = vand.u32 2147483647, %v1062
        %v1079 = vand.u32 2147483647, %v1063
        %v1080 = vand.u32 2147483647, %v1064
        %v1081 = vand.u32 2147483647, %v1065
        %v1082 = vand.u32 2147483647, %v1066
        %v1083 = vand.u32 2147483647, %v1067
        %v1084 = vand.u32 2147483647, %v1068
        %v1085 = vand.u32 2147483647, %v1069
        %v1086 = vand.u32 2147483647, %v1070
        %v1087 = vand.u32 2147483647, %v1071
        %v1088 = vand.u32 2147483647, %v1072
        %v1089 = vand.u32 2147483647, %v1073
        %v1090 = vand.u32 2147483647, %v1074
        %v1091 = vand.u32 2147483647, %v1075
        %v1092 = vand.u32 2147483647, %v1076
        %v1093 = vand.u32 2147483647, %v1077
        %v1094 = vstv %s977
        %v1095 = vmul.f32 %v1094, %v1078
        %v1096 = vmul.f32 %v1094, %v1079
        %v1097 = vmul.f32 %v1094, %v1080
        %v1098 = vmul.f32 %v1094, %v1081
        %v1099 = vmul.f32 %v1094, %v1082
        %v1100 = vmul.f32 %v1094, %v1083
        %v1101 = vmul.f32 %v1094, %v1084
        %v1102 = vmul.f32 %v1094, %v1085
        %v1103 = vmul.f32 %v1094, %v1086
        %v1104 = vmul.f32 %v1094, %v1087
        %v1105 = vmul.f32 %v1094, %v1088
        %v1106 = vmul.f32 %v1094, %v1089
        %v1107 = vmul.f32 %v1094, %v1090
        %v1108 = vmul.f32 %v1094, %v1091
        %v1109 = vmul.f32 %v1094, %v1092
        %v1110 = vmul.f32 %v1094, %v1093
        %s1111 = sld [smem:[#allocation10 + $0x1]]
        %1112 = vset.pattern.permute.xlu0 1
        %1113 = vperm.xlu0 %1112, %v784
        %v1114 = vpop.permute.xlu0 %1113
        %1116 = vset.pattern.permute.xlu0 1
        %1117 = vperm.xlu0 %1116, %v789
        %v1118 = vpop.permute.xlu0 %1117
        %1120 = vset.pattern.permute.xlu0 1
        %1121 = vperm.xlu0 %1120, %v794
        %v1122 = vpop.permute.xlu0 %1121
        %1124 = vset.pattern.permute.xlu0 1
        %1125 = vperm.xlu0 %1124, %v799
        %v1126 = vpop.permute.xlu0 %1125
        %1128 = vset.pattern.permute.xlu0 1
        %1129 = vperm.xlu0 %1128, %v804
        %v1130 = vpop.permute.xlu0 %1129
        %1132 = vset.pattern.permute.xlu0 1
        %1133 = vperm.xlu0 %1132, %v809
        %v1134 = vpop.permute.xlu0 %1133
        %1136 = vset.pattern.permute.xlu0 1
        %1137 = vperm.xlu0 %1136, %v814
        %v1138 = vpop.permute.xlu0 %1137
        %1140 = vset.pattern.permute.xlu0 1
        %1141 = vperm.xlu0 %1140, %v819
        %v1142 = vpop.permute.xlu0 %1141
        %1144 = vset.pattern.permute.xlu0 1
        %1145 = vperm.xlu0 %1144, %v824
        %v1146 = vpop.permute.xlu0 %1145
        %1148 = vset.pattern.permute.xlu0 1
        %1149 = vperm.xlu0 %1148, %v829
        %v1150 = vpop.permute.xlu0 %1149
        %1152 = vset.pattern.permute.xlu0 1
        %1153 = vperm.xlu0 %1152, %v834
        %v1154 = vpop.permute.xlu0 %1153
        %1156 = vset.pattern.permute.xlu0 1
        %1157 = vperm.xlu0 %1156, %v839
        %v1158 = vpop.permute.xlu0 %1157
        %1160 = vset.pattern.permute.xlu0 1
        %1161 = vperm.xlu0 %1160, %v844
        %v1162 = vpop.permute.xlu0 %1161
        %1164 = vset.pattern.permute.xlu0 1
        %1165 = vperm.xlu0 %1164, %v849
        %v1166 = vpop.permute.xlu0 %1165
        %1168 = vset.pattern.permute.xlu0 1
        %1169 = vperm.xlu0 %1168, %v854
        %v1170 = vpop.permute.xlu0 %1169
        %1172 = vset.pattern.permute.xlu0 1
        %1173 = vperm.xlu0 %1172, %v859
        %v1174 = vpop.permute.xlu0 %1173
        %v1176 = vlaneseq
        %v1177 = vshrl.u32 %v1176, 7
        %v1178 = vsub.s32 1, %v1177
        %v1179 = vrot.slane %v974, %v1178
        %v1180 = vadd.f32 %v1114, %v1179
        %v1181 = vadd.f32 %v1118, %v1179
        %v1182 = vadd.f32 %v1122, %v1179
        %v1183 = vadd.f32 %v1126, %v1179
        %v1184 = vadd.f32 %v1130, %v1179
        %v1185 = vadd.f32 %v1134, %v1179
        %v1186 = vadd.f32 %v1138, %v1179
        %v1187 = vadd.f32 %v1142, %v1179
        %v1188 = vadd.f32 %v1146, %v1179
        %v1189 = vadd.f32 %v1150, %v1179
        %v1190 = vadd.f32 %v1154, %v1179
        %v1191 = vadd.f32 %v1158, %v1179
        %v1192 = vadd.f32 %v1162, %v1179
        %v1193 = vadd.f32 %v1166, %v1179
        %v1194 = vadd.f32 %v1170, %v1179
        %v1195 = vadd.f32 %v1174, %v1179
        %v1196 = vand.u32 2147483647, %v1180
        %v1197 = vand.u32 2147483647, %v1181
        %v1198 = vand.u32 2147483647, %v1182
        %v1199 = vand.u32 2147483647, %v1183
        %v1200 = vand.u32 2147483647, %v1184
        %v1201 = vand.u32 2147483647, %v1185
        %v1202 = vand.u32 2147483647, %v1186
        %v1203 = vand.u32 2147483647, %v1187
        %v1204 = vand.u32 2147483647, %v1188
        %v1205 = vand.u32 2147483647, %v1189
        %v1206 = vand.u32 2147483647, %v1190
        %v1207 = vand.u32 2147483647, %v1191
        %v1208 = vand.u32 2147483647, %v1192
        %v1209 = vand.u32 2147483647, %v1193
        %v1210 = vand.u32 2147483647, %v1194
        %v1211 = vand.u32 2147483647, %v1195
        %v1212 = vstv %s1111
        %v1213 = vmul.f32 %v1212, %v1196
        %v1214 = vmul.f32 %v1212, %v1197
        %v1215 = vmul.f32 %v1212, %v1198
        %v1216 = vmul.f32 %v1212, %v1199
        %v1217 = vmul.f32 %v1212, %v1200
        %v1218 = vmul.f32 %v1212, %v1201
        %v1219 = vmul.f32 %v1212, %v1202
        %v1220 = vmul.f32 %v1212, %v1203
        %v1221 = vmul.f32 %v1212, %v1204
        %v1222 = vmul.f32 %v1212, %v1205
        %v1223 = vmul.f32 %v1212, %v1206
        %v1224 = vmul.f32 %v1212, %v1207
        %v1225 = vmul.f32 %v1212, %v1208
        %v1226 = vmul.f32 %v1212, %v1209
        %v1227 = vmul.f32 %v1212, %v1210
        %v1228 = vmul.f32 %v1212, %v1211
        %v1229 = vadd.f32 %v1095, %v1213
        %v1230 = vadd.f32 %v1096, %v1214
        %v1231 = vadd.f32 %v1097, %v1215
        %v1232 = vadd.f32 %v1098, %v1216
        %v1233 = vadd.f32 %v1099, %v1217
        %v1234 = vadd.f32 %v1100, %v1218
        %v1235 = vadd.f32 %v1101, %v1219
        %v1236 = vadd.f32 %v1102, %v1220
        %v1237 = vadd.f32 %v1103, %v1221
        %v1238 = vadd.f32 %v1104, %v1222
        %v1239 = vadd.f32 %v1105, %v1223
        %v1240 = vadd.f32 %v1106, %v1224
        %v1241 = vadd.f32 %v1107, %v1225
        %v1242 = vadd.f32 %v1108, %v1226
        %v1243 = vadd.f32 %v1109, %v1227
        %v1244 = vadd.f32 %v1110, %v1228
        %s1245 = sld [smem:[#allocation10 + $0x2]]
        %1246 = vset.pattern.permute.xlu0 2
        %1247 = vperm.xlu0 %1246, %v784
        %v1248 = vpop.permute.xlu0 %1247
        %1250 = vset.pattern.permute.xlu0 2
        %1251 = vperm.xlu0 %1250, %v789
        %v1252 = vpop.permute.xlu0 %1251
        %1254 = vset.pattern.permute.xlu0 2
        %1255 = vperm.xlu0 %1254, %v794
        %v1256 = vpop.permute.xlu0 %1255
        %1258 = vset.pattern.permute.xlu0 2
        %1259 = vperm.xlu0 %1258, %v799
        %v1260 = vpop.permute.xlu0 %1259
        %1262 = vset.pattern.permute.xlu0 2
        %1263 = vperm.xlu0 %1262, %v804
        %v1264 = vpop.permute.xlu0 %1263
        %1266 = vset.pattern.permute.xlu0 2
        %1267 = vperm.xlu0 %1266, %v809
        %v1268 = vpop.permute.xlu0 %1267
        %1270 = vset.pattern.permute.xlu0 2
        %1271 = vperm.xlu0 %1270, %v814
        %v1272 = vpop.permute.xlu0 %1271
        %1274 = vset.pattern.permute.xlu0 2
        %1275 = vperm.xlu0 %1274, %v819
        %v1276 = vpop.permute.xlu0 %1275
        %1278 = vset.pattern.permute.xlu0 2
        %1279 = vperm.xlu0 %1278, %v824
        %v1280 = vpop.permute.xlu0 %1279
        %1282 = vset.pattern.permute.xlu0 2
        %1283 = vperm.xlu0 %1282, %v829
        %v1284 = vpop.permute.xlu0 %1283
        %1286 = vset.pattern.permute.xlu0 2
        %1287 = vperm.xlu0 %1286, %v834
        %v1288 = vpop.permute.xlu0 %1287
        %1290 = vset.pattern.permute.xlu0 2
        %1291 = vperm.xlu0 %1290, %v839
        %v1292 = vpop.permute.xlu0 %1291
        %1294 = vset.pattern.permute.xlu0 2
        %1295 = vperm.xlu0 %1294, %v844
        %v1296 = vpop.permute.xlu0 %1295
        %1298 = vset.pattern.permute.xlu0 2
        %1299 = vperm.xlu0 %1298, %v849
        %v1300 = vpop.permute.xlu0 %1299
        %1302 = vset.pattern.permute.xlu0 2
        %1303 = vperm.xlu0 %1302, %v854
        %v1304 = vpop.permute.xlu0 %1303
        %1306 = vset.pattern.permute.xlu0 2
        %1307 = vperm.xlu0 %1306, %v859
        %v1308 = vpop.permute.xlu0 %1307
        %v1310 = vlaneseq
        %v1311 = vshrl.u32 %v1310, 7
        %v1312 = vsub.s32 2, %v1311
        %v1313 = vrot.slane %v974, %v1312
        %v1314 = vadd.f32 %v1248, %v1313
        %v1315 = vadd.f32 %v1252, %v1313
        %v1316 = vadd.f32 %v1256, %v1313
        %v1317 = vadd.f32 %v1260, %v1313
        %v1318 = vadd.f32 %v1264, %v1313
        %v1319 = vadd.f32 %v1268, %v1313
        %v1320 = vadd.f32 %v1272, %v1313
        %v1321 = vadd.f32 %v1276, %v1313
        %v1322 = vadd.f32 %v1280, %v1313
        %v1323 = vadd.f32 %v1284, %v1313
        %v1324 = vadd.f32 %v1288, %v1313
        %v1325 = vadd.f32 %v1292, %v1313
        %v1326 = vadd.f32 %v1296, %v1313
        %v1327 = vadd.f32 %v1300, %v1313
        %v1328 = vadd.f32 %v1304, %v1313
        %v1329 = vadd.f32 %v1308, %v1313
        %v1330 = vand.u32 2147483647, %v1314
        %v1331 = vand.u32 2147483647, %v1315
        %v1332 = vand.u32 2147483647, %v1316
        %v1333 = vand.u32 2147483647, %v1317
        %v1334 = vand.u32 2147483647, %v1318
        %v1335 = vand.u32 2147483647, %v1319
        %v1336 = vand.u32 2147483647, %v1320
        %v1337 = vand.u32 2147483647, %v1321
        %v1338 = vand.u32 2147483647, %v1322
        %v1339 = vand.u32 2147483647, %v1323
        %v1340 = vand.u32 2147483647, %v1324
        %v1341 = vand.u32 2147483647, %v1325
        %v1342 = vand.u32 2147483647, %v1326
        %v1343 = vand.u32 2147483647, %v1327
        %v1344 = vand.u32 2147483647, %v1328
        %v1345 = vand.u32 2147483647, %v1329
        %v1346 = vstv %s1245
        %v1347 = vmul.f32 %v1346, %v1330
        %v1348 = vmul.f32 %v1346, %v1331
        %v1349 = vmul.f32 %v1346, %v1332
        %v1350 = vmul.f32 %v1346, %v1333
        %v1351 = vmul.f32 %v1346, %v1334
        %v1352 = vmul.f32 %v1346, %v1335
        %v1353 = vmul.f32 %v1346, %v1336
        %v1354 = vmul.f32 %v1346, %v1337
        %v1355 = vmul.f32 %v1346, %v1338
        %v1356 = vmul.f32 %v1346, %v1339
        %v1357 = vmul.f32 %v1346, %v1340
        %v1358 = vmul.f32 %v1346, %v1341
        %v1359 = vmul.f32 %v1346, %v1342
        %v1360 = vmul.f32 %v1346, %v1343
        %v1361 = vmul.f32 %v1346, %v1344
        %v1362 = vmul.f32 %v1346, %v1345
        %v1363 = vadd.f32 %v1229, %v1347
        %v1364 = vadd.f32 %v1230, %v1348
        %v1365 = vadd.f32 %v1231, %v1349
        %v1366 = vadd.f32 %v1232, %v1350
        %v1367 = vadd.f32 %v1233, %v1351
        %v1368 = vadd.f32 %v1234, %v1352
        %v1369 = vadd.f32 %v1235, %v1353
        %v1370 = vadd.f32 %v1236, %v1354
        %v1371 = vadd.f32 %v1237, %v1355
        %v1372 = vadd.f32 %v1238, %v1356
        %v1373 = vadd.f32 %v1239, %v1357
        %v1374 = vadd.f32 %v1240, %v1358
        %v1375 = vadd.f32 %v1241, %v1359
        %v1376 = vadd.f32 %v1242, %v1360
        %v1377 = vadd.f32 %v1243, %v1361
        %v1378 = vadd.f32 %v1244, %v1362
        %s1379 = sld [smem:[#allocation10 + $0x3]]
        %1380 = vset.pattern.permute.xlu0 3
        %1381 = vperm.xlu0 %1380, %v784
        %v1382 = vpop.permute.xlu0 %1381
        %1384 = vset.pattern.permute.xlu0 3
        %1385 = vperm.xlu0 %1384, %v789
        %v1386 = vpop.permute.xlu0 %1385
        %1388 = vset.pattern.permute.xlu0 3
        %1389 = vperm.xlu0 %1388, %v794
        %v1390 = vpop.permute.xlu0 %1389
        %1392 = vset.pattern.permute.xlu0 3
        %1393 = vperm.xlu0 %1392, %v799
        %v1394 = vpop.permute.xlu0 %1393
        %1396 = vset.pattern.permute.xlu0 3
        %1397 = vperm.xlu0 %1396, %v804
        %v1398 = vpop.permute.xlu0 %1397
        %1400 = vset.pattern.permute.xlu0 3
        %1401 = vperm.xlu0 %1400, %v809
        %v1402 = vpop.permute.xlu0 %1401
        %1404 = vset.pattern.permute.xlu0 3
        %1405 = vperm.xlu0 %1404, %v814
        %v1406 = vpop.permute.xlu0 %1405
        %1408 = vset.pattern.permute.xlu0 3
        %1409 = vperm.xlu0 %1408, %v819
        %v1410 = vpop.permute.xlu0 %1409
        %1412 = vset.pattern.permute.xlu0 3
        %1413 = vperm.xlu0 %1412, %v824
        %v1414 = vpop.permute.xlu0 %1413
        %1416 = vset.pattern.permute.xlu0 3
        %1417 = vperm.xlu0 %1416, %v829
        %v1418 = vpop.permute.xlu0 %1417
        %1420 = vset.pattern.permute.xlu0 3
        %1421 = vperm.xlu0 %1420, %v834
        %v1422 = vpop.permute.xlu0 %1421
        %1424 = vset.pattern.permute.xlu0 3
        %1425 = vperm.xlu0 %1424, %v839
        %v1426 = vpop.permute.xlu0 %1425
        %1428 = vset.pattern.permute.xlu0 3
        %1429 = vperm.xlu0 %1428, %v844
        %v1430 = vpop.permute.xlu0 %1429
        %1432 = vset.pattern.permute.xlu0 3
        %1433 = vperm.xlu0 %1432, %v849
        %v1434 = vpop.permute.xlu0 %1433
        %1436 = vset.pattern.permute.xlu0 3
        %1437 = vperm.xlu0 %1436, %v854
        %v1438 = vpop.permute.xlu0 %1437
        %1440 = vset.pattern.permute.xlu0 3
        %1441 = vperm.xlu0 %1440, %v859
        %v1442 = vpop.permute.xlu0 %1441
        %v1444 = vlaneseq
        %v1445 = vshrl.u32 %v1444, 7
        %v1446 = vsub.s32 3, %v1445
        %v1447 = vrot.slane %v974, %v1446
        %v1448 = vadd.f32 %v1382, %v1447
        %v1449 = vadd.f32 %v1386, %v1447
        %v1450 = vadd.f32 %v1390, %v1447
        %v1451 = vadd.f32 %v1394, %v1447
        %v1452 = vadd.f32 %v1398, %v1447
        %v1453 = vadd.f32 %v1402, %v1447
        %v1454 = vadd.f32 %v1406, %v1447
        %v1455 = vadd.f32 %v1410, %v1447
        %v1456 = vadd.f32 %v1414, %v1447
        %v1457 = vadd.f32 %v1418, %v1447
        %v1458 = vadd.f32 %v1422, %v1447
        %v1459 = vadd.f32 %v1426, %v1447
        %v1460 = vadd.f32 %v1430, %v1447
        %v1461 = vadd.f32 %v1434, %v1447
        %v1462 = vadd.f32 %v1438, %v1447
        %v1463 = vadd.f32 %v1442, %v1447
        %v1464 = vand.u32 2147483647, %v1448
        %v1465 = vand.u32 2147483647, %v1449
        %v1466 = vand.u32 2147483647, %v1450
        %v1467 = vand.u32 2147483647, %v1451
        %v1468 = vand.u32 2147483647, %v1452
        %v1469 = vand.u32 2147483647, %v1453
        %v1470 = vand.u32 2147483647, %v1454
        %v1471 = vand.u32 2147483647, %v1455
        %v1472 = vand.u32 2147483647, %v1456
        %v1473 = vand.u32 2147483647, %v1457
        %v1474 = vand.u32 2147483647, %v1458
        %v1475 = vand.u32 2147483647, %v1459
        %v1476 = vand.u32 2147483647, %v1460
        %v1477 = vand.u32 2147483647, %v1461
        %v1478 = vand.u32 2147483647, %v1462
        %v1479 = vand.u32 2147483647, %v1463
        %v1480 = vstv %s1379
        %v1481 = vmul.f32 %v1480, %v1464
        %v1482 = vmul.f32 %v1480, %v1465
        %v1483 = vmul.f32 %v1480, %v1466
        %v1484 = vmul.f32 %v1480, %v1467
        %v1485 = vmul.f32 %v1480, %v1468
        %v1486 = vmul.f32 %v1480, %v1469
        %v1487 = vmul.f32 %v1480, %v1470
        %v1488 = vmul.f32 %v1480, %v1471
        %v1489 = vmul.f32 %v1480, %v1472
        %v1490 = vmul.f32 %v1480, %v1473
        %v1491 = vmul.f32 %v1480, %v1474
        %v1492 = vmul.f32 %v1480, %v1475
        %v1493 = vmul.f32 %v1480, %v1476
        %v1494 = vmul.f32 %v1480, %v1477
        %v1495 = vmul.f32 %v1480, %v1478
        %v1496 = vmul.f32 %v1480, %v1479
        %v1497 = vadd.f32 %v1363, %v1481
        %v1498 = vadd.f32 %v1364, %v1482
        %v1499 = vadd.f32 %v1365, %v1483
        %v1500 = vadd.f32 %v1366, %v1484
        %v1501 = vadd.f32 %v1367, %v1485
        %v1502 = vadd.f32 %v1368, %v1486
        %v1503 = vadd.f32 %v1369, %v1487
        %v1504 = vadd.f32 %v1370, %v1488
        %v1505 = vadd.f32 %v1371, %v1489
        %v1506 = vadd.f32 %v1372, %v1490
        %v1507 = vadd.f32 %v1373, %v1491
        %v1508 = vadd.f32 %v1374, %v1492
        %v1509 = vadd.f32 %v1375, %v1493
        %v1510 = vadd.f32 %v1376, %v1494
        %v1511 = vadd.f32 %v1377, %v1495
        %v1512 = vadd.f32 %v1378, %v1496
        %s1513 = sld [smem:[#allocation10 + $0x4]]
        %1514 = vset.pattern.permute.xlu0 4
        %1515 = vperm.xlu0 %1514, %v784
        %v1516 = vpop.permute.xlu0 %1515
        %1518 = vset.pattern.permute.xlu0 4
        %1519 = vperm.xlu0 %1518, %v789
        %v1520 = vpop.permute.xlu0 %1519
        %1522 = vset.pattern.permute.xlu0 4
        %1523 = vperm.xlu0 %1522, %v794
        %v1524 = vpop.permute.xlu0 %1523
        %1526 = vset.pattern.permute.xlu0 4
        %1527 = vperm.xlu0 %1526, %v799
        %v1528 = vpop.permute.xlu0 %1527
        %1530 = vset.pattern.permute.xlu0 4
        %1531 = vperm.xlu0 %1530, %v804
        %v1532 = vpop.permute.xlu0 %1531
        %1534 = vset.pattern.permute.xlu0 4
        %1535 = vperm.xlu0 %1534, %v809
        %v1536 = vpop.permute.xlu0 %1535
        %1538 = vset.pattern.permute.xlu0 4
        %1539 = vperm.xlu0 %1538, %v814
        %v1540 = vpop.permute.xlu0 %1539
        %1542 = vset.pattern.permute.xlu0 4
        %1543 = vperm.xlu0 %1542, %v819
        %v1544 = vpop.permute.xlu0 %1543
        %1546 = vset.pattern.permute.xlu0 4
        %1547 = vperm.xlu0 %1546, %v824
        %v1548 = vpop.permute.xlu0 %1547
        %1550 = vset.pattern.permute.xlu0 4
        %1551 = vperm.xlu0 %1550, %v829
        %v1552 = vpop.permute.xlu0 %1551
        %1554 = vset.pattern.permute.xlu0 4
        %1555 = vperm.xlu0 %1554, %v834
        %v1556 = vpop.permute.xlu0 %1555
        %1558 = vset.pattern.permute.xlu0 4
        %1559 = vperm.xlu0 %1558, %v839
        %v1560 = vpop.permute.xlu0 %1559
        %1562 = vset.pattern.permute.xlu0 4
        %1563 = vperm.xlu0 %1562, %v844
        %v1564 = vpop.permute.xlu0 %1563
        %1566 = vset.pattern.permute.xlu0 4
        %1567 = vperm.xlu0 %1566, %v849
        %v1568 = vpop.permute.xlu0 %1567
        %1570 = vset.pattern.permute.xlu0 4
        %1571 = vperm.xlu0 %1570, %v854
        %v1572 = vpop.permute.xlu0 %1571
        %1574 = vset.pattern.permute.xlu0 4
        %1575 = vperm.xlu0 %1574, %v859
        %v1576 = vpop.permute.xlu0 %1575
        %v1578 = vlaneseq
        %v1579 = vshrl.u32 %v1578, 7
        %v1580 = vsub.s32 4, %v1579
        %v1581 = vrot.slane %v974, %v1580
        %v1582 = vadd.f32 %v1516, %v1581
        %v1583 = vadd.f32 %v1520, %v1581
        %v1584 = vadd.f32 %v1524, %v1581
        %v1585 = vadd.f32 %v1528, %v1581
        %v1586 = vadd.f32 %v1532, %v1581
        %v1587 = vadd.f32 %v1536, %v1581
        %v1588 = vadd.f32 %v1540, %v1581
        %v1589 = vadd.f32 %v1544, %v1581
        %v1590 = vadd.f32 %v1548, %v1581
        %v1591 = vadd.f32 %v1552, %v1581
        %v1592 = vadd.f32 %v1556, %v1581
        %v1593 = vadd.f32 %v1560, %v1581
        %v1594 = vadd.f32 %v1564, %v1581
        %v1595 = vadd.f32 %v1568, %v1581
        %v1596 = vadd.f32 %v1572, %v1581
        %v1597 = vadd.f32 %v1576, %v1581
        %v1598 = vand.u32 2147483647, %v1582
        %v1599 = vand.u32 2147483647, %v1583
        %v1600 = vand.u32 2147483647, %v1584
        %v1601 = vand.u32 2147483647, %v1585
        %v1602 = vand.u32 2147483647, %v1586
        %v1603 = vand.u32 2147483647, %v1587
        %v1604 = vand.u32 2147483647, %v1588
        %v1605 = vand.u32 2147483647, %v1589
        %v1606 = vand.u32 2147483647, %v1590
        %v1607 = vand.u32 2147483647, %v1591
        %v1608 = vand.u32 2147483647, %v1592
        %v1609 = vand.u32 2147483647, %v1593
        %v1610 = vand.u32 2147483647, %v1594
        %v1611 = vand.u32 2147483647, %v1595
        %v1612 = vand.u32 2147483647, %v1596
        %v1613 = vand.u32 2147483647, %v1597
        %v1614 = vstv %s1513
        %v1615 = vmul.f32 %v1614, %v1598
        %v1616 = vmul.f32 %v1614, %v1599
        %v1617 = vmul.f32 %v1614, %v1600
        %v1618 = vmul.f32 %v1614, %v1601
        %v1619 = vmul.f32 %v1614, %v1602
        %v1620 = vmul.f32 %v1614, %v1603
        %v1621 = vmul.f32 %v1614, %v1604
        %v1622 = vmul.f32 %v1614, %v1605
        %v1623 = vmul.f32 %v1614, %v1606
        %v1624 = vmul.f32 %v1614, %v1607
        %v1625 = vmul.f32 %v1614, %v1608
        %v1626 = vmul.f32 %v1614, %v1609
        %v1627 = vmul.f32 %v1614, %v1610
        %v1628 = vmul.f32 %v1614, %v1611
        %v1629 = vmul.f32 %v1614, %v1612
        %v1630 = vmul.f32 %v1614, %v1613
        %v1631 = vadd.f32 %v1497, %v1615
        %v1632 = vadd.f32 %v1498, %v1616
        %v1633 = vadd.f32 %v1499, %v1617
        %v1634 = vadd.f32 %v1500, %v1618
        %v1635 = vadd.f32 %v1501, %v1619
        %v1636 = vadd.f32 %v1502, %v1620
        %v1637 = vadd.f32 %v1503, %v1621
        %v1638 = vadd.f32 %v1504, %v1622
        %v1639 = vadd.f32 %v1505, %v1623
        %v1640 = vadd.f32 %v1506, %v1624
        %v1641 = vadd.f32 %v1507, %v1625
        %v1642 = vadd.f32 %v1508, %v1626
        %v1643 = vadd.f32 %v1509, %v1627
        %v1644 = vadd.f32 %v1510, %v1628
        %v1645 = vadd.f32 %v1511, %v1629
        %v1646 = vadd.f32 %v1512, %v1630
        %s1647 = sld [smem:[#allocation10 + $0x5]]
        %1648 = vset.pattern.permute.xlu0 5
        %1649 = vperm.xlu0 %1648, %v784
        %v1650 = vpop.permute.xlu0 %1649
        %1652 = vset.pattern.permute.xlu0 5
        %1653 = vperm.xlu0 %1652, %v789
        %v1654 = vpop.permute.xlu0 %1653
        %1656 = vset.pattern.permute.xlu0 5
        %1657 = vperm.xlu0 %1656, %v794
        %v1658 = vpop.permute.xlu0 %1657
        %1660 = vset.pattern.permute.xlu0 5
        %1661 = vperm.xlu0 %1660, %v799
        %v1662 = vpop.permute.xlu0 %1661
        %1664 = vset.pattern.permute.xlu0 5
        %1665 = vperm.xlu0 %1664, %v804
        %v1666 = vpop.permute.xlu0 %1665
        %1668 = vset.pattern.permute.xlu0 5
        %1669 = vperm.xlu0 %1668, %v809
        %v1670 = vpop.permute.xlu0 %1669
        %1672 = vset.pattern.permute.xlu0 5
        %1673 = vperm.xlu0 %1672, %v814
        %v1674 = vpop.permute.xlu0 %1673
        %1676 = vset.pattern.permute.xlu0 5
        %1677 = vperm.xlu0 %1676, %v819
        %v1678 = vpop.permute.xlu0 %1677
        %1680 = vset.pattern.permute.xlu0 5
        %1681 = vperm.xlu0 %1680, %v824
        %v1682 = vpop.permute.xlu0 %1681
        %1684 = vset.pattern.permute.xlu0 5
        %1685 = vperm.xlu0 %1684, %v829
        %v1686 = vpop.permute.xlu0 %1685
        %1688 = vset.pattern.permute.xlu0 5
        %1689 = vperm.xlu0 %1688, %v834
        %v1690 = vpop.permute.xlu0 %1689
        %1692 = vset.pattern.permute.xlu0 5
        %1693 = vperm.xlu0 %1692, %v839
        %v1694 = vpop.permute.xlu0 %1693
        %1696 = vset.pattern.permute.xlu0 5
        %1697 = vperm.xlu0 %1696, %v844
        %v1698 = vpop.permute.xlu0 %1697
        %1700 = vset.pattern.permute.xlu0 5
        %1701 = vperm.xlu0 %1700, %v849
        %v1702 = vpop.permute.xlu0 %1701
        %1704 = vset.pattern.permute.xlu0 5
        %1705 = vperm.xlu0 %1704, %v854
        %v1706 = vpop.permute.xlu0 %1705
        %1708 = vset.pattern.permute.xlu0 5
        %1709 = vperm.xlu0 %1708, %v859
        %v1710 = vpop.permute.xlu0 %1709
        %v1712 = vlaneseq
        %v1713 = vshrl.u32 %v1712, 7
        %v1714 = vsub.s32 5, %v1713
        %v1715 = vrot.slane %v974, %v1714
        %v1716 = vadd.f32 %v1650, %v1715
        %v1717 = vadd.f32 %v1654, %v1715
        %v1718 = vadd.f32 %v1658, %v1715
        %v1719 = vadd.f32 %v1662, %v1715
        %v1720 = vadd.f32 %v1666, %v1715
        %v1721 = vadd.f32 %v1670, %v1715
        %v1722 = vadd.f32 %v1674, %v1715
        %v1723 = vadd.f32 %v1678, %v1715
        %v1724 = vadd.f32 %v1682, %v1715
        %v1725 = vadd.f32 %v1686, %v1715
        %v1726 = vadd.f32 %v1690, %v1715
        %v1727 = vadd.f32 %v1694, %v1715
        %v1728 = vadd.f32 %v1698, %v1715
        %v1729 = vadd.f32 %v1702, %v1715
        %v1730 = vadd.f32 %v1706, %v1715
        %v1731 = vadd.f32 %v1710, %v1715
        %v1732 = vand.u32 2147483647, %v1716
        %v1733 = vand.u32 2147483647, %v1717
        %v1734 = vand.u32 2147483647, %v1718
        %v1735 = vand.u32 2147483647, %v1719
        %v1736 = vand.u32 2147483647, %v1720
        %v1737 = vand.u32 2147483647, %v1721
        %v1738 = vand.u32 2147483647, %v1722
        %v1739 = vand.u32 2147483647, %v1723
        %v1740 = vand.u32 2147483647, %v1724
        %v1741 = vand.u32 2147483647, %v1725
        %v1742 = vand.u32 2147483647, %v1726
        %v1743 = vand.u32 2147483647, %v1727
        %v1744 = vand.u32 2147483647, %v1728
        %v1745 = vand.u32 2147483647, %v1729
        %v1746 = vand.u32 2147483647, %v1730
        %v1747 = vand.u32 2147483647, %v1731
        %v1748 = vstv %s1647
        %v1749 = vmul.f32 %v1748, %v1732
        %v1750 = vmul.f32 %v1748, %v1733
        %v1751 = vmul.f32 %v1748, %v1734
        %v1752 = vmul.f32 %v1748, %v1735
        %v1753 = vmul.f32 %v1748, %v1736
        %v1754 = vmul.f32 %v1748, %v1737
        %v1755 = vmul.f32 %v1748, %v1738
        %v1756 = vmul.f32 %v1748, %v1739
        %v1757 = vmul.f32 %v1748, %v1740
        %v1758 = vmul.f32 %v1748, %v1741
        %v1759 = vmul.f32 %v1748, %v1742
        %v1760 = vmul.f32 %v1748, %v1743
        %v1761 = vmul.f32 %v1748, %v1744
        %v1762 = vmul.f32 %v1748, %v1745
        %v1763 = vmul.f32 %v1748, %v1746
        %v1764 = vmul.f32 %v1748, %v1747
        %v1765 = vadd.f32 %v1631, %v1749
        %v1766 = vadd.f32 %v1632, %v1750
        %v1767 = vadd.f32 %v1633, %v1751
        %v1768 = vadd.f32 %v1634, %v1752
        %v1769 = vadd.f32 %v1635, %v1753
        %v1770 = vadd.f32 %v1636, %v1754
        %v1771 = vadd.f32 %v1637, %v1755
        %v1772 = vadd.f32 %v1638, %v1756
        %v1773 = vadd.f32 %v1639, %v1757
        %v1774 = vadd.f32 %v1640, %v1758
        %v1775 = vadd.f32 %v1641, %v1759
        %v1776 = vadd.f32 %v1642, %v1760
        %v1777 = vadd.f32 %v1643, %v1761
        %v1778 = vadd.f32 %v1644, %v1762
        %v1779 = vadd.f32 %v1645, %v1763
        %v1780 = vadd.f32 %v1646, %v1764
        %s1781 = sld [smem:[#allocation10 + $0x6]]
        %1782 = vset.pattern.permute.xlu0 6
        %1783 = vperm.xlu0 %1782, %v784
        %v1784 = vpop.permute.xlu0 %1783
        %1786 = vset.pattern.permute.xlu0 6
        %1787 = vperm.xlu0 %1786, %v789
        %v1788 = vpop.permute.xlu0 %1787
        %1790 = vset.pattern.permute.xlu0 6
        %1791 = vperm.xlu0 %1790, %v794
        %v1792 = vpop.permute.xlu0 %1791
        %1794 = vset.pattern.permute.xlu0 6
        %1795 = vperm.xlu0 %1794, %v799
        %v1796 = vpop.permute.xlu0 %1795
        %1798 = vset.pattern.permute.xlu0 6
        %1799 = vperm.xlu0 %1798, %v804
        %v1800 = vpop.permute.xlu0 %1799
        %1802 = vset.pattern.permute.xlu0 6
        %1803 = vperm.xlu0 %1802, %v809
        %v1804 = vpop.permute.xlu0 %1803
        %1806 = vset.pattern.permute.xlu0 6
        %1807 = vperm.xlu0 %1806, %v814
        %v1808 = vpop.permute.xlu0 %1807
        %1810 = vset.pattern.permute.xlu0 6
        %1811 = vperm.xlu0 %1810, %v819
        %v1812 = vpop.permute.xlu0 %1811
        %1814 = vset.pattern.permute.xlu0 6
        %1815 = vperm.xlu0 %1814, %v824
        %v1816 = vpop.permute.xlu0 %1815
        %1818 = vset.pattern.permute.xlu0 6
        %1819 = vperm.xlu0 %1818, %v829
        %v1820 = vpop.permute.xlu0 %1819
        %1822 = vset.pattern.permute.xlu0 6
        %1823 = vperm.xlu0 %1822, %v834
        %v1824 = vpop.permute.xlu0 %1823
        %1826 = vset.pattern.permute.xlu0 6
        %1827 = vperm.xlu0 %1826, %v839
        %v1828 = vpop.permute.xlu0 %1827
        %1830 = vset.pattern.permute.xlu0 6
        %1831 = vperm.xlu0 %1830, %v844
        %v1832 = vpop.permute.xlu0 %1831
        %1834 = vset.pattern.permute.xlu0 6
        %1835 = vperm.xlu0 %1834, %v849
        %v1836 = vpop.permute.xlu0 %1835
        %1838 = vset.pattern.permute.xlu0 6
        %1839 = vperm.xlu0 %1838, %v854
        %v1840 = vpop.permute.xlu0 %1839
        %1842 = vset.pattern.permute.xlu0 6
        %1843 = vperm.xlu0 %1842, %v859
        %v1844 = vpop.permute.xlu0 %1843
        %v1846 = vlaneseq
        %v1847 = vshrl.u32 %v1846, 7
        %v1848 = vsub.s32 6, %v1847
        %v1849 = vrot.slane %v974, %v1848
        %v1850 = vadd.f32 %v1784, %v1849
        %v1851 = vadd.f32 %v1788, %v1849
        %v1852 = vadd.f32 %v1792, %v1849
        %v1853 = vadd.f32 %v1796, %v1849
        %v1854 = vadd.f32 %v1800, %v1849
        %v1855 = vadd.f32 %v1804, %v1849
        %v1856 = vadd.f32 %v1808, %v1849
        %v1857 = vadd.f32 %v1812, %v1849
        %v1858 = vadd.f32 %v1816, %v1849
        %v1859 = vadd.f32 %v1820, %v1849
        %v1860 = vadd.f32 %v1824, %v1849
        %v1861 = vadd.f32 %v1828, %v1849
        %v1862 = vadd.f32 %v1832, %v1849
        %v1863 = vadd.f32 %v1836, %v1849
        %v1864 = vadd.f32 %v1840, %v1849
        %v1865 = vadd.f32 %v1844, %v1849
        %v1866 = vand.u32 2147483647, %v1850
        %v1867 = vand.u32 2147483647, %v1851
        %v1868 = vand.u32 2147483647, %v1852
        %v1869 = vand.u32 2147483647, %v1853
        %v1870 = vand.u32 2147483647, %v1854
        %v1871 = vand.u32 2147483647, %v1855
        %v1872 = vand.u32 2147483647, %v1856
        %v1873 = vand.u32 2147483647, %v1857
        %v1874 = vand.u32 2147483647, %v1858
        %v1875 = vand.u32 2147483647, %v1859
        %v1876 = vand.u32 2147483647, %v1860
        %v1877 = vand.u32 2147483647, %v1861
        %v1878 = vand.u32 2147483647, %v1862
        %v1879 = vand.u32 2147483647, %v1863
        %v1880 = vand.u32 2147483647, %v1864
        %v1881 = vand.u32 2147483647, %v1865
        %v1882 = vstv %s1781
        %v1883 = vmul.f32 %v1882, %v1866
        %v1884 = vmul.f32 %v1882, %v1867
        %v1885 = vmul.f32 %v1882, %v1868
        %v1886 = vmul.f32 %v1882, %v1869
        %v1887 = vmul.f32 %v1882, %v1870
        %v1888 = vmul.f32 %v1882, %v1871
        %v1889 = vmul.f32 %v1882, %v1872
        %v1890 = vmul.f32 %v1882, %v1873
        %v1891 = vmul.f32 %v1882, %v1874
        %v1892 = vmul.f32 %v1882, %v1875
        %v1893 = vmul.f32 %v1882, %v1876
        %v1894 = vmul.f32 %v1882, %v1877
        %v1895 = vmul.f32 %v1882, %v1878
        %v1896 = vmul.f32 %v1882, %v1879
        %v1897 = vmul.f32 %v1882, %v1880
        %v1898 = vmul.f32 %v1882, %v1881
        %v1899 = vadd.f32 %v1765, %v1883
        %v1900 = vadd.f32 %v1766, %v1884
        %v1901 = vadd.f32 %v1767, %v1885
        %v1902 = vadd.f32 %v1768, %v1886
        %v1903 = vadd.f32 %v1769, %v1887
        %v1904 = vadd.f32 %v1770, %v1888
        %v1905 = vadd.f32 %v1771, %v1889
        %v1906 = vadd.f32 %v1772, %v1890
        %v1907 = vadd.f32 %v1773, %v1891
        %v1908 = vadd.f32 %v1774, %v1892
        %v1909 = vadd.f32 %v1775, %v1893
        %v1910 = vadd.f32 %v1776, %v1894
        %v1911 = vadd.f32 %v1777, %v1895
        %v1912 = vadd.f32 %v1778, %v1896
        %v1913 = vadd.f32 %v1779, %v1897
        %v1914 = vadd.f32 %v1780, %v1898
        %s1915 = sld [smem:[#allocation10 + $0x7]]
        %1916 = vset.pattern.permute.xlu0 7
        %1917 = vperm.xlu0 %1916, %v784
        %v1918 = vpop.permute.xlu0 %1917
        %1920 = vset.pattern.permute.xlu0 7
        %1921 = vperm.xlu0 %1920, %v789
        %v1922 = vpop.permute.xlu0 %1921
        %1924 = vset.pattern.permute.xlu0 7
        %1925 = vperm.xlu0 %1924, %v794
        %v1926 = vpop.permute.xlu0 %1925
        %1928 = vset.pattern.permute.xlu0 7
        %1929 = vperm.xlu0 %1928, %v799
        %v1930 = vpop.permute.xlu0 %1929
        %1932 = vset.pattern.permute.xlu0 7
        %1933 = vperm.xlu0 %1932, %v804
        %v1934 = vpop.permute.xlu0 %1933
        %1936 = vset.pattern.permute.xlu0 7
        %1937 = vperm.xlu0 %1936, %v809
        %v1938 = vpop.permute.xlu0 %1937
        %1940 = vset.pattern.permute.xlu0 7
        %1941 = vperm.xlu0 %1940, %v814
        %v1942 = vpop.permute.xlu0 %1941
        %1944 = vset.pattern.permute.xlu0 7
        %1945 = vperm.xlu0 %1944, %v819
        %v1946 = vpop.permute.xlu0 %1945
        %1948 = vset.pattern.permute.xlu0 7
        %1949 = vperm.xlu0 %1948, %v824
        %v1950 = vpop.permute.xlu0 %1949
        %1952 = vset.pattern.permute.xlu0 7
        %1953 = vperm.xlu0 %1952, %v829
        %v1954 = vpop.permute.xlu0 %1953
        %1956 = vset.pattern.permute.xlu0 7
        %1957 = vperm.xlu0 %1956, %v834
        %v1958 = vpop.permute.xlu0 %1957
        %1960 = vset.pattern.permute.xlu0 7
        %1961 = vperm.xlu0 %1960, %v839
        %v1962 = vpop.permute.xlu0 %1961
        %1964 = vset.pattern.permute.xlu0 7
        %1965 = vperm.xlu0 %1964, %v844
        %v1966 = vpop.permute.xlu0 %1965
        %1968 = vset.pattern.permute.xlu0 7
        %1969 = vperm.xlu0 %1968, %v849
        %v1970 = vpop.permute.xlu0 %1969
        %1972 = vset.pattern.permute.xlu0 7
        %1973 = vperm.xlu0 %1972, %v854
        %v1974 = vpop.permute.xlu0 %1973
        %1976 = vset.pattern.permute.xlu0 7
        %1977 = vperm.xlu0 %1976, %v859
        %v1978 = vpop.permute.xlu0 %1977
        %v1980 = vlaneseq
        %v1981 = vshrl.u32 %v1980, 7
        %v1982 = vsub.s32 7, %v1981
        %v1983 = vrot.slane %v974, %v1982
        %v1984 = vadd.f32 %v1918, %v1983
        %v1985 = vadd.f32 %v1922, %v1983
        %v1986 = vadd.f32 %v1926, %v1983
        %v1987 = vadd.f32 %v1930, %v1983
        %v1988 = vadd.f32 %v1934, %v1983
        %v1989 = vadd.f32 %v1938, %v1983
        %v1990 = vadd.f32 %v1942, %v1983
        %v1991 = vadd.f32 %v1946, %v1983
        %v1992 = vadd.f32 %v1950, %v1983
        %v1993 = vadd.f32 %v1954, %v1983
        %v1994 = vadd.f32 %v1958, %v1983
        %v1995 = vadd.f32 %v1962, %v1983
        %v1996 = vadd.f32 %v1966, %v1983
        %v1997 = vadd.f32 %v1970, %v1983
        %v1998 = vadd.f32 %v1974, %v1983
        %v1999 = vadd.f32 %v1978, %v1983
        %v2000 = vand.u32 2147483647, %v1984
        %v2001 = vand.u32 2147483647, %v1985
        %v2002 = vand.u32 2147483647, %v1986
        %v2003 = vand.u32 2147483647, %v1987
        %v2004 = vand.u32 2147483647, %v1988
        %v2005 = vand.u32 2147483647, %v1989
        %v2006 = vand.u32 2147483647, %v1990
        %v2007 = vand.u32 2147483647, %v1991
        %v2008 = vand.u32 2147483647, %v1992
        %v2009 = vand.u32 2147483647, %v1993
        %v2010 = vand.u32 2147483647, %v1994
        %v2011 = vand.u32 2147483647, %v1995
        %v2012 = vand.u32 2147483647, %v1996
        %v2013 = vand.u32 2147483647, %v1997
        %v2014 = vand.u32 2147483647, %v1998
        %v2015 = vand.u32 2147483647, %v1999
        %v2016 = vstv %s1915
        %v2017 = vmul.f32 %v2016, %v2000
        %v2018 = vmul.f32 %v2016, %v2001
        %v2019 = vmul.f32 %v2016, %v2002
        %v2020 = vmul.f32 %v2016, %v2003
        %v2021 = vmul.f32 %v2016, %v2004
        %v2022 = vmul.f32 %v2016, %v2005
        %v2023 = vmul.f32 %v2016, %v2006
        %v2024 = vmul.f32 %v2016, %v2007
        %v2025 = vmul.f32 %v2016, %v2008
        %v2026 = vmul.f32 %v2016, %v2009
        %v2027 = vmul.f32 %v2016, %v2010
        %v2028 = vmul.f32 %v2016, %v2011
        %v2029 = vmul.f32 %v2016, %v2012
        %v2030 = vmul.f32 %v2016, %v2013
        %v2031 = vmul.f32 %v2016, %v2014
        %v2032 = vmul.f32 %v2016, %v2015
        %v2033 = vadd.f32 %v1899, %v2017
        %v2034 = vadd.f32 %v1900, %v2018
        %v2035 = vadd.f32 %v1901, %v2019
        %v2036 = vadd.f32 %v1902, %v2020
        %v2037 = vadd.f32 %v1903, %v2021
        %v2038 = vadd.f32 %v1904, %v2022
        %v2039 = vadd.f32 %v1905, %v2023
        %v2040 = vadd.f32 %v1906, %v2024
        %v2041 = vadd.f32 %v1907, %v2025
        %v2042 = vadd.f32 %v1908, %v2026
        %v2043 = vadd.f32 %v1909, %v2027
        %v2044 = vadd.f32 %v1910, %v2028
        %v2045 = vadd.f32 %v1911, %v2029
        %v2046 = vadd.f32 %v1912, %v2030
        %v2047 = vadd.f32 %v1913, %v2031
        %v2048 = vadd.f32 %v1914, %v2032
        %v2049 = vlaneseq
        %v2050 = vshrl.u32 %v2049, 7
        %v2051 = vsub.s32 0, %v2050
        %v2052 = vrot.slane %v976, %v2051
        %2053 = vset.pattern.permute.xlu0 16
        %2054 = vperm.xlu0 %2053, %v784
        %v2055 = vpop.permute.xlu0 %2054
        %2057 = vset.pattern.permute.xlu0 16
        %2058 = vperm.xlu0 %2057, %v789
        %v2059 = vpop.permute.xlu0 %2058
        %2061 = vset.pattern.permute.xlu0 16
        %2062 = vperm.xlu0 %2061, %v794
        %v2063 = vpop.permute.xlu0 %2062
        %2065 = vset.pattern.permute.xlu0 16
        %2066 = vperm.xlu0 %2065, %v799
        %v2067 = vpop.permute.xlu0 %2066
        %2069 = vset.pattern.permute.xlu0 16
        %2070 = vperm.xlu0 %2069, %v804
        %v2071 = vpop.permute.xlu0 %2070
        %2073 = vset.pattern.permute.xlu0 16
        %2074 = vperm.xlu0 %2073, %v809
        %v2075 = vpop.permute.xlu0 %2074
        %2077 = vset.pattern.permute.xlu0 16
        %2078 = vperm.xlu0 %2077, %v814
        %v2079 = vpop.permute.xlu0 %2078
        %2081 = vset.pattern.permute.xlu0 16
        %2082 = vperm.xlu0 %2081, %v819
        %v2083 = vpop.permute.xlu0 %2082
        %2085 = vset.pattern.permute.xlu0 16
        %2086 = vperm.xlu0 %2085, %v824
        %v2087 = vpop.permute.xlu0 %2086
        %2089 = vset.pattern.permute.xlu0 16
        %2090 = vperm.xlu0 %2089, %v829
        %v2091 = vpop.permute.xlu0 %2090
        %2093 = vset.pattern.permute.xlu0 16
        %2094 = vperm.xlu0 %2093, %v834
        %v2095 = vpop.permute.xlu0 %2094
        %2097 = vset.pattern.permute.xlu0 16
        %2098 = vperm.xlu0 %2097, %v839
        %v2099 = vpop.permute.xlu0 %2098
        %2101 = vset.pattern.permute.xlu0 16
        %2102 = vperm.xlu0 %2101, %v844
        %v2103 = vpop.permute.xlu0 %2102
        %2105 = vset.pattern.permute.xlu0 16
        %2106 = vperm.xlu0 %2105, %v849
        %v2107 = vpop.permute.xlu0 %2106
        %2109 = vset.pattern.permute.xlu0 16
        %2110 = vperm.xlu0 %2109, %v854
        %v2111 = vpop.permute.xlu0 %2110
        %2113 = vset.pattern.permute.xlu0 16
        %2114 = vperm.xlu0 %2113, %v859
        %v2115 = vpop.permute.xlu0 %2114
        %v2117 = vadd.f32 %v2052, %v2055
        %v2118 = vadd.f32 %v2052, %v2059
        %v2119 = vadd.f32 %v2052, %v2063
        %v2120 = vadd.f32 %v2052, %v2067
        %v2121 = vadd.f32 %v2052, %v2071
        %v2122 = vadd.f32 %v2052, %v2075
        %v2123 = vadd.f32 %v2052, %v2079
        %v2124 = vadd.f32 %v2052, %v2083
        %v2125 = vadd.f32 %v2052, %v2087
        %v2126 = vadd.f32 %v2052, %v2091
        %v2127 = vadd.f32 %v2052, %v2095
        %v2128 = vadd.f32 %v2052, %v2099
        %v2129 = vadd.f32 %v2052, %v2103
        %v2130 = vadd.f32 %v2052, %v2107
        %v2131 = vadd.f32 %v2052, %v2111
        %v2132 = vadd.f32 %v2052, %v2115
        %v2133 = vadd.f32 %v2117, %v2033
        %v2134 = vadd.f32 %v2118, %v2034
        %v2135 = vadd.f32 %v2119, %v2035
        %v2136 = vadd.f32 %v2120, %v2036
        %v2137 = vadd.f32 %v2121, %v2037
        %v2138 = vadd.f32 %v2122, %v2038
        %v2139 = vadd.f32 %v2123, %v2039
        %v2140 = vadd.f32 %v2124, %v2040
        %v2141 = vadd.f32 %v2125, %v2041
        %v2142 = vadd.f32 %v2126, %v2042
        %v2143 = vadd.f32 %v2127, %v2043
        %v2144 = vadd.f32 %v2128, %v2044
        %v2145 = vadd.f32 %v2129, %v2045
        %v2146 = vadd.f32 %v2130, %v2046
        %v2147 = vadd.f32 %v2131, %v2047
        %v2148 = vadd.f32 %v2132, %v2048
        %v2149 = vld [vmem:[#allocation3] sm:$0x1]
        %v2150 = vmax.f32 %v2133, %v2137
        %v2151 = vmax.f32 %v2134, %v2138
        %v2152 = vmax.f32 %v2135, %v2139
        %v2153 = vmax.f32 %v2136, %v2140
        %v2154 = vmax.f32 %v2150, %v2141
        %v2155 = vmax.f32 %v2151, %v2142
        %v2156 = vmax.f32 %v2152, %v2143
        %v2157 = vmax.f32 %v2153, %v2144
        %v2158 = vmax.f32 %v2154, %v2145
        %v2159 = vmax.f32 %v2155, %v2146
        %v2160 = vmax.f32 %v2156, %v2147
        %v2161 = vmax.f32 %v2157, %v2148
        %v2162 = vmax.f32 %v2158, %v2159
        %v2163 = vmax.f32 %v2160, %v2161
        %v2164 = vmax.f32 %v2162, %v2163
        %v2165 = vrot.slane %v2164, 4
        %v2166 = vmax.f32 %v2164, %v2165
        %v2167 = vrot.slane %v2166, 2
        %v2168 = vmax.f32 %v2166, %v2167
        %v2169 = vrot.slane %v2168, 1
        %v2170 = vmax.f32 %v2168, %v2169
        %v2171 = vmax.f32 %v2149, %v2170
        %v2172 = vsub.f32 %v2149, %v2171
        %v2173 = vmul.f32 %v2172, 1.442695
        %v2174 = vpow.pop %v2173
        %v2176 = vlaneseq
        %v2177 = vshrl.u32 %v2176, 7
        %v2178 = vsub.s32 0, %v2177
        %v2179 = vrot.slane %v2171, %v2178
        %v2181 = vsub.f32 %v2133, %v2179
        %v2182 = vsub.f32 %v2134, %v2179
        %v2183 = vsub.f32 %v2135, %v2179
        %v2184 = vsub.f32 %v2136, %v2179
        %v2185 = vsub.f32 %v2137, %v2179
        %v2186 = vsub.f32 %v2138, %v2179
        %v2187 = vsub.f32 %v2139, %v2179
        %v2188 = vsub.f32 %v2140, %v2179
        %v2189 = vsub.f32 %v2141, %v2179
        %v2190 = vsub.f32 %v2142, %v2179
        %v2191 = vsub.f32 %v2143, %v2179
        %v2192 = vsub.f32 %v2144, %v2179
        %v2193 = vsub.f32 %v2145, %v2179
        %v2194 = vsub.f32 %v2146, %v2179
        %v2195 = vsub.f32 %v2147, %v2179
        %v2196 = vsub.f32 %v2148, %v2179
        %v2197 = vmul.f32 %v2181, 1.442695
        %v2198 = vpow.pop %v2197
        %v2199 = vmul.f32 %v2182, 1.442695
        %v2200 = vpow.pop %v2199
        %v2201 = vmul.f32 %v2183, 1.442695
        %v2202 = vpow.pop %v2201
        %v2203 = vmul.f32 %v2184, 1.442695
        %v2204 = vpow.pop %v2203
        %v2205 = vmul.f32 %v2185, 1.442695
        %v2206 = vpow.pop %v2205
        %v2207 = vmul.f32 %v2186, 1.442695
        %v2208 = vpow.pop %v2207
        %v2209 = vmul.f32 %v2187, 1.442695
        %v2210 = vpow.pop %v2209
        %v2211 = vmul.f32 %v2188, 1.442695
        %v2212 = vpow.pop %v2211
        %v2213 = vmul.f32 %v2189, 1.442695
        %v2214 = vpow.pop %v2213
        %v2215 = vmul.f32 %v2190, 1.442695
        %v2216 = vpow.pop %v2215
        %v2217 = vmul.f32 %v2191, 1.442695
        %v2218 = vpow.pop %v2217
        %v2219 = vmul.f32 %v2192, 1.442695
        %v2220 = vpow.pop %v2219
        %v2221 = vmul.f32 %v2193, 1.442695
        %v2222 = vpow.pop %v2221
        %v2223 = vmul.f32 %v2194, 1.442695
        %v2224 = vpow.pop %v2223
        %v2225 = vmul.f32 %v2195, 1.442695
        %v2226 = vpow.pop %v2225
        %v2227 = vmul.f32 %v2196, 1.442695
        %v2228 = vpow.pop %v2227
        %v2229 = vmul.f32 %v958, %v2198
        %v2230 = vmul.f32 %v959, %v2200
        %v2231 = vmul.f32 %v960, %v2202
        %v2232 = vmul.f32 %v961, %v2204
        %v2233 = vmul.f32 %v962, %v2206
        %v2234 = vmul.f32 %v963, %v2208
        %v2235 = vmul.f32 %v964, %v2210
        %v2236 = vmul.f32 %v965, %v2212
        %v2237 = vmul.f32 %v966, %v2214
        %v2238 = vmul.f32 %v967, %v2216
        %v2239 = vmul.f32 %v968, %v2218
        %v2240 = vmul.f32 %v969, %v2220
        %v2241 = vmul.f32 %v970, %v2222
        %v2242 = vmul.f32 %v971, %v2224
        %v2243 = vmul.f32 %v972, %v2226
        %v2244 = vmul.f32 %v973, %v2228
        %v2245 = vld [vmem:[#allocation4] sm:$0x1]
        %v2246 = vmul.f32 %v2245, %v2174
        %v2247 = vadd.f32 %v2229, %v2230
        %v2248 = vadd.f32 %v2247, %v2231
        %v2249 = vadd.f32 %v2248, %v2232
        %v2250 = vadd.f32 %v2249, %v2233
        %v2251 = vadd.f32 %v2250, %v2234
        %v2252 = vadd.f32 %v2251, %v2235
        %v2253 = vadd.f32 %v2252, %v2236
        %v2254 = vadd.f32 %v2253, %v2237
        %v2255 = vadd.f32 %v2254, %v2238
        %v2256 = vadd.f32 %v2255, %v2239
        %v2257 = vadd.f32 %v2256, %v2240
        %v2258 = vadd.f32 %v2257, %v2241
        %v2259 = vadd.f32 %v2258, %v2242
        %v2260 = vadd.f32 %v2259, %v2243
        %v2261 = vadd.f32 %v2260, %v2244
        %v2262 = vrot.slane %v2261, 4
        %v2263 = vadd.f32 %v2261, %v2262
        %v2264 = vrot.slane %v2263, 2
        %v2265 = vadd.f32 %v2263, %v2264
        %v2266 = vrot.slane %v2265, 1
        %v2267 = vadd.f32 %v2265, %v2266
        %v2268 = vadd.f32 %v2246, %v2267
        %2269 = vst [vmem:[#allocation4] sm:$0x1] %v2268
        %v2270 = vld [vmem:[#allocation5] sm:$0xff]
        %v2272 = vlaneseq
        %v2273 = vshrl.u32 %v2272, 7
        %v2274 = vsub.s32 0, %v2273
        %v2275 = vrot.slane %v2174, %v2274
        %v2277 = vmul.f32 %v2270, %v2275
        %2278 = vmatprep.subr.mxu0 0.0
        %2279 = vmatpush1.msra.mxu0 %v2244
        %2280 = vmatprep.subr.mxu0 0.0
        %2281 = vmatpush1.msra.mxu0 %v2243
        %2282 = vmatprep.subr.mxu0 0.0
        %2283 = vmatpush1.msra.mxu0 %v2242
        %2284 = vmatprep.subr.mxu0 0.0
        %2285 = vmatpush1.msra.mxu0 %v2241
        %2286 = vmatprep.subr.mxu0 0.0
        %2287 = vmatpush1.msra.mxu0 %v2240
        %2288 = vmatprep.subr.mxu0 0.0
        %2289 = vmatpush1.msra.mxu0 %v2239
        %2290 = vmatprep.subr.mxu0 0.0
        %2291 = vmatpush1.msra.mxu0 %v2238
        %2292 = vmatprep.subr.mxu0 0.0
        %2293 = vmatpush1.msra.mxu0 %v2237
        %2294 = vmatprep.subr.mxu0 0.0
        %2295 = vmatpush1.msra.mxu0 %v2236
        %2296 = vmatprep.subr.mxu0 0.0
        %2297 = vmatpush1.msra.mxu0 %v2235
        %2298 = vmatprep.subr.mxu0 0.0
        %2299 = vmatpush1.msra.mxu0 %v2234
        %2300 = vmatprep.subr.mxu0 0.0
        %2301 = vmatpush1.msra.mxu0 %v2233
        %2302 = vmatprep.subr.mxu0 0.0
        %2303 = vmatpush1.msra.mxu0 %v2232
        %2304 = vmatprep.subr.mxu0 0.0
        %2305 = vmatpush1.msra.mxu0 %v2231
        %2306 = vmatprep.subr.mxu0 0.0
        %2307 = vmatpush1.msra.mxu0 %v2230
        %2308 = vmatprep.subr.mxu0 0.0
        %2309 = vmatpush1.msra.mxu0 %v2229
        %2310 = vmatprep.subr.mxu0 0.0
        %2311 = vmatpush2.msra.mxu0 0.0
        %2312 = vmatprep.subr.mxu0 0.0
        %2313 = vmatpush2.msra.mxu0 0.0
        %2314 = vmatprep.subr.mxu0 0.0
        %2315 = vmatpush2.msra.mxu0 0.0
        %2316 = vmatprep.subr.mxu0 0.0
        %2317 = vmatpush2.msra.mxu0 0.0
        %2318 = vmatprep.subr.mxu0 0.0
        %2319 = vmatpush2.msra.mxu0 0.0
        %2320 = vmatprep.subr.mxu0 0.0
        %2321 = vmatpush2.msra.mxu0 0.0
        %2322 = vmatprep.subr.mxu0 0.0
        %2323 = vmatpush2.msra.mxu0 0.0
        %2324 = vmatprep.subr.mxu0 0.0
        %2325 = vmatpush2.msra.mxu0 0.0
        %2326 = vmatprep.subr.mxu0 0.0
        %2327 = vmatpush2.msra.mxu0 0.0
        %2328 = vmatprep.subr.mxu0 0.0
        %2329 = vmatpush2.msra.mxu0 0.0
        %2330 = vmatprep.subr.mxu0 0.0
        %2331 = vmatpush2.msra.mxu0 0.0
        %2332 = vmatprep.subr.mxu0 0.0
        %2333 = vmatpush2.msra.mxu0 0.0
        %2334 = vmatprep.subr.mxu0 0.0
        %2335 = vmatpush2.msra.mxu0 0.0
        %2336 = vmatprep.subr.mxu0 0.0
        %2337 = vmatpush2.msra.mxu0 0.0
        %2338 = vmatprep.subr.mxu0 0.0
        %2339 = vmatpush2.msra.mxu0 0.0
        %2340 = vmatprep.subr.mxu0 0.0
        %2341 = vmatpush2.msra.mxu0 0.0
        %2342 = vmatprep.mubr.f32.mxu0 0.0
        %2343 = vmatmul.mubr.f32.gmra.mxu0 %v950
        %v2344 = vpop.f32.mrf.mxu0
        %v2345 = vadd.f32 0.0, %v2344
        %v2346 = vpop.f32.mrf.mxu0
        %2347 = vdwg.mxu0
        %v2348 = vadd.f32 %v2277, %v2345
        %2349 = vst [vmem:[#allocation5] sm:$0xff] %v2348
        %2350 = vst [vmem:[#allocation3] sm:$0x1] %v2171
        %s2351 = sld [smem:[#allocation10 + $0x80]]
        %2352 = vset.pattern.permute.xlu0 8
        %2353 = vperm.xlu0 %2352, %v784
        %v2354 = vpop.permute.xlu0 %2353
        %2356 = vset.pattern.permute.xlu0 8
        %2357 = vperm.xlu0 %2356, %v789
        %v2358 = vpop.permute.xlu0 %2357
        %2360 = vset.pattern.permute.xlu0 8
        %2361 = vperm.xlu0 %2360, %v794
        %v2362 = vpop.permute.xlu0 %2361
        %2364 = vset.pattern.permute.xlu0 8
        %2365 = vperm.xlu0 %2364, %v799
        %v2366 = vpop.permute.xlu0 %2365
        %2368 = vset.pattern.permute.xlu0 8
        %2369 = vperm.xlu0 %2368, %v804
        %v2370 = vpop.permute.xlu0 %2369
        %2372 = vset.pattern.permute.xlu0 8
        %2373 = vperm.xlu0 %2372, %v809
        %v2374 = vpop.permute.xlu0 %2373
        %2376 = vset.pattern.permute.xlu0 8
        %2377 = vperm.xlu0 %2376, %v814
        %v2378 = vpop.permute.xlu0 %2377
        %2380 = vset.pattern.permute.xlu0 8
        %2381 = vperm.xlu0 %2380, %v819
        %v2382 = vpop.permute.xlu0 %2381
        %2384 = vset.pattern.permute.xlu0 8
        %2385 = vperm.xlu0 %2384, %v824
        %v2386 = vpop.permute.xlu0 %2385
        %2388 = vset.pattern.permute.xlu0 8
        %2389 = vperm.xlu0 %2388, %v829
        %v2390 = vpop.permute.xlu0 %2389
        %2392 = vset.pattern.permute.xlu0 8
        %2393 = vperm.xlu0 %2392, %v834
        %v2394 = vpop.permute.xlu0 %2393
        %2396 = vset.pattern.permute.xlu0 8
        %2397 = vperm.xlu0 %2396, %v839
        %v2398 = vpop.permute.xlu0 %2397
        %2400 = vset.pattern.permute.xlu0 8
        %2401 = vperm.xlu0 %2400, %v844
        %v2402 = vpop.permute.xlu0 %2401
        %2404 = vset.pattern.permute.xlu0 8
        %2405 = vperm.xlu0 %2404, %v849
        %v2406 = vpop.permute.xlu0 %2405
        %2408 = vset.pattern.permute.xlu0 8
        %2409 = vperm.xlu0 %2408, %v854
        %v2410 = vpop.permute.xlu0 %2409
        %2412 = vset.pattern.permute.xlu0 8
        %2413 = vperm.xlu0 %2412, %v859
        %v2414 = vpop.permute.xlu0 %2413
        %v2416 = vlaneseq
        %v2417 = vshrl.u32 %v2416, 7
        %v2418 = vsub.s32 0, %v2417
        %v2419 = vrot.slane %v975, %v2418
        %v2420 = vadd.f32 %v2354, %v2419
        %v2421 = vadd.f32 %v2358, %v2419
        %v2422 = vadd.f32 %v2362, %v2419
        %v2423 = vadd.f32 %v2366, %v2419
        %v2424 = vadd.f32 %v2370, %v2419
        %v2425 = vadd.f32 %v2374, %v2419
        %v2426 = vadd.f32 %v2378, %v2419
        %v2427 = vadd.f32 %v2382, %v2419
        %v2428 = vadd.f32 %v2386, %v2419
        %v2429 = vadd.f32 %v2390, %v2419
        %v2430 = vadd.f32 %v2394, %v2419
        %v2431 = vadd.f32 %v2398, %v2419
        %v2432 = vadd.f32 %v2402, %v2419
        %v2433 = vadd.f32 %v2406, %v2419
        %v2434 = vadd.f32 %v2410, %v2419
        %v2435 = vadd.f32 %v2414, %v2419
        %v2436 = vand.u32 2147483647, %v2420
        %v2437 = vand.u32 2147483647, %v2421
        %v2438 = vand.u32 2147483647, %v2422
        %v2439 = vand.u32 2147483647, %v2423
        %v2440 = vand.u32 2147483647, %v2424
        %v2441 = vand.u32 2147483647, %v2425
        %v2442 = vand.u32 2147483647, %v2426
        %v2443 = vand.u32 2147483647, %v2427
        %v2444 = vand.u32 2147483647, %v2428
        %v2445 = vand.u32 2147483647, %v2429
        %v2446 = vand.u32 2147483647, %v2430
        %v2447 = vand.u32 2147483647, %v2431
        %v2448 = vand.u32 2147483647, %v2432
        %v2449 = vand.u32 2147483647, %v2433
        %v2450 = vand.u32 2147483647, %v2434
        %v2451 = vand.u32 2147483647, %v2435
        %v2452 = vstv %s2351
        %v2453 = vmul.f32 %v2452, %v2436
        %v2454 = vmul.f32 %v2452, %v2437
        %v2455 = vmul.f32 %v2452, %v2438
        %v2456 = vmul.f32 %v2452, %v2439
        %v2457 = vmul.f32 %v2452, %v2440
        %v2458 = vmul.f32 %v2452, %v2441
        %v2459 = vmul.f32 %v2452, %v2442
        %v2460 = vmul.f32 %v2452, %v2443
        %v2461 = vmul.f32 %v2452, %v2444
        %v2462 = vmul.f32 %v2452, %v2445
        %v2463 = vmul.f32 %v2452, %v2446
        %v2464 = vmul.f32 %v2452, %v2447
        %v2465 = vmul.f32 %v2452, %v2448
        %v2466 = vmul.f32 %v2452, %v2449
        %v2467 = vmul.f32 %v2452, %v2450
        %v2468 = vmul.f32 %v2452, %v2451
        %s2469 = sld [smem:[#allocation10 + $0x81]]
        %2470 = vset.pattern.permute.xlu0 9
        %2471 = vperm.xlu0 %2470, %v784
        %v2472 = vpop.permute.xlu0 %2471
        %2474 = vset.pattern.permute.xlu0 9
        %2475 = vperm.xlu0 %2474, %v789
        %v2476 = vpop.permute.xlu0 %2475
        %2478 = vset.pattern.permute.xlu0 9
        %2479 = vperm.xlu0 %2478, %v794
        %v2480 = vpop.permute.xlu0 %2479
        %2482 = vset.pattern.permute.xlu0 9
        %2483 = vperm.xlu0 %2482, %v799
        %v2484 = vpop.permute.xlu0 %2483
        %2486 = vset.pattern.permute.xlu0 9
        %2487 = vperm.xlu0 %2486, %v804
        %v2488 = vpop.permute.xlu0 %2487
        %2490 = vset.pattern.permute.xlu0 9
        %2491 = vperm.xlu0 %2490, %v809
        %v2492 = vpop.permute.xlu0 %2491
        %2494 = vset.pattern.permute.xlu0 9
        %2495 = vperm.xlu0 %2494, %v814
        %v2496 = vpop.permute.xlu0 %2495
        %2498 = vset.pattern.permute.xlu0 9
        %2499 = vperm.xlu0 %2498, %v819
        %v2500 = vpop.permute.xlu0 %2499
        %2502 = vset.pattern.permute.xlu0 9
        %2503 = vperm.xlu0 %2502, %v824
        %v2504 = vpop.permute.xlu0 %2503
        %2506 = vset.pattern.permute.xlu0 9
        %2507 = vperm.xlu0 %2506, %v829
        %v2508 = vpop.permute.xlu0 %2507
        %2510 = vset.pattern.permute.xlu0 9
        %2511 = vperm.xlu0 %2510, %v834
        %v2512 = vpop.permute.xlu0 %2511
        %2514 = vset.pattern.permute.xlu0 9
        %2515 = vperm.xlu0 %2514, %v839
        %v2516 = vpop.permute.xlu0 %2515
        %2518 = vset.pattern.permute.xlu0 9
        %2519 = vperm.xlu0 %2518, %v844
        %v2520 = vpop.permute.xlu0 %2519
        %2522 = vset.pattern.permute.xlu0 9
        %2523 = vperm.xlu0 %2522, %v849
        %v2524 = vpop.permute.xlu0 %2523
        %2526 = vset.pattern.permute.xlu0 9
        %2527 = vperm.xlu0 %2526, %v854
        %v2528 = vpop.permute.xlu0 %2527
        %2530 = vset.pattern.permute.xlu0 9
        %2531 = vperm.xlu0 %2530, %v859
        %v2532 = vpop.permute.xlu0 %2531
        %v2534 = vlaneseq
        %v2535 = vshrl.u32 %v2534, 7
        %v2536 = vsub.s32 1, %v2535
        %v2537 = vrot.slane %v975, %v2536
        %v2538 = vadd.f32 %v2472, %v2537
        %v2539 = vadd.f32 %v2476, %v2537
        %v2540 = vadd.f32 %v2480, %v2537
        %v2541 = vadd.f32 %v2484, %v2537
        %v2542 = vadd.f32 %v2488, %v2537
        %v2543 = vadd.f32 %v2492, %v2537
        %v2544 = vadd.f32 %v2496, %v2537
        %v2545 = vadd.f32 %v2500, %v2537
        %v2546 = vadd.f32 %v2504, %v2537
        %v2547 = vadd.f32 %v2508, %v2537
        %v2548 = vadd.f32 %v2512, %v2537
        %v2549 = vadd.f32 %v2516, %v2537
        %v2550 = vadd.f32 %v2520, %v2537
        %v2551 = vadd.f32 %v2524, %v2537
        %v2552 = vadd.f32 %v2528, %v2537
        %v2553 = vadd.f32 %v2532, %v2537
        %v2554 = vand.u32 2147483647, %v2538
        %v2555 = vand.u32 2147483647, %v2539
        %v2556 = vand.u32 2147483647, %v2540
        %v2557 = vand.u32 2147483647, %v2541
        %v2558 = vand.u32 2147483647, %v2542
        %v2559 = vand.u32 2147483647, %v2543
        %v2560 = vand.u32 2147483647, %v2544
        %v2561 = vand.u32 2147483647, %v2545
        %v2562 = vand.u32 2147483647, %v2546
        %v2563 = vand.u32 2147483647, %v2547
        %v2564 = vand.u32 2147483647, %v2548
        %v2565 = vand.u32 2147483647, %v2549
        %v2566 = vand.u32 2147483647, %v2550
        %v2567 = vand.u32 2147483647, %v2551
        %v2568 = vand.u32 2147483647, %v2552
        %v2569 = vand.u32 2147483647, %v2553
        %v2570 = vstv %s2469
        %v2571 = vmul.f32 %v2570, %v2554
        %v2572 = vmul.f32 %v2570, %v2555
        %v2573 = vmul.f32 %v2570, %v2556
        %v2574 = vmul.f32 %v2570, %v2557
        %v2575 = vmul.f32 %v2570, %v2558
        %v2576 = vmul.f32 %v2570, %v2559
        %v2577 = vmul.f32 %v2570, %v2560
        %v2578 = vmul.f32 %v2570, %v2561
        %v2579 = vmul.f32 %v2570, %v2562
        %v2580 = vmul.f32 %v2570, %v2563
        %v2581 = vmul.f32 %v2570, %v2564
        %v2582 = vmul.f32 %v2570, %v2565
        %v2583 = vmul.f32 %v2570, %v2566
        %v2584 = vmul.f32 %v2570, %v2567
        %v2585 = vmul.f32 %v2570, %v2568
        %v2586 = vmul.f32 %v2570, %v2569
        %v2587 = vadd.f32 %v2453, %v2571
        %v2588 = vadd.f32 %v2454, %v2572
        %v2589 = vadd.f32 %v2455, %v2573
        %v2590 = vadd.f32 %v2456, %v2574
        %v2591 = vadd.f32 %v2457, %v2575
        %v2592 = vadd.f32 %v2458, %v2576
        %v2593 = vadd.f32 %v2459, %v2577
        %v2594 = vadd.f32 %v2460, %v2578
        %v2595 = vadd.f32 %v2461, %v2579
        %v2596 = vadd.f32 %v2462, %v2580
        %v2597 = vadd.f32 %v2463, %v2581
        %v2598 = vadd.f32 %v2464, %v2582
        %v2599 = vadd.f32 %v2465, %v2583
        %v2600 = vadd.f32 %v2466, %v2584
        %v2601 = vadd.f32 %v2467, %v2585
        %v2602 = vadd.f32 %v2468, %v2586
        %s2603 = sld [smem:[#allocation10 + $0x82]]
        %2604 = vset.pattern.permute.xlu0 10
        %2605 = vperm.xlu0 %2604, %v784
        %v2606 = vpop.permute.xlu0 %2605
        %2608 = vset.pattern.permute.xlu0 10
        %2609 = vperm.xlu0 %2608, %v789
        %v2610 = vpop.permute.xlu0 %2609
        %2612 = vset.pattern.permute.xlu0 10
        %2613 = vperm.xlu0 %2612, %v794
        %v2614 = vpop.permute.xlu0 %2613
        %2616 = vset.pattern.permute.xlu0 10
        %2617 = vperm.xlu0 %2616, %v799
        %v2618 = vpop.permute.xlu0 %2617
        %2620 = vset.pattern.permute.xlu0 10
        %2621 = vperm.xlu0 %2620, %v804
        %v2622 = vpop.permute.xlu0 %2621
        %2624 = vset.pattern.permute.xlu0 10
        %2625 = vperm.xlu0 %2624, %v809
        %v2626 = vpop.permute.xlu0 %2625
        %2628 = vset.pattern.permute.xlu0 10
        %2629 = vperm.xlu0 %2628, %v814
        %v2630 = vpop.permute.xlu0 %2629
        %2632 = vset.pattern.permute.xlu0 10
        %2633 = vperm.xlu0 %2632, %v819
        %v2634 = vpop.permute.xlu0 %2633
        %2636 = vset.pattern.permute.xlu0 10
        %2637 = vperm.xlu0 %2636, %v824
        %v2638 = vpop.permute.xlu0 %2637
        %2640 = vset.pattern.permute.xlu0 10
        %2641 = vperm.xlu0 %2640, %v829
        %v2642 = vpop.permute.xlu0 %2641
        %2644 = vset.pattern.permute.xlu0 10
        %2645 = vperm.xlu0 %2644, %v834
        %v2646 = vpop.permute.xlu0 %2645
        %2648 = vset.pattern.permute.xlu0 10
        %2649 = vperm.xlu0 %2648, %v839
        %v2650 = vpop.permute.xlu0 %2649
        %2652 = vset.pattern.permute.xlu0 10
        %2653 = vperm.xlu0 %2652, %v844
        %v2654 = vpop.permute.xlu0 %2653
        %2656 = vset.pattern.permute.xlu0 10
        %2657 = vperm.xlu0 %2656, %v849
        %v2658 = vpop.permute.xlu0 %2657
        %2660 = vset.pattern.permute.xlu0 10
        %2661 = vperm.xlu0 %2660, %v854
        %v2662 = vpop.permute.xlu0 %2661
        %2664 = vset.pattern.permute.xlu0 10
        %2665 = vperm.xlu0 %2664, %v859
        %v2666 = vpop.permute.xlu0 %2665
        %v2668 = vlaneseq
        %v2669 = vshrl.u32 %v2668, 7
        %v2670 = vsub.s32 2, %v2669
        %v2671 = vrot.slane %v975, %v2670
        %v2672 = vadd.f32 %v2606, %v2671
        %v2673 = vadd.f32 %v2610, %v2671
        %v2674 = vadd.f32 %v2614, %v2671
        %v2675 = vadd.f32 %v2618, %v2671
        %v2676 = vadd.f32 %v2622, %v2671
        %v2677 = vadd.f32 %v2626, %v2671
        %v2678 = vadd.f32 %v2630, %v2671
        %v2679 = vadd.f32 %v2634, %v2671
        %v2680 = vadd.f32 %v2638, %v2671
        %v2681 = vadd.f32 %v2642, %v2671
        %v2682 = vadd.f32 %v2646, %v2671
        %v2683 = vadd.f32 %v2650, %v2671
        %v2684 = vadd.f32 %v2654, %v2671
        %v2685 = vadd.f32 %v2658, %v2671
        %v2686 = vadd.f32 %v2662, %v2671
        %v2687 = vadd.f32 %v2666, %v2671
        %v2688 = vand.u32 2147483647, %v2672
        %v2689 = vand.u32 2147483647, %v2673
        %v2690 = vand.u32 2147483647, %v2674
        %v2691 = vand.u32 2147483647, %v2675
        %v2692 = vand.u32 2147483647, %v2676
        %v2693 = vand.u32 2147483647, %v2677
        %v2694 = vand.u32 2147483647, %v2678
        %v2695 = vand.u32 2147483647, %v2679
        %v2696 = vand.u32 2147483647, %v2680
        %v2697 = vand.u32 2147483647, %v2681
        %v2698 = vand.u32 2147483647, %v2682
        %v2699 = vand.u32 2147483647, %v2683
        %v2700 = vand.u32 2147483647, %v2684
        %v2701 = vand.u32 2147483647, %v2685
        %v2702 = vand.u32 2147483647, %v2686
        %v2703 = vand.u32 2147483647, %v2687
        %v2704 = vstv %s2603
        %v2705 = vmul.f32 %v2704, %v2688
        %v2706 = vmul.f32 %v2704, %v2689
        %v2707 = vmul.f32 %v2704, %v2690
        %v2708 = vmul.f32 %v2704, %v2691
        %v2709 = vmul.f32 %v2704, %v2692
        %v2710 = vmul.f32 %v2704, %v2693
        %v2711 = vmul.f32 %v2704, %v2694
        %v2712 = vmul.f32 %v2704, %v2695
        %v2713 = vmul.f32 %v2704, %v2696
        %v2714 = vmul.f32 %v2704, %v2697
        %v2715 = vmul.f32 %v2704, %v2698
        %v2716 = vmul.f32 %v2704, %v2699
        %v2717 = vmul.f32 %v2704, %v2700
        %v2718 = vmul.f32 %v2704, %v2701
        %v2719 = vmul.f32 %v2704, %v2702
        %v2720 = vmul.f32 %v2704, %v2703
        %v2721 = vadd.f32 %v2587, %v2705
        %v2722 = vadd.f32 %v2588, %v2706
        %v2723 = vadd.f32 %v2589, %v2707
        %v2724 = vadd.f32 %v2590, %v2708
        %v2725 = vadd.f32 %v2591, %v2709
        %v2726 = vadd.f32 %v2592, %v2710
        %v2727 = vadd.f32 %v2593, %v2711
        %v2728 = vadd.f32 %v2594, %v2712
        %v2729 = vadd.f32 %v2595, %v2713
        %v2730 = vadd.f32 %v2596, %v2714
        %v2731 = vadd.f32 %v2597, %v2715
        %v2732 = vadd.f32 %v2598, %v2716
        %v2733 = vadd.f32 %v2599, %v2717
        %v2734 = vadd.f32 %v2600, %v2718
        %v2735 = vadd.f32 %v2601, %v2719
        %v2736 = vadd.f32 %v2602, %v2720
        %s2737 = sld [smem:[#allocation10 + $0x83]]
        %2738 = vset.pattern.permute.xlu0 11
        %2739 = vperm.xlu0 %2738, %v784
        %v2740 = vpop.permute.xlu0 %2739
        %2742 = vset.pattern.permute.xlu0 11
        %2743 = vperm.xlu0 %2742, %v789
        %v2744 = vpop.permute.xlu0 %2743
        %2746 = vset.pattern.permute.xlu0 11
        %2747 = vperm.xlu0 %2746, %v794
        %v2748 = vpop.permute.xlu0 %2747
        %2750 = vset.pattern.permute.xlu0 11
        %2751 = vperm.xlu0 %2750, %v799
        %v2752 = vpop.permute.xlu0 %2751
        %2754 = vset.pattern.permute.xlu0 11
        %2755 = vperm.xlu0 %2754, %v804
        %v2756 = vpop.permute.xlu0 %2755
        %2758 = vset.pattern.permute.xlu0 11
        %2759 = vperm.xlu0 %2758, %v809
        %v2760 = vpop.permute.xlu0 %2759
        %2762 = vset.pattern.permute.xlu0 11
        %2763 = vperm.xlu0 %2762, %v814
        %v2764 = vpop.permute.xlu0 %2763
        %2766 = vset.pattern.permute.xlu0 11
        %2767 = vperm.xlu0 %2766, %v819
        %v2768 = vpop.permute.xlu0 %2767
        %2770 = vset.pattern.permute.xlu0 11
        %2771 = vperm.xlu0 %2770, %v824
        %v2772 = vpop.permute.xlu0 %2771
        %2774 = vset.pattern.permute.xlu0 11
        %2775 = vperm.xlu0 %2774, %v829
        %v2776 = vpop.permute.xlu0 %2775
        %2778 = vset.pattern.permute.xlu0 11
        %2779 = vperm.xlu0 %2778, %v834
        %v2780 = vpop.permute.xlu0 %2779
        %2782 = vset.pattern.permute.xlu0 11
        %2783 = vperm.xlu0 %2782, %v839
        %v2784 = vpop.permute.xlu0 %2783
        %2786 = vset.pattern.permute.xlu0 11
        %2787 = vperm.xlu0 %2786, %v844
        %v2788 = vpop.permute.xlu0 %2787
        %2790 = vset.pattern.permute.xlu0 11
        %2791 = vperm.xlu0 %2790, %v849
        %v2792 = vpop.permute.xlu0 %2791
        %2794 = vset.pattern.permute.xlu0 11
        %2795 = vperm.xlu0 %2794, %v854
        %v2796 = vpop.permute.xlu0 %2795
        %2798 = vset.pattern.permute.xlu0 11
        %2799 = vperm.xlu0 %2798, %v859
        %v2800 = vpop.permute.xlu0 %2799
        %v2802 = vlaneseq
        %v2803 = vshrl.u32 %v2802, 7
        %v2804 = vsub.s32 3, %v2803
        %v2805 = vrot.slane %v975, %v2804
        %v2806 = vadd.f32 %v2740, %v2805
        %v2807 = vadd.f32 %v2744, %v2805
        %v2808 = vadd.f32 %v2748, %v2805
        %v2809 = vadd.f32 %v2752, %v2805
        %v2810 = vadd.f32 %v2756, %v2805
        %v2811 = vadd.f32 %v2760, %v2805
        %v2812 = vadd.f32 %v2764, %v2805
        %v2813 = vadd.f32 %v2768, %v2805
        %v2814 = vadd.f32 %v2772, %v2805
        %v2815 = vadd.f32 %v2776, %v2805
        %v2816 = vadd.f32 %v2780, %v2805
        %v2817 = vadd.f32 %v2784, %v2805
        %v2818 = vadd.f32 %v2788, %v2805
        %v2819 = vadd.f32 %v2792, %v2805
        %v2820 = vadd.f32 %v2796, %v2805
        %v2821 = vadd.f32 %v2800, %v2805
        %v2822 = vand.u32 2147483647, %v2806
        %v2823 = vand.u32 2147483647, %v2807
        %v2824 = vand.u32 2147483647, %v2808
        %v2825 = vand.u32 2147483647, %v2809
        %v2826 = vand.u32 2147483647, %v2810
        %v2827 = vand.u32 2147483647, %v2811
        %v2828 = vand.u32 2147483647, %v2812
        %v2829 = vand.u32 2147483647, %v2813
        %v2830 = vand.u32 2147483647, %v2814
        %v2831 = vand.u32 2147483647, %v2815
        %v2832 = vand.u32 2147483647, %v2816
        %v2833 = vand.u32 2147483647, %v2817
        %v2834 = vand.u32 2147483647, %v2818
        %v2835 = vand.u32 2147483647, %v2819
        %v2836 = vand.u32 2147483647, %v2820
        %v2837 = vand.u32 2147483647, %v2821
        %v2838 = vstv %s2737
        %v2839 = vmul.f32 %v2838, %v2822
        %v2840 = vmul.f32 %v2838, %v2823
        %v2841 = vmul.f32 %v2838, %v2824
        %v2842 = vmul.f32 %v2838, %v2825
        %v2843 = vmul.f32 %v2838, %v2826
        %v2844 = vmul.f32 %v2838, %v2827
        %v2845 = vmul.f32 %v2838, %v2828
        %v2846 = vmul.f32 %v2838, %v2829
        %v2847 = vmul.f32 %v2838, %v2830
        %v2848 = vmul.f32 %v2838, %v2831
        %v2849 = vmul.f32 %v2838, %v2832
        %v2850 = vmul.f32 %v2838, %v2833
        %v2851 = vmul.f32 %v2838, %v2834
        %v2852 = vmul.f32 %v2838, %v2835
        %v2853 = vmul.f32 %v2838, %v2836
        %v2854 = vmul.f32 %v2838, %v2837
        %v2855 = vadd.f32 %v2721, %v2839
        %v2856 = vadd.f32 %v2722, %v2840
        %v2857 = vadd.f32 %v2723, %v2841
        %v2858 = vadd.f32 %v2724, %v2842
        %v2859 = vadd.f32 %v2725, %v2843
        %v2860 = vadd.f32 %v2726, %v2844
        %v2861 = vadd.f32 %v2727, %v2845
        %v2862 = vadd.f32 %v2728, %v2846
        %v2863 = vadd.f32 %v2729, %v2847
        %v2864 = vadd.f32 %v2730, %v2848
        %v2865 = vadd.f32 %v2731, %v2849
        %v2866 = vadd.f32 %v2732, %v2850
        %v2867 = vadd.f32 %v2733, %v2851
        %v2868 = vadd.f32 %v2734, %v2852
        %v2869 = vadd.f32 %v2735, %v2853
        %v2870 = vadd.f32 %v2736, %v2854
        %s2871 = sld [smem:[#allocation10 + $0x84]]
        %2872 = vset.pattern.permute.xlu0 12
        %2873 = vperm.xlu0 %2872, %v784
        %v2874 = vpop.permute.xlu0 %2873
        %2876 = vset.pattern.permute.xlu0 12
        %2877 = vperm.xlu0 %2876, %v789
        %v2878 = vpop.permute.xlu0 %2877
        %2880 = vset.pattern.permute.xlu0 12
        %2881 = vperm.xlu0 %2880, %v794
        %v2882 = vpop.permute.xlu0 %2881
        %2884 = vset.pattern.permute.xlu0 12
        %2885 = vperm.xlu0 %2884, %v799
        %v2886 = vpop.permute.xlu0 %2885
        %2888 = vset.pattern.permute.xlu0 12
        %2889 = vperm.xlu0 %2888, %v804
        %v2890 = vpop.permute.xlu0 %2889
        %2892 = vset.pattern.permute.xlu0 12
        %2893 = vperm.xlu0 %2892, %v809
        %v2894 = vpop.permute.xlu0 %2893
        %2896 = vset.pattern.permute.xlu0 12
        %2897 = vperm.xlu0 %2896, %v814
        %v2898 = vpop.permute.xlu0 %2897
        %2900 = vset.pattern.permute.xlu0 12
        %2901 = vperm.xlu0 %2900, %v819
        %v2902 = vpop.permute.xlu0 %2901
        %2904 = vset.pattern.permute.xlu0 12
        %2905 = vperm.xlu0 %2904, %v824
        %v2906 = vpop.permute.xlu0 %2905
        %2908 = vset.pattern.permute.xlu0 12
        %2909 = vperm.xlu0 %2908, %v829
        %v2910 = vpop.permute.xlu0 %2909
        %2912 = vset.pattern.permute.xlu0 12
        %2913 = vperm.xlu0 %2912, %v834
        %v2914 = vpop.permute.xlu0 %2913
        %2916 = vset.pattern.permute.xlu0 12
        %2917 = vperm.xlu0 %2916, %v839
        %v2918 = vpop.permute.xlu0 %2917
        %2920 = vset.pattern.permute.xlu0 12
        %2921 = vperm.xlu0 %2920, %v844
        %v2922 = vpop.permute.xlu0 %2921
        %2924 = vset.pattern.permute.xlu0 12
        %2925 = vperm.xlu0 %2924, %v849
        %v2926 = vpop.permute.xlu0 %2925
        %2928 = vset.pattern.permute.xlu0 12
        %2929 = vperm.xlu0 %2928, %v854
        %v2930 = vpop.permute.xlu0 %2929
        %2932 = vset.pattern.permute.xlu0 12
        %2933 = vperm.xlu0 %2932, %v859
        %v2934 = vpop.permute.xlu0 %2933
        %v2936 = vlaneseq
        %v2937 = vshrl.u32 %v2936, 7
        %v2938 = vsub.s32 4, %v2937
        %v2939 = vrot.slane %v975, %v2938
        %v2940 = vadd.f32 %v2874, %v2939
        %v2941 = vadd.f32 %v2878, %v2939
        %v2942 = vadd.f32 %v2882, %v2939
        %v2943 = vadd.f32 %v2886, %v2939
        %v2944 = vadd.f32 %v2890, %v2939
        %v2945 = vadd.f32 %v2894, %v2939
        %v2946 = vadd.f32 %v2898, %v2939
        %v2947 = vadd.f32 %v2902, %v2939
        %v2948 = vadd.f32 %v2906, %v2939
        %v2949 = vadd.f32 %v2910, %v2939
        %v2950 = vadd.f32 %v2914, %v2939
        %v2951 = vadd.f32 %v2918, %v2939
        %v2952 = vadd.f32 %v2922, %v2939
        %v2953 = vadd.f32 %v2926, %v2939
        %v2954 = vadd.f32 %v2930, %v2939
        %v2955 = vadd.f32 %v2934, %v2939
        %v2956 = vand.u32 2147483647, %v2940
        %v2957 = vand.u32 2147483647, %v2941
        %v2958 = vand.u32 2147483647, %v2942
        %v2959 = vand.u32 2147483647, %v2943
        %v2960 = vand.u32 2147483647, %v2944
        %v2961 = vand.u32 2147483647, %v2945
        %v2962 = vand.u32 2147483647, %v2946
        %v2963 = vand.u32 2147483647, %v2947
        %v2964 = vand.u32 2147483647, %v2948
        %v2965 = vand.u32 2147483647, %v2949
        %v2966 = vand.u32 2147483647, %v2950
        %v2967 = vand.u32 2147483647, %v2951
        %v2968 = vand.u32 2147483647, %v2952
        %v2969 = vand.u32 2147483647, %v2953
        %v2970 = vand.u32 2147483647, %v2954
        %v2971 = vand.u32 2147483647, %v2955
        %v2972 = vstv %s2871
        %v2973 = vmul.f32 %v2972, %v2956
        %v2974 = vmul.f32 %v2972, %v2957
        %v2975 = vmul.f32 %v2972, %v2958
        %v2976 = vmul.f32 %v2972, %v2959
        %v2977 = vmul.f32 %v2972, %v2960
        %v2978 = vmul.f32 %v2972, %v2961
        %v2979 = vmul.f32 %v2972, %v2962
        %v2980 = vmul.f32 %v2972, %v2963
        %v2981 = vmul.f32 %v2972, %v2964
        %v2982 = vmul.f32 %v2972, %v2965
        %v2983 = vmul.f32 %v2972, %v2966
        %v2984 = vmul.f32 %v2972, %v2967
        %v2985 = vmul.f32 %v2972, %v2968
        %v2986 = vmul.f32 %v2972, %v2969
        %v2987 = vmul.f32 %v2972, %v2970
        %v2988 = vmul.f32 %v2972, %v2971
        %v2989 = vadd.f32 %v2855, %v2973
        %v2990 = vadd.f32 %v2856, %v2974
        %v2991 = vadd.f32 %v2857, %v2975
        %v2992 = vadd.f32 %v2858, %v2976
        %v2993 = vadd.f32 %v2859, %v2977
        %v2994 = vadd.f32 %v2860, %v2978
        %v2995 = vadd.f32 %v2861, %v2979
        %v2996 = vadd.f32 %v2862, %v2980
        %v2997 = vadd.f32 %v2863, %v2981
        %v2998 = vadd.f32 %v2864, %v2982
        %v2999 = vadd.f32 %v2865, %v2983
        %v3000 = vadd.f32 %v2866, %v2984
        %v3001 = vadd.f32 %v2867, %v2985
        %v3002 = vadd.f32 %v2868, %v2986
        %v3003 = vadd.f32 %v2869, %v2987
        %v3004 = vadd.f32 %v2870, %v2988
        %s3005 = sld [smem:[#allocation10 + $0x85]]
        %3006 = vset.pattern.permute.xlu0 13
        %3007 = vperm.xlu0 %3006, %v784
        %v3008 = vpop.permute.xlu0 %3007
        %3010 = vset.pattern.permute.xlu0 13
        %3011 = vperm.xlu0 %3010, %v789
        %v3012 = vpop.permute.xlu0 %3011
        %3014 = vset.pattern.permute.xlu0 13
        %3015 = vperm.xlu0 %3014, %v794
        %v3016 = vpop.permute.xlu0 %3015
        %3018 = vset.pattern.permute.xlu0 13
        %3019 = vperm.xlu0 %3018, %v799
        %v3020 = vpop.permute.xlu0 %3019
        %3022 = vset.pattern.permute.xlu0 13
        %3023 = vperm.xlu0 %3022, %v804
        %v3024 = vpop.permute.xlu0 %3023
        %3026 = vset.pattern.permute.xlu0 13
        %3027 = vperm.xlu0 %3026, %v809
        %v3028 = vpop.permute.xlu0 %3027
        %3030 = vset.pattern.permute.xlu0 13
        %3031 = vperm.xlu0 %3030, %v814
        %v3032 = vpop.permute.xlu0 %3031
        %3034 = vset.pattern.permute.xlu0 13
        %3035 = vperm.xlu0 %3034, %v819
        %v3036 = vpop.permute.xlu0 %3035
        %3038 = vset.pattern.permute.xlu0 13
        %3039 = vperm.xlu0 %3038, %v824
        %v3040 = vpop.permute.xlu0 %3039
        %3042 = vset.pattern.permute.xlu0 13
        %3043 = vperm.xlu0 %3042, %v829
        %v3044 = vpop.permute.xlu0 %3043
        %3046 = vset.pattern.permute.xlu0 13
        %3047 = vperm.xlu0 %3046, %v834
        %v3048 = vpop.permute.xlu0 %3047
        %3050 = vset.pattern.permute.xlu0 13
        %3051 = vperm.xlu0 %3050, %v839
        %v3052 = vpop.permute.xlu0 %3051
        %3054 = vset.pattern.permute.xlu0 13
        %3055 = vperm.xlu0 %3054, %v844
        %v3056 = vpop.permute.xlu0 %3055
        %3058 = vset.pattern.permute.xlu0 13
        %3059 = vperm.xlu0 %3058, %v849
        %v3060 = vpop.permute.xlu0 %3059
        %3062 = vset.pattern.permute.xlu0 13
        %3063 = vperm.xlu0 %3062, %v854
        %v3064 = vpop.permute.xlu0 %3063
        %3066 = vset.pattern.permute.xlu0 13
        %3067 = vperm.xlu0 %3066, %v859
        %v3068 = vpop.permute.xlu0 %3067
        %v3070 = vlaneseq
        %v3071 = vshrl.u32 %v3070, 7
        %v3072 = vsub.s32 5, %v3071
        %v3073 = vrot.slane %v975, %v3072
        %v3074 = vadd.f32 %v3008, %v3073
        %v3075 = vadd.f32 %v3012, %v3073
        %v3076 = vadd.f32 %v3016, %v3073
        %v3077 = vadd.f32 %v3020, %v3073
        %v3078 = vadd.f32 %v3024, %v3073
        %v3079 = vadd.f32 %v3028, %v3073
        %v3080 = vadd.f32 %v3032, %v3073
        %v3081 = vadd.f32 %v3036, %v3073
        %v3082 = vadd.f32 %v3040, %v3073
        %v3083 = vadd.f32 %v3044, %v3073
        %v3084 = vadd.f32 %v3048, %v3073
        %v3085 = vadd.f32 %v3052, %v3073
        %v3086 = vadd.f32 %v3056, %v3073
        %v3087 = vadd.f32 %v3060, %v3073
        %v3088 = vadd.f32 %v3064, %v3073
        %v3089 = vadd.f32 %v3068, %v3073
        %v3090 = vand.u32 2147483647, %v3074
        %v3091 = vand.u32 2147483647, %v3075
        %v3092 = vand.u32 2147483647, %v3076
        %v3093 = vand.u32 2147483647, %v3077
        %v3094 = vand.u32 2147483647, %v3078
        %v3095 = vand.u32 2147483647, %v3079
        %v3096 = vand.u32 2147483647, %v3080
        %v3097 = vand.u32 2147483647, %v3081
        %v3098 = vand.u32 2147483647, %v3082
        %v3099 = vand.u32 2147483647, %v3083
        %v3100 = vand.u32 2147483647, %v3084
        %v3101 = vand.u32 2147483647, %v3085
        %v3102 = vand.u32 2147483647, %v3086
        %v3103 = vand.u32 2147483647, %v3087
        %v3104 = vand.u32 2147483647, %v3088
        %v3105 = vand.u32 2147483647, %v3089
        %v3106 = vstv %s3005
        %v3107 = vmul.f32 %v3106, %v3090
        %v3108 = vmul.f32 %v3106, %v3091
        %v3109 = vmul.f32 %v3106, %v3092
        %v3110 = vmul.f32 %v3106, %v3093
        %v3111 = vmul.f32 %v3106, %v3094
        %v3112 = vmul.f32 %v3106, %v3095
        %v3113 = vmul.f32 %v3106, %v3096
        %v3114 = vmul.f32 %v3106, %v3097
        %v3115 = vmul.f32 %v3106, %v3098
        %v3116 = vmul.f32 %v3106, %v3099
        %v3117 = vmul.f32 %v3106, %v3100
        %v3118 = vmul.f32 %v3106, %v3101
        %v3119 = vmul.f32 %v3106, %v3102
        %v3120 = vmul.f32 %v3106, %v3103
        %v3121 = vmul.f32 %v3106, %v3104
        %v3122 = vmul.f32 %v3106, %v3105
        %v3123 = vadd.f32 %v2989, %v3107
        %v3124 = vadd.f32 %v2990, %v3108
        %v3125 = vadd.f32 %v2991, %v3109
        %v3126 = vadd.f32 %v2992, %v3110
        %v3127 = vadd.f32 %v2993, %v3111
        %v3128 = vadd.f32 %v2994, %v3112
        %v3129 = vadd.f32 %v2995, %v3113
        %v3130 = vadd.f32 %v2996, %v3114
        %v3131 = vadd.f32 %v2997, %v3115
        %v3132 = vadd.f32 %v2998, %v3116
        %v3133 = vadd.f32 %v2999, %v3117
        %v3134 = vadd.f32 %v3000, %v3118
        %v3135 = vadd.f32 %v3001, %v3119
        %v3136 = vadd.f32 %v3002, %v3120
        %v3137 = vadd.f32 %v3003, %v3121
        %v3138 = vadd.f32 %v3004, %v3122
        %s3139 = sld [smem:[#allocation10 + $0x86]]
        %3140 = vset.pattern.permute.xlu0 14
        %3141 = vperm.xlu0 %3140, %v784
        %v3142 = vpop.permute.xlu0 %3141
        %3144 = vset.pattern.permute.xlu0 14
        %3145 = vperm.xlu0 %3144, %v789
        %v3146 = vpop.permute.xlu0 %3145
        %3148 = vset.pattern.permute.xlu0 14
        %3149 = vperm.xlu0 %3148, %v794
        %v3150 = vpop.permute.xlu0 %3149
        %3152 = vset.pattern.permute.xlu0 14
        %3153 = vperm.xlu0 %3152, %v799
        %v3154 = vpop.permute.xlu0 %3153
        %3156 = vset.pattern.permute.xlu0 14
        %3157 = vperm.xlu0 %3156, %v804
        %v3158 = vpop.permute.xlu0 %3157
        %3160 = vset.pattern.permute.xlu0 14
        %3161 = vperm.xlu0 %3160, %v809
        %v3162 = vpop.permute.xlu0 %3161
        %3164 = vset.pattern.permute.xlu0 14
        %3165 = vperm.xlu0 %3164, %v814
        %v3166 = vpop.permute.xlu0 %3165
        %3168 = vset.pattern.permute.xlu0 14
        %3169 = vperm.xlu0 %3168, %v819
        %v3170 = vpop.permute.xlu0 %3169
        %3172 = vset.pattern.permute.xlu0 14
        %3173 = vperm.xlu0 %3172, %v824
        %v3174 = vpop.permute.xlu0 %3173
        %3176 = vset.pattern.permute.xlu0 14
        %3177 = vperm.xlu0 %3176, %v829
        %v3178 = vpop.permute.xlu0 %3177
        %3180 = vset.pattern.permute.xlu0 14
        %3181 = vperm.xlu0 %3180, %v834
        %v3182 = vpop.permute.xlu0 %3181
        %3184 = vset.pattern.permute.xlu0 14
        %3185 = vperm.xlu0 %3184, %v839
        %v3186 = vpop.permute.xlu0 %3185
        %3188 = vset.pattern.permute.xlu0 14
        %3189 = vperm.xlu0 %3188, %v844
        %v3190 = vpop.permute.xlu0 %3189
        %3192 = vset.pattern.permute.xlu0 14
        %3193 = vperm.xlu0 %3192, %v849
        %v3194 = vpop.permute.xlu0 %3193
        %3196 = vset.pattern.permute.xlu0 14
        %3197 = vperm.xlu0 %3196, %v854
        %v3198 = vpop.permute.xlu0 %3197
        %3200 = vset.pattern.permute.xlu0 14
        %3201 = vperm.xlu0 %3200, %v859
        %v3202 = vpop.permute.xlu0 %3201
        %v3204 = vlaneseq
        %v3205 = vshrl.u32 %v3204, 7
        %v3206 = vsub.s32 6, %v3205
        %v3207 = vrot.slane %v975, %v3206
        %v3208 = vadd.f32 %v3142, %v3207
        %v3209 = vadd.f32 %v3146, %v3207
        %v3210 = vadd.f32 %v3150, %v3207
        %v3211 = vadd.f32 %v3154, %v3207
        %v3212 = vadd.f32 %v3158, %v3207
        %v3213 = vadd.f32 %v3162, %v3207
        %v3214 = vadd.f32 %v3166, %v3207
        %v3215 = vadd.f32 %v3170, %v3207
        %v3216 = vadd.f32 %v3174, %v3207
        %v3217 = vadd.f32 %v3178, %v3207
        %v3218 = vadd.f32 %v3182, %v3207
        %v3219 = vadd.f32 %v3186, %v3207
        %v3220 = vadd.f32 %v3190, %v3207
        %v3221 = vadd.f32 %v3194, %v3207
        %v3222 = vadd.f32 %v3198, %v3207
        %v3223 = vadd.f32 %v3202, %v3207
        %v3224 = vand.u32 2147483647, %v3208
        %v3225 = vand.u32 2147483647, %v3209
        %v3226 = vand.u32 2147483647, %v3210
        %v3227 = vand.u32 2147483647, %v3211
        %v3228 = vand.u32 2147483647, %v3212
        %v3229 = vand.u32 2147483647, %v3213
        %v3230 = vand.u32 2147483647, %v3214
        %v3231 = vand.u32 2147483647, %v3215
        %v3232 = vand.u32 2147483647, %v3216
        %v3233 = vand.u32 2147483647, %v3217
        %v3234 = vand.u32 2147483647, %v3218
        %v3235 = vand.u32 2147483647, %v3219
        %v3236 = vand.u32 2147483647, %v3220
        %v3237 = vand.u32 2147483647, %v3221
        %v3238 = vand.u32 2147483647, %v3222
        %v3239 = vand.u32 2147483647, %v3223
        %v3240 = vstv %s3139
        %v3241 = vmul.f32 %v3240, %v3224
        %v3242 = vmul.f32 %v3240, %v3225
        %v3243 = vmul.f32 %v3240, %v3226
        %v3244 = vmul.f32 %v3240, %v3227
        %v3245 = vmul.f32 %v3240, %v3228
        %v3246 = vmul.f32 %v3240, %v3229
        %v3247 = vmul.f32 %v3240, %v3230
        %v3248 = vmul.f32 %v3240, %v3231
        %v3249 = vmul.f32 %v3240, %v3232
        %v3250 = vmul.f32 %v3240, %v3233
        %v3251 = vmul.f32 %v3240, %v3234
        %v3252 = vmul.f32 %v3240, %v3235
        %v3253 = vmul.f32 %v3240, %v3236
        %v3254 = vmul.f32 %v3240, %v3237
        %v3255 = vmul.f32 %v3240, %v3238
        %v3256 = vmul.f32 %v3240, %v3239
        %v3257 = vadd.f32 %v3123, %v3241
        %v3258 = vadd.f32 %v3124, %v3242
        %v3259 = vadd.f32 %v3125, %v3243
        %v3260 = vadd.f32 %v3126, %v3244
        %v3261 = vadd.f32 %v3127, %v3245
        %v3262 = vadd.f32 %v3128, %v3246
        %v3263 = vadd.f32 %v3129, %v3247
        %v3264 = vadd.f32 %v3130, %v3248
        %v3265 = vadd.f32 %v3131, %v3249
        %v3266 = vadd.f32 %v3132, %v3250
        %v3267 = vadd.f32 %v3133, %v3251
        %v3268 = vadd.f32 %v3134, %v3252
        %v3269 = vadd.f32 %v3135, %v3253
        %v3270 = vadd.f32 %v3136, %v3254
        %v3271 = vadd.f32 %v3137, %v3255
        %v3272 = vadd.f32 %v3138, %v3256
        %s3273 = sld [smem:[#allocation10 + $0x87]]
        %3274 = vset.pattern.permute.xlu0 15
        %3275 = vperm.xlu0 %3274, %v784
        %v3276 = vpop.permute.xlu0 %3275
        %3278 = vset.pattern.permute.xlu0 15
        %3279 = vperm.xlu0 %3278, %v789
        %v3280 = vpop.permute.xlu0 %3279
        %3282 = vset.pattern.permute.xlu0 15
        %3283 = vperm.xlu0 %3282, %v794
        %v3284 = vpop.permute.xlu0 %3283
        %3286 = vset.pattern.permute.xlu0 15
        %3287 = vperm.xlu0 %3286, %v799
        %v3288 = vpop.permute.xlu0 %3287
        %3290 = vset.pattern.permute.xlu0 15
        %3291 = vperm.xlu0 %3290, %v804
        %v3292 = vpop.permute.xlu0 %3291
        %3294 = vset.pattern.permute.xlu0 15
        %3295 = vperm.xlu0 %3294, %v809
        %v3296 = vpop.permute.xlu0 %3295
        %3298 = vset.pattern.permute.xlu0 15
        %3299 = vperm.xlu0 %3298, %v814
        %v3300 = vpop.permute.xlu0 %3299
        %3302 = vset.pattern.permute.xlu0 15
        %3303 = vperm.xlu0 %3302, %v819
        %v3304 = vpop.permute.xlu0 %3303
        %3306 = vset.pattern.permute.xlu0 15
        %3307 = vperm.xlu0 %3306, %v824
        %v3308 = vpop.permute.xlu0 %3307
        %3310 = vset.pattern.permute.xlu0 15
        %3311 = vperm.xlu0 %3310, %v829
        %v3312 = vpop.permute.xlu0 %3311
        %3314 = vset.pattern.permute.xlu0 15
        %3315 = vperm.xlu0 %3314, %v834
        %v3316 = vpop.permute.xlu0 %3315
        %3318 = vset.pattern.permute.xlu0 15
        %3319 = vperm.xlu0 %3318, %v839
        %v3320 = vpop.permute.xlu0 %3319
        %3322 = vset.pattern.permute.xlu0 15
        %3323 = vperm.xlu0 %3322, %v844
        %v3324 = vpop.permute.xlu0 %3323
        %3326 = vset.pattern.permute.xlu0 15
        %3327 = vperm.xlu0 %3326, %v849
        %v3328 = vpop.permute.xlu0 %3327
        %3330 = vset.pattern.permute.xlu0 15
        %3331 = vperm.xlu0 %3330, %v854
        %v3332 = vpop.permute.xlu0 %3331
        %3334 = vset.pattern.permute.xlu0 15
        %3335 = vperm.xlu0 %3334, %v859
        %v3336 = vpop.permute.xlu0 %3335
        %v3338 = vlaneseq
        %v3339 = vshrl.u32 %v3338, 7
        %v3340 = vsub.s32 7, %v3339
        %v3341 = vrot.slane %v975, %v3340
        %v3342 = vadd.f32 %v3276, %v3341
        %v3343 = vadd.f32 %v3280, %v3341
        %v3344 = vadd.f32 %v3284, %v3341
        %v3345 = vadd.f32 %v3288, %v3341
        %v3346 = vadd.f32 %v3292, %v3341
        %v3347 = vadd.f32 %v3296, %v3341
        %v3348 = vadd.f32 %v3300, %v3341
        %v3349 = vadd.f32 %v3304, %v3341
        %v3350 = vadd.f32 %v3308, %v3341
        %v3351 = vadd.f32 %v3312, %v3341
        %v3352 = vadd.f32 %v3316, %v3341
        %v3353 = vadd.f32 %v3320, %v3341
        %v3354 = vadd.f32 %v3324, %v3341
        %v3355 = vadd.f32 %v3328, %v3341
        %v3356 = vadd.f32 %v3332, %v3341
        %v3357 = vadd.f32 %v3336, %v3341
        %v3358 = vand.u32 2147483647, %v3342
        %v3359 = vand.u32 2147483647, %v3343
        %v3360 = vand.u32 2147483647, %v3344
        %v3361 = vand.u32 2147483647, %v3345
        %v3362 = vand.u32 2147483647, %v3346
        %v3363 = vand.u32 2147483647, %v3347
        %v3364 = vand.u32 2147483647, %v3348
        %v3365 = vand.u32 2147483647, %v3349
        %v3366 = vand.u32 2147483647, %v3350
        %v3367 = vand.u32 2147483647, %v3351
        %v3368 = vand.u32 2147483647, %v3352
        %v3369 = vand.u32 2147483647, %v3353
        %v3370 = vand.u32 2147483647, %v3354
        %v3371 = vand.u32 2147483647, %v3355
        %v3372 = vand.u32 2147483647, %v3356
        %v3373 = vand.u32 2147483647, %v3357
        %v3374 = vstv %s3273
        %v3375 = vmul.f32 %v3374, %v3358
        %v3376 = vmul.f32 %v3374, %v3359
        %v3377 = vmul.f32 %v3374, %v3360
        %v3378 = vmul.f32 %v3374, %v3361
        %v3379 = vmul.f32 %v3374, %v3362
        %v3380 = vmul.f32 %v3374, %v3363
        %v3381 = vmul.f32 %v3374, %v3364
        %v3382 = vmul.f32 %v3374, %v3365
        %v3383 = vmul.f32 %v3374, %v3366
        %v3384 = vmul.f32 %v3374, %v3367
        %v3385 = vmul.f32 %v3374, %v3368
        %v3386 = vmul.f32 %v3374, %v3369
        %v3387 = vmul.f32 %v3374, %v3370
        %v3388 = vmul.f32 %v3374, %v3371
        %v3389 = vmul.f32 %v3374, %v3372
        %v3390 = vmul.f32 %v3374, %v3373
        %v3391 = vadd.f32 %v3257, %v3375
        %v3392 = vadd.f32 %v3258, %v3376
        %v3393 = vadd.f32 %v3259, %v3377
        %v3394 = vadd.f32 %v3260, %v3378
        %v3395 = vadd.f32 %v3261, %v3379
        %v3396 = vadd.f32 %v3262, %v3380
        %v3397 = vadd.f32 %v3263, %v3381
        %v3398 = vadd.f32 %v3264, %v3382
        %v3399 = vadd.f32 %v3265, %v3383
        %v3400 = vadd.f32 %v3266, %v3384
        %v3401 = vadd.f32 %v3267, %v3385
        %v3402 = vadd.f32 %v3268, %v3386
        %v3403 = vadd.f32 %v3269, %v3387
        %v3404 = vadd.f32 %v3270, %v3388
        %v3405 = vadd.f32 %v3271, %v3389
        %v3406 = vadd.f32 %v3272, %v3390
        %v3407 = vlaneseq
        %v3408 = vshrl.u32 %v3407, 7
        %v3409 = vsub.s32 1, %v3408
        %v3410 = vrot.slane %v976, %v3409
        %3411 = vset.pattern.permute.xlu0 17
        %3412 = vperm.xlu0 %3411, %v784
        %v3413 = vpop.permute.xlu0 %3412
        %3415 = vset.pattern.permute.xlu0 17
        %3416 = vperm.xlu0 %3415, %v789
        %v3417 = vpop.permute.xlu0 %3416
        %3419 = vset.pattern.permute.xlu0 17
        %3420 = vperm.xlu0 %3419, %v794
        %v3421 = vpop.permute.xlu0 %3420
        %3423 = vset.pattern.permute.xlu0 17
        %3424 = vperm.xlu0 %3423, %v799
        %v3425 = vpop.permute.xlu0 %3424
        %3427 = vset.pattern.permute.xlu0 17
        %3428 = vperm.xlu0 %3427, %v804
        %v3429 = vpop.permute.xlu0 %3428
        %3431 = vset.pattern.permute.xlu0 17
        %3432 = vperm.xlu0 %3431, %v809
        %v3433 = vpop.permute.xlu0 %3432
        %3435 = vset.pattern.permute.xlu0 17
        %3436 = vperm.xlu0 %3435, %v814
        %v3437 = vpop.permute.xlu0 %3436
        %3439 = vset.pattern.permute.xlu0 17
        %3440 = vperm.xlu0 %3439, %v819
        %v3441 = vpop.permute.xlu0 %3440
        %3443 = vset.pattern.permute.xlu0 17
        %3444 = vperm.xlu0 %3443, %v824
        %v3445 = vpop.permute.xlu0 %3444
        %3447 = vset.pattern.permute.xlu0 17
        %3448 = vperm.xlu0 %3447, %v829
        %v3449 = vpop.permute.xlu0 %3448
        %3451 = vset.pattern.permute.xlu0 17
        %3452 = vperm.xlu0 %3451, %v834
        %v3453 = vpop.permute.xlu0 %3452
        %3455 = vset.pattern.permute.xlu0 17
        %3456 = vperm.xlu0 %3455, %v839
        %v3457 = vpop.permute.xlu0 %3456
        %3459 = vset.pattern.permute.xlu0 17
        %3460 = vperm.xlu0 %3459, %v844
        %v3461 = vpop.permute.xlu0 %3460
        %3463 = vset.pattern.permute.xlu0 17
        %3464 = vperm.xlu0 %3463, %v849
        %v3465 = vpop.permute.xlu0 %3464
        %3467 = vset.pattern.permute.xlu0 17
        %3468 = vperm.xlu0 %3467, %v854
        %v3469 = vpop.permute.xlu0 %3468
        %3471 = vset.pattern.permute.xlu0 17
        %3472 = vperm.xlu0 %3471, %v859
        %v3473 = vpop.permute.xlu0 %3472
        %v3475 = vadd.f32 %v3410, %v3413
        %v3476 = vadd.f32 %v3410, %v3417
        %v3477 = vadd.f32 %v3410, %v3421
        %v3478 = vadd.f32 %v3410, %v3425
        %v3479 = vadd.f32 %v3410, %v3429
        %v3480 = vadd.f32 %v3410, %v3433
        %v3481 = vadd.f32 %v3410, %v3437
        %v3482 = vadd.f32 %v3410, %v3441
        %v3483 = vadd.f32 %v3410, %v3445
        %v3484 = vadd.f32 %v3410, %v3449
        %v3485 = vadd.f32 %v3410, %v3453
        %v3486 = vadd.f32 %v3410, %v3457
        %v3487 = vadd.f32 %v3410, %v3461
        %v3488 = vadd.f32 %v3410, %v3465
        %v3489 = vadd.f32 %v3410, %v3469
        %v3490 = vadd.f32 %v3410, %v3473
        %v3491 = vadd.f32 %v3475, %v3391
        %v3492 = vadd.f32 %v3476, %v3392
        %v3493 = vadd.f32 %v3477, %v3393
        %v3494 = vadd.f32 %v3478, %v3394
        %v3495 = vadd.f32 %v3479, %v3395
        %v3496 = vadd.f32 %v3480, %v3396
        %v3497 = vadd.f32 %v3481, %v3397
        %v3498 = vadd.f32 %v3482, %v3398
        %v3499 = vadd.f32 %v3483, %v3399
        %v3500 = vadd.f32 %v3484, %v3400
        %v3501 = vadd.f32 %v3485, %v3401
        %v3502 = vadd.f32 %v3486, %v3402
        %v3503 = vadd.f32 %v3487, %v3403
        %v3504 = vadd.f32 %v3488, %v3404
        %v3505 = vadd.f32 %v3489, %v3405
        %v3506 = vadd.f32 %v3490, %v3406
        %s3507 = scalar_lea.vmem [#allocation3], 1
        %v3508 = vld [vmem:[%s3507] sm:$0x1]
        %v3509 = vmax.f32 %v3491, %v3495
        %v3510 = vmax.f32 %v3492, %v3496
        %v3511 = vmax.f32 %v3493, %v3497
        %v3512 = vmax.f32 %v3494, %v3498
        %v3513 = vmax.f32 %v3509, %v3499
        %v3514 = vmax.f32 %v3510, %v3500
        %v3515 = vmax.f32 %v3511, %v3501
        %v3516 = vmax.f32 %v3512, %v3502
        %v3517 = vmax.f32 %v3513, %v3503
        %v3518 = vmax.f32 %v3514, %v3504
        %v3519 = vmax.f32 %v3515, %v3505
        %v3520 = vmax.f32 %v3516, %v3506
        %v3521 = vmax.f32 %v3517, %v3518
        %v3522 = vmax.f32 %v3519, %v3520
        %v3523 = vmax.f32 %v3521, %v3522
        %v3524 = vrot.slane %v3523, 4
        %v3525 = vmax.f32 %v3523, %v3524
        %v3526 = vrot.slane %v3525, 2
        %v3527 = vmax.f32 %v3525, %v3526
        %v3528 = vrot.slane %v3527, 1
        %v3529 = vmax.f32 %v3527, %v3528
        %v3530 = vmax.f32 %v3508, %v3529
        %v3531 = vsub.f32 %v3508, %v3530
        %v3532 = vmul.f32 %v3531, 1.442695
        %v3533 = vpow.pop %v3532
        %v3535 = vlaneseq
        %v3536 = vshrl.u32 %v3535, 7
        %v3537 = vsub.s32 0, %v3536
        %v3538 = vrot.slane %v3530, %v3537
        %v3540 = vsub.f32 %v3491, %v3538
        %v3541 = vsub.f32 %v3492, %v3538
        %v3542 = vsub.f32 %v3493, %v3538
        %v3543 = vsub.f32 %v3494, %v3538
        %v3544 = vsub.f32 %v3495, %v3538
        %v3545 = vsub.f32 %v3496, %v3538
        %v3546 = vsub.f32 %v3497, %v3538
        %v3547 = vsub.f32 %v3498, %v3538
        %v3548 = vsub.f32 %v3499, %v3538
        %v3549 = vsub.f32 %v3500, %v3538
        %v3550 = vsub.f32 %v3501, %v3538
        %v3551 = vsub.f32 %v3502, %v3538
        %v3552 = vsub.f32 %v3503, %v3538
        %v3553 = vsub.f32 %v3504, %v3538
        %v3554 = vsub.f32 %v3505, %v3538
        %v3555 = vsub.f32 %v3506, %v3538
        %v3556 = vmul.f32 %v3540, 1.442695
        %v3557 = vpow.pop %v3556
        %v3558 = vmul.f32 %v3541, 1.442695
        %v3559 = vpow.pop %v3558
        %v3560 = vmul.f32 %v3542, 1.442695
        %v3561 = vpow.pop %v3560
        %v3562 = vmul.f32 %v3543, 1.442695
        %v3563 = vpow.pop %v3562
        %v3564 = vmul.f32 %v3544, 1.442695
        %v3565 = vpow.pop %v3564
        %v3566 = vmul.f32 %v3545, 1.442695
        %v3567 = vpow.pop %v3566
        %v3568 = vmul.f32 %v3546, 1.442695
        %v3569 = vpow.pop %v3568
        %v3570 = vmul.f32 %v3547, 1.442695
        %v3571 = vpow.pop %v3570
        %v3572 = vmul.f32 %v3548, 1.442695
        %v3573 = vpow.pop %v3572
        %v3574 = vmul.f32 %v3549, 1.442695
        %v3575 = vpow.pop %v3574
        %v3576 = vmul.f32 %v3550, 1.442695
        %v3577 = vpow.pop %v3576
        %v3578 = vmul.f32 %v3551, 1.442695
        %v3579 = vpow.pop %v3578
        %v3580 = vmul.f32 %v3552, 1.442695
        %v3581 = vpow.pop %v3580
        %v3582 = vmul.f32 %v3553, 1.442695
        %v3583 = vpow.pop %v3582
        %v3584 = vmul.f32 %v3554, 1.442695
        %v3585 = vpow.pop %v3584
        %v3586 = vmul.f32 %v3555, 1.442695
        %v3587 = vpow.pop %v3586
        %v3588 = vmul.f32 %v958, %v3557
        %v3589 = vmul.f32 %v959, %v3559
        %v3590 = vmul.f32 %v960, %v3561
        %v3591 = vmul.f32 %v961, %v3563
        %v3592 = vmul.f32 %v962, %v3565
        %v3593 = vmul.f32 %v963, %v3567
        %v3594 = vmul.f32 %v964, %v3569
        %v3595 = vmul.f32 %v965, %v3571
        %v3596 = vmul.f32 %v966, %v3573
        %v3597 = vmul.f32 %v967, %v3575
        %v3598 = vmul.f32 %v968, %v3577
        %v3599 = vmul.f32 %v969, %v3579
        %v3600 = vmul.f32 %v970, %v3581
        %v3601 = vmul.f32 %v971, %v3583
        %v3602 = vmul.f32 %v972, %v3585
        %v3603 = vmul.f32 %v973, %v3587
        %s3604 = scalar_lea.vmem [#allocation4], 1
        %v3605 = vld [vmem:[%s3604] sm:$0x1]
        %v3606 = vmul.f32 %v3605, %v3533
        %v3607 = vadd.f32 %v3588, %v3589
        %v3608 = vadd.f32 %v3607, %v3590
        %v3609 = vadd.f32 %v3608, %v3591
        %v3610 = vadd.f32 %v3609, %v3592
        %v3611 = vadd.f32 %v3610, %v3593
        %v3612 = vadd.f32 %v3611, %v3594
        %v3613 = vadd.f32 %v3612, %v3595
        %v3614 = vadd.f32 %v3613, %v3596
        %v3615 = vadd.f32 %v3614, %v3597
        %v3616 = vadd.f32 %v3615, %v3598
        %v3617 = vadd.f32 %v3616, %v3599
        %v3618 = vadd.f32 %v3617, %v3600
        %v3619 = vadd.f32 %v3618, %v3601
        %v3620 = vadd.f32 %v3619, %v3602
        %v3621 = vadd.f32 %v3620, %v3603
        %v3622 = vrot.slane %v3621, 4
        %v3623 = vadd.f32 %v3621, %v3622
        %v3624 = vrot.slane %v3623, 2
        %v3625 = vadd.f32 %v3623, %v3624
        %v3626 = vrot.slane %v3625, 1
        %v3627 = vadd.f32 %v3625, %v3626
        %v3628 = vadd.f32 %v3606, %v3627
        %3629 = vst [vmem:[%s3604] sm:$0x1] %v3628
        %s3630 = scalar_lea.vmem [#allocation5], 8
        %v3631 = vld [vmem:[%s3630] sm:$0xff]
        %v3633 = vlaneseq
        %v3634 = vshrl.u32 %v3633, 7
        %v3635 = vsub.s32 0, %v3634
        %v3636 = vrot.slane %v3533, %v3635
        %v3638 = vmul.f32 %v3631, %v3636
        %3639 = vmatprep.subr.mxu0 0.0
        %3640 = vmatpush1.msra.mxu0 %v3603
        %3641 = vmatprep.subr.mxu0 0.0
        %3642 = vmatpush1.msra.mxu0 %v3602
        %3643 = vmatprep.subr.mxu0 0.0
        %3644 = vmatpush1.msra.mxu0 %v3601
        %3645 = vmatprep.subr.mxu0 0.0
        %3646 = vmatpush1.msra.mxu0 %v3600
        %3647 = vmatprep.subr.mxu0 0.0
        %3648 = vmatpush1.msra.mxu0 %v3599
        %3649 = vmatprep.subr.mxu0 0.0
        %3650 = vmatpush1.msra.mxu0 %v3598
        %3651 = vmatprep.subr.mxu0 0.0
        %3652 = vmatpush1.msra.mxu0 %v3597
        %3653 = vmatprep.subr.mxu0 0.0
        %3654 = vmatpush1.msra.mxu0 %v3596
        %3655 = vmatprep.subr.mxu0 0.0
        %3656 = vmatpush1.msra.mxu0 %v3595
        %3657 = vmatprep.subr.mxu0 0.0
        %3658 = vmatpush1.msra.mxu0 %v3594
        %3659 = vmatprep.subr.mxu0 0.0
        %3660 = vmatpush1.msra.mxu0 %v3593
        %3661 = vmatprep.subr.mxu0 0.0
        %3662 = vmatpush1.msra.mxu0 %v3592
        %3663 = vmatprep.subr.mxu0 0.0
        %3664 = vmatpush1.msra.mxu0 %v3591
        %3665 = vmatprep.subr.mxu0 0.0
        %3666 = vmatpush1.msra.mxu0 %v3590
        %3667 = vmatprep.subr.mxu0 0.0
        %3668 = vmatpush1.msra.mxu0 %v3589
        %3669 = vmatprep.subr.mxu0 0.0
        %3670 = vmatpush1.msra.mxu0 %v3588
        %3671 = vmatprep.subr.mxu0 0.0
        %3672 = vmatpush2.msra.mxu0 0.0
        %3673 = vmatprep.subr.mxu0 0.0
        %3674 = vmatpush2.msra.mxu0 0.0
        %3675 = vmatprep.subr.mxu0 0.0
        %3676 = vmatpush2.msra.mxu0 0.0
        %3677 = vmatprep.subr.mxu0 0.0
        %3678 = vmatpush2.msra.mxu0 0.0
        %3679 = vmatprep.subr.mxu0 0.0
        %3680 = vmatpush2.msra.mxu0 0.0
        %3681 = vmatprep.subr.mxu0 0.0
        %3682 = vmatpush2.msra.mxu0 0.0
        %3683 = vmatprep.subr.mxu0 0.0
        %3684 = vmatpush2.msra.mxu0 0.0
        %3685 = vmatprep.subr.mxu0 0.0
        %3686 = vmatpush2.msra.mxu0 0.0
        %3687 = vmatprep.subr.mxu0 0.0
        %3688 = vmatpush2.msra.mxu0 0.0
        %3689 = vmatprep.subr.mxu0 0.0
        %3690 = vmatpush2.msra.mxu0 0.0
        %3691 = vmatprep.subr.mxu0 0.0
        %3692 = vmatpush2.msra.mxu0 0.0
        %3693 = vmatprep.subr.mxu0 0.0
        %3694 = vmatpush2.msra.mxu0 0.0
        %3695 = vmatprep.subr.mxu0 0.0
        %3696 = vmatpush2.msra.mxu0 0.0
        %3697 = vmatprep.subr.mxu0 0.0
        %3698 = vmatpush2.msra.mxu0 0.0
        %3699 = vmatprep.subr.mxu0 0.0
        %3700 = vmatpush2.msra.mxu0 0.0
        %3701 = vmatprep.subr.mxu0 0.0
        %3702 = vmatpush2.msra.mxu0 0.0
        %3703 = vmatprep.mubr.f32.mxu0 0.0
        %3704 = vmatmul.mubr.f32.gmra.mxu0 %v955
        %v3705 = vpop.f32.mrf.mxu0
        %v3706 = vadd.f32 0.0, %v3705
        %v3707 = vpop.f32.mrf.mxu0
        %3708 = vdwg.mxu0
        %v3709 = vadd.f32 %v3638, %v3706
        %3710 = vst [vmem:[%s3630] sm:$0xff] %v3709
        %3711 = vst [vmem:[%s3507] sm:$0x1] %v3530
        %p3712 = scmp.eq.s32.totalorder %s35, 1
        // Predicated region
        $region81: #{tpu_custom_call.1} parent=67 // pred_check
          %p3713 = pneg %p3712
        $region82: #{tpu_custom_call.1} parent=67 // pred_check_branch
          %3715 = sbr.rel (%p3713) target = $region84
        $region83: #{tpu_custom_call.1} parent=67 // pred_region
          %v3716 = vld [vmem:[#allocation5] sm:$0xff]
          %v3717 = vld [vmem:[#allocation4] sm:$0x1]
          %v3718 = vrcp.pop %v3717
          %v3720 = vlaneseq
          %v3721 = vshrl.u32 %v3720, 7
          %v3722 = vsub.s32 0, %v3721
          %v3723 = vrot.slane %v3718, %v3722
          %v3725 = vmul.f32 %v3716, %v3723
          %v3726 = vld [vmem:[%s3630] sm:$0xff]
          %v3727 = vld [vmem:[%s3604] sm:$0x1]
          %v3728 = vrcp.pop %v3727
          %v3730 = vlaneseq
          %v3731 = vshrl.u32 %v3730, 7
          %v3732 = vsub.s32 0, %v3731
          %v3733 = vrot.slane %v3728, %v3732
          %v3735 = vmul.f32 %v3726, %v3733
          %v3736 = vadd.f32 %v3725, %v3735
          %v3737 = vmul.f32 %v3736, 0.5
          %v3738 = vld [vmem:[%s11] sm:$0xff]
          %3740 = vset.pattern.permute.xlu0 0
          %3741 = vperm.xlu0 %3740, %v3738
          %v3742 = vpop.permute.xlu0 %3741
          %v3744 = vadd.f32 %v3737, %v3742
          %3745 = vst [vmem:[%s503] sm:$0xff] %v3744
        $region84: #{tpu_custom_call.1} parent=67 // pred_fallthru
          _
        %s3746 = sand.u32 %s324, 1
        %s3747 = scalar_lea.sflag [#allocation8], %s3746
        %s3748 = sand.u32 %s324, 1
        %s3749 = smul.addr %s3748, 8
        %s3750 = scalar_lea.vmem [#allocation11], %s3749
        // Predicated region
        $region85: #{tpu_custom_call.1} parent=67 // pred_check
          %p3751 = pneg %p334
        $region86: #{tpu_custom_call.1} parent=67 // pred_check_branch
          %3753 = sbr.rel (%p3751) target = $region88
        $region87: #{tpu_custom_call.1} parent=67 // pred_region
          %s3755 = ssub.s32 128, 128
          %3756 = vsyncadd %s3747, %s3755
          %s3757 = smul.addr %s34, 128
          %s3758 = scalar_lea.hbm %s12, %s3757
          %s3760 = sshll.u32 %s3750, 4
          %s3761 = int_to_ptr.vmem [resolvable:$true] %s3760
          %3763 = dma.vmem_to_hbm [thread:$0]  %s3761, 128, %s3758, %s3747
        $region88: #{tpu_custom_call.1} parent=67 // pred_fallthru
          _
      $region68: #{tpu_custom_call.1} parent=5 // pred_fallthru
        _
      %p3764 = scmp.le.s32.totalorder 2, %s25
      // Predicated region
      $region89: #{tpu_custom_call.1} parent=5 // pred_check
        %p3765 = pneg %p3764
      $region90: #{tpu_custom_call.1} parent=5 // pred_check_branch
        %3767 = sbr.rel (%p3765) target = $region92
      $region91: #{tpu_custom_call.1} parent=5 // pred_region
        %s3768 = ssub.s32 %s25, 2
        // Predicated region
        $region93: #{tpu_custom_call.1} parent=91 // pred_check
          %p3769 = pneg %p340
        $region94: #{tpu_custom_call.1} parent=91 // pred_check_branch
          %3771 = sbr.rel (%p3769) target = $region96
        $region95: #{tpu_custom_call.1} parent=91 // pred_region
          %s3772 = sand.u32 %s325, 1
          %s3773 = scalar_lea.sflag [#allocation8], %s3772
          %s3774 = sand.u32 %s325, 1
          %s3775 = smul.addr %s3774, 8
          %s3776 = scalar_lea.vmem [#allocation11], %s3775
          %3777 = dma.done %s3773, 128
        $region96: #{tpu_custom_call.1} parent=91 // pred_fallthru
          _
      $region92: #{tpu_custom_call.1} parent=5 // pred_fallthru
        _
    $region6: #{tpu_custom_call.1} parent=1 // loop_footer
      %s29 = sadd.s32 1, %s25
    $region7: #{tpu_custom_call.1} parent=1 // loop_footer_branch
      %24 = sbr.rel target = $region3
    $region8: #{tpu_custom_call.1} parent=1 // loop_exit
      _
    %3778 = vsyncpa [#allocation7], 1
    %s3779 = scalar_lea.sflag [#allocation7], 1
    %3780 = vsyncpa %s3779, 1
    %3781 = vsyncpa [#allocation8], 1
    %s3782 = scalar_lea.sflag [#allocation8], 1
    %3783 = vsyncpa %s3782, 1
    %3784 = vsyncpa [#allocation9], 1
    %s3785 = scalar_lea.sflag [#allocation9], 1
    %3786 = vsyncpa %s3785, 1

</llo_original>
